<compile_context>
chip_gen: v7x
topology: tpu7x:2x2x1
jax: 0.10.0
libtpu: 0.0.40
codegen_flags: <defaults>
</compile_context>

<pallas_src>
import jax
import jax.numpy as jnp
from jax.experimental import pallas as pl
from jax.experimental.pallas import tpu as pltpu


# --------------------------------------------------------------------------
# Kernel
# --------------------------------------------------------------------------
def _feature_agg_kernel(
    nodes_ref,      # [TB, E]        fused node features (= node embeddings)
    neighs_ref,     # [T, TB, K, E]  fused neighbor features per type
    w_a1n_ref,      # [E, E]  att1 weight, node half   (pre-transposed: in x out)
    w_a1v_ref,      # [E, E]  att1 weight, neighbor half
    b_a1_ref,       # [1, E]
    w_a2_ref,       # [E, E]
    b_a2_ref,       # [1, E]
    w_a3_ref,       # [1, E]  att3 weight (out dim 1)
    b_a3_ref,       # [1, 1]
    w_l1_ref,       # [E, E]  linear_1
    b_l1_ref,       # [1, E]
    w_type_ref,     # [T, E, T]  w_type_att, split per input type (in x out)
    w_l2_ref,       # [E, E]  linear_2
    b_l2_ref,       # [1, E]
    w_ln_ref,       # [E, E]  linear, nodes_fusion half
    w_lg_ref,       # [E, E]  linear, neigh_agg_final half
    b_lin_ref,      # [1, E]
    out_ref,        # [TB, E]  combined_feature
    att_ref,        # [TB, T]  type-level attention
):
    TB, E = nodes_ref.shape
    T = neighs_ref.shape[0]
    K = neighs_ref.shape[2]
    f32 = jnp.float32

    nodes = nodes_ref[...]                                           # [TB, E]
    neighs = neighs_ref[...]                                         # [T,TB,K,E]
    neighs2 = neighs.reshape(T * TB * K, E)

    # Node-side half of att1 (shared by every neighbor of a node), bias folded
    # in.  Broadcast ONCE to all T*K neighbor slots (hoisted; broadcasts are
    # not CSE'd if repeated inside loops).
    h_node = (jnp.dot(nodes, w_a1n_ref[...], preferred_element_type=f32)
              + b_a1_ref[...])                                       # [TB, E]
    h_node_rep = jnp.broadcast_to(
        h_node[None, :, None, :], (T, TB, K, E)).reshape(T * TB * K, E)

    # Attention MLP batched over all types and neighbor slots:
    #   x = cat([node, neigh]); relu(att1); relu(att2); att3.
    h1 = jnp.maximum(
        jnp.dot(neighs2, w_a1v_ref[...], preferred_element_type=f32)
        + h_node_rep, 0.0)                                           # [T*TB*K,E]
    h2 = jnp.maximum(
        jnp.dot(h1, w_a2_ref[...], preferred_element_type=f32)
        + b_a2_ref[...], 0.0)                                        # [T*TB*K,E]
    logits = (jnp.sum(h2 * w_a3_ref[...], axis=-1, keepdims=True)
              .reshape(T, TB, K, 1)
              + b_a3_ref[...].reshape(1, 1, 1, 1))                   # [T,TB,K,1]

    # Softmax over the K neighbors of each (type, node).
    m = jnp.max(logits, axis=2, keepdims=True)
    p = jnp.exp(logits - m)
    att_w = p / jnp.sum(p, axis=2, keepdims=True)                    # [T,TB,K,1]

    # Attention-weighted neighbor aggregation, then linear_1 + relu
    # (one matmul covering all T types).
    neigh_feat = jnp.sum(att_w * neighs, axis=2)                     # [T,TB,E]
    aggs = jnp.maximum(
        jnp.dot(neigh_feat.reshape(T * TB, E), w_l1_ref[...],
                preferred_element_type=f32)
        + b_l1_ref[...], 0.0).reshape(T, TB, E)                      # [T,TB,E]

    # Type-level attention: softmax(w_type_att(cat_t aggs)) without the concat
    # (weight pre-split per input type; T is small & static).
    map_type = jnp.zeros((TB, T), f32)
    for t in range(T):
        map_type = map_type + jnp.dot(
            aggs[t], w_type_ref[t], preferred_element_type=f32)      # [TB, T]
    m = jnp.max(map_type, axis=-1, keepdims=True)
    p = jnp.exp(map_type - m)
    att_type = p / jnp.sum(p, axis=-1, keepdims=True)                # [TB, T]

    # Weighted sum over types (one-hot lane-select instead of a lane slice).
    type_iota = jax.lax.broadcasted_iota(jnp.int32, (1, T), 1)
    neigh_final = jnp.zeros((TB, E), f32)
    for t in range(T):
        w_t = jnp.sum(jnp.where(type_iota == t, att_type, 0.0),
                      axis=-1, keepdims=True)                        # [TB, 1]
        neigh_final = neigh_final + w_t * aggs[t]

    neigh_final = jnp.maximum(
        jnp.dot(neigh_final, w_l2_ref[...], preferred_element_type=f32)
        + b_l2_ref[...], 0.0)

    # linear(cat([nodes_fusion, neigh_final])) with the weight split in half.
    combined = (jnp.dot(nodes, w_ln_ref[...], preferred_element_type=f32)
                + jnp.dot(neigh_final, w_lg_ref[...], preferred_element_type=f32)
                + b_lin_ref[...])
    out_ref[...] = jnp.maximum(combined, 0.0)
    att_ref[...] = att_type


# --------------------------------------------------------------------------
# Wrapper
# --------------------------------------------------------------------------
def feature_agg_forward(nodes_idx, nodes_emb_table, nodes_profiles,
                        neigh_idx, neigh_emb_tables, neigh_profiles,
                        params, *, tile_rows=None, interpret=False):
    """Pallas equivalent of FeatureAgg.forward(nodes) -> (combined_feature, att).

    nodes_idx [B] int32; nodes_emb_table [Nn,E]; nodes_profiles [Nn,P] (unused);
    neigh_idx [T,B,K] int32; neigh_emb_tables [T,Nm,E]; neigh_profiles (unused).
    """
    del nodes_profiles, neigh_profiles     # SIAN Fusion.forward(emb, prof) == emb

    B = nodes_idx.shape[0]
    E = nodes_emb_table.shape[1]
    T, _, K = neigh_idx.shape
    f32 = jnp.float32

    # Fusion (identity) + gathers: the gather output *is* the fused feature.
    nodes_fusion = jnp.take(nodes_emb_table, nodes_idx, axis=0)          # [B, E]
    neighs_fusion = jax.vmap(
        lambda tbl, idx: jnp.take(tbl, idx, axis=0))(neigh_emb_tables,
                                                     neigh_idx)          # [T,B,K,E]

    # Weight plumbing: pre-transpose to (in, out) so the kernel never
    # transposes; split the concat-style weights so there is no in-kernel cat.
    w_a1 = params["att1"]["weight"].astype(f32)          # [E, 2E]
    w_a1n = w_a1[:, :E].T
    w_a1v = w_a1[:, E:].T
    b_a1 = params["att1"]["bias"].astype(f32)[None, :]
    w_a2 = params["att2"]["weight"].astype(f32).T
    b_a2 = params["att2"]["bias"].astype(f32)[None, :]
    w_a3 = params["att3"]["weight"].astype(f32)          # [1, E]
    b_a3 = params["att3"]["bias"].astype(f32).reshape(1, 1)
    w_l1 = params["linear_1"]["weight"].astype(f32).T
    b_l1 = params["linear_1"]["bias"].astype(f32)[None, :]
    w_type = params["w_type_att"]["weight"].astype(f32)  # [T, T*E]
    w_type_r = jnp.transpose(w_type.reshape(T, T, E), (1, 2, 0))   # [T_in,E,T_out]
    w_l2 = params["linear_2"]["weight"].astype(f32).T
    b_l2 = params["linear_2"]["bias"].astype(f32)[None, :]
    w_lin = params["linear"]["weight"].astype(f32)       # [E, 2E]
    w_ln = w_lin[:, :E].T
    w_lg = w_lin[:, E:].T
    b_lin = params["linear"]["bias"].astype(f32)[None, :]

    # Batch tiling: largest sublane-aligned tile that fits comfortably in
    # scoped VMEM, sized against v7x's smaller budget (dominant
    # double-buffered block is the [T, tile, K, E] neighbor slab).
    if tile_rows is None:
        bytes_per_row = 4 * (T * K * E + 3 * E)
        budget = 24 << 20
        tile_rows = min(B, max(8, (budget // (4 * bytes_per_row)) // 8 * 8))
    grid = (pl.cdiv(B, tile_rows),)

    def _resident(shape):
        # Whole array, same block every grid step -> stays VMEM-resident.
        return pl.BlockSpec(shape, lambda *_: (0,) * len(shape))

    in_specs = [
        pl.BlockSpec((tile_rows, E), lambda i: (i, 0)),
        pl.BlockSpec((T, tile_rows, K, E), lambda i: (0, i, 0, 0)),
        _resident((E, E)), _resident((E, E)), _resident((1, E)),
        _resident((E, E)), _resident((1, E)),
        _resident((1, E)), _resident((1, 1)),
        _resident((E, E)), _resident((1, E)),
        _resident((T, E, T)),
        _resident((E, E)), _resident((1, E)),
        _resident((E, E)), _resident((E, E)), _resident((1, E)),
    ]
    out_specs = [
        pl.BlockSpec((tile_rows, E), lambda i: (i, 0)),   # lane-dense output
        pl.BlockSpec((tile_rows, T), lambda i: (i, 0)),
    ]
    out_shape = [
        jax.ShapeDtypeStruct((B, E), f32),
        jax.ShapeDtypeStruct((B, T), f32),
    ]

    combined, att = pl.pallas_call(
        _feature_agg_kernel,
        grid=grid,
        in_specs=in_specs,
        out_specs=out_specs,
        out_shape=out_shape,
        compiler_params=pltpu.CompilerParams(
            dimension_semantics=("parallel",)),
        interpret=interpret,
    )(nodes_fusion, neighs_fusion,
      w_a1n, w_a1v, b_a1, w_a2, b_a2, w_a3, b_a3,
      w_l1, b_l1, w_type_r, w_l2, b_l2, w_ln, w_lg, b_lin)

    # PyTorch returns att with shape [B, T, 1].
    return combined, att.reshape(B, T, 1)


# --------------------------------------------------------------------------
# Pure-JAX reference (port of the PyTorch forward, eval mode) for validation
# --------------------------------------------------------------------------
def feature_agg_reference(nodes_idx, nodes_emb_table, nodes_profiles,
                          neigh_idx, neigh_emb_tables, neigh_profiles, params):
    del nodes_profiles, neigh_profiles
    B = nodes_idx.shape[0]
    E = nodes_emb_table.shape[1]
    T, _, K = neigh_idx.shape

    def linear(x, p):
        y = x @ p["weight"].T
        return y + p["bias"] if "bias" in p else y

    nodes_fusion = nodes_emb_table[nodes_idx]                  # Fusion == identity
    aggs = []
    for t in range(T):
        nf = neigh_emb_tables[t][neigh_idx[t]]                 # [B, K, E]
        x = jnp.concatenate(
            [jnp.broadcast_to(nodes_fusion[:, None, :], (B, K, E)), nf], axis=-1)
        h = jax.nn.relu(linear(x, params["att1"]))
        h = jax.nn.relu(linear(h, params["att2"]))
        logits = linear(h, params["att3"])[..., 0]             # [B, K]
        att_w = jax.nn.softmax(logits, axis=-1)
        feat = jnp.einsum("bk,bke->be", att_w, nf)
        aggs.append(jax.nn.relu(linear(feat, params["linear_1"])))

    type_agg = jnp.concatenate(aggs, axis=-1)                  # [B, T*E]
    map_type = linear(type_agg, params["w_type_att"])          # [B, T]
    att = jax.nn.softmax(map_type, axis=-1)
    neigh_final = jnp.einsum("bte,bt->be", type_agg.reshape(B, T, E), att)
    neigh_final = jax.nn.relu(linear(neigh_final, params["linear_2"]))
    combined = jnp.concatenate([nodes_fusion, neigh_final], axis=-1)
    combined = jax.nn.relu(linear(combined, params["linear"]))
    return combined, att.reshape(B, T, 1)


def init_feature_agg_params(key, emb_size, num_types):
    """Parameter pytree matching FeatureAgg.__init__ (+ the SIAN attention MLP)."""
    def linear_init(k, fan_in, fan_out, bias=True):
        kw, kb = jax.random.split(k)
        bound = 1.0 / jnp.sqrt(jnp.float32(fan_in))
        p = {"weight": jax.random.uniform(kw, (fan_out, fan_in), jnp.float32,
                                          -bound, bound)}
        if bias:
            p["bias"] = jax.random.uniform(kb, (fan_out,), jnp.float32,
                                           -bound, bound)
        return p

    ks = jax.random.split(key, 7)
    return {
        "linear_1": linear_init(ks[0], emb_size, emb_size),
        "linear_2": linear_init(ks[1], emb_size, emb_size),
        "linear": linear_init(ks[2], 2 * emb_size, emb_size),
        "w_type_att": linear_init(ks[3], num_types * emb_size, num_types,
                                  bias=False),
        # Injected SIAN Attention MLP (att1: 2E->E, att2: E->E, att3: E->1).
        "att1": linear_init(ks[4], 2 * emb_size, emb_size),
        "att2": linear_init(ks[5], emb_size, emb_size),
        "att3": linear_init(ks[6], emb_size, 1),
    }


if __name__ == "__main__":
    # Small but TPU-friendly shapes: emb_size is a multiple of 128 (lane-dense),
    # K a multiple of 8 (sublane-aligned), batch tiled so the grid has >= 2
    # parallel steps (v7x megacore sharding).
    emb_size = 128
    num_types = 2
    batch = 32
    num_neigh = 8
    num_nodes = 64
    num_neigh_nodes = 48
    profile_dim = 16

    key = jax.random.PRNGKey(0)
    k1, k2, k3, k4, k5, k6, k7 = jax.random.split(key, 7)

    nodes_emb_table = 0.1 * jax.random.normal(
        k1, (num_nodes, emb_size), jnp.float32)
    nodes_profiles = jax.random.normal(
        k2, (num_nodes, profile_dim), jnp.float32)
    neigh_emb_tables = 0.1 * jax.random.normal(
        k3, (num_types, num_neigh_nodes, emb_size), jnp.float32)
    neigh_profiles = jax.random.normal(
        k4, (num_types, num_neigh_nodes, profile_dim), jnp.float32)
    nodes_idx = jax.random.randint(k5, (batch,), 0, num_nodes, dtype=jnp.int32)
    neigh_idx = jax.random.randint(
        k6, (num_types, batch, num_neigh), 0, num_neigh_nodes, dtype=jnp.int32)
    params = init_feature_agg_params(k7, emb_size, num_types)

    combined, att = feature_agg_forward(
        nodes_idx, nodes_emb_table, nodes_profiles,
        neigh_idx, neigh_emb_tables, neigh_profiles,
        params, tile_rows=16)                      # grid = (2,)
    combined = jax.block_until_ready(combined)
    att = jax.block_until_ready(att)

    ref_combined, ref_att = feature_agg_reference(
        nodes_idx, nodes_emb_table, nodes_profiles,
        neigh_idx, neigh_emb_tables, neigh_profiles, params)

    assert combined.shape == (batch, emb_size) and combined.dtype == jnp.float32
    assert att.shape == (batch, num_types, 1)
    assert bool(jnp.allclose(combined, ref_combined, atol=2e-3, rtol=2e-2)), (
        "combined mismatch, max abs err = "
        + str(float(jnp.max(jnp.abs(combined - ref_combined)))))
    assert bool(jnp.allclose(att, ref_att, atol=2e-3, rtol=2e-2)), (
        "att mismatch, max abs err = "
        + str(float(jnp.max(jnp.abs(att - ref_att)))))
    print("KERNEL_OK")
</pallas_src>

<mosaic_0001>
module attributes {stable_mosaic.version = 11 : i64} {
  func.func @_feature_agg_kernel(%arg0: i32, %arg1: memref<16x128xf32, #tpu.memory_space<vmem>>, %arg2: memref<2x16x8x128xf32, #tpu.memory_space<vmem>>, %arg3: memref<128x128xf32, #tpu.memory_space<vmem>>, %arg4: memref<128x128xf32, #tpu.memory_space<vmem>>, %arg5: memref<1x128xf32, #tpu.memory_space<vmem>>, %arg6: memref<128x128xf32, #tpu.memory_space<vmem>>, %arg7: memref<1x128xf32, #tpu.memory_space<vmem>>, %arg8: memref<1x128xf32, #tpu.memory_space<vmem>>, %arg9: memref<1x1xf32, #tpu.memory_space<vmem>>, %arg10: memref<128x128xf32, #tpu.memory_space<vmem>>, %arg11: memref<1x128xf32, #tpu.memory_space<vmem>>, %arg12: memref<2x128x2xf32, #tpu.memory_space<vmem>>, %arg13: memref<128x128xf32, #tpu.memory_space<vmem>>, %arg14: memref<1x128xf32, #tpu.memory_space<vmem>>, %arg15: memref<128x128xf32, #tpu.memory_space<vmem>>, %arg16: memref<128x128xf32, #tpu.memory_space<vmem>>, %arg17: memref<1x128xf32, #tpu.memory_space<vmem>>, %arg18: memref<16x128xf32, #tpu.memory_space<vmem>>, %arg19: memref<16x2xf32, #tpu.memory_space<vmem>>) attributes {dimension_semantics = [#tpu.dimension_semantics<parallel>], iteration_bounds = array<i64: 2>, scalar_prefetch = 0 : i64, scratch_operands = 0 : i64, tpu.core_type = #tpu.core_type<tc>, window_params = [{transform_indices = @transform_0, window_bounds = array<i64: 16, 128>}, {transform_indices = @transform_1, window_bounds = array<i64: 2, 16, 8, 128>}, {pipeline_mode = #tpu.pipeline_mode<synchronous>, transform_indices = @transform_2, window_bounds = array<i64: 128, 128>}, {pipeline_mode = #tpu.pipeline_mode<synchronous>, transform_indices = @transform_3, window_bounds = array<i64: 128, 128>}, {pipeline_mode = #tpu.pipeline_mode<synchronous>, transform_indices = @transform_4, window_bounds = array<i64: 1, 128>}, {pipeline_mode = #tpu.pipeline_mode<synchronous>, transform_indices = @transform_5, window_bounds = array<i64: 128, 128>}, {pipeline_mode = #tpu.pipeline_mode<synchronous>, transform_indices = @transform_6, window_bounds = array<i64: 1, 128>}, {pipeline_mode = #tpu.pipeline_mode<synchronous>, transform_indices = @transform_7, window_bounds = array<i64: 1, 128>}, {pipeline_mode = #tpu.pipeline_mode<synchronous>, transform_indices = @transform_8, window_bounds = array<i64: 1, 1>}, {pipeline_mode = #tpu.pipeline_mode<synchronous>, transform_indices = @transform_9, window_bounds = array<i64: 128, 128>}, {pipeline_mode = #tpu.pipeline_mode<synchronous>, transform_indices = @transform_10, window_bounds = array<i64: 1, 128>}, {pipeline_mode = #tpu.pipeline_mode<synchronous>, transform_indices = @transform_11, window_bounds = array<i64: 2, 128, 2>}, {pipeline_mode = #tpu.pipeline_mode<synchronous>, transform_indices = @transform_12, window_bounds = array<i64: 128, 128>}, {pipeline_mode = #tpu.pipeline_mode<synchronous>, transform_indices = @transform_13, window_bounds = array<i64: 1, 128>}, {pipeline_mode = #tpu.pipeline_mode<synchronous>, transform_indices = @transform_14, window_bounds = array<i64: 128, 128>}, {pipeline_mode = #tpu.pipeline_mode<synchronous>, transform_indices = @transform_15, window_bounds = array<i64: 128, 128>}, {pipeline_mode = #tpu.pipeline_mode<synchronous>, transform_indices = @transform_16, window_bounds = array<i64: 1, 128>}, {transform_indices = @transform_17, window_bounds = array<i64: 16, 128>}, {transform_indices = @transform_18, window_bounds = array<i64: 16, 2>}]} {
    %c0 = arith.constant 0 : index
    %c0_0 = arith.constant 0 : index
    %0 = vector.load %arg1[%c0, %c0_0] : memref<16x128xf32, #tpu.memory_space<vmem>>, vector<16x128xf32>
    %c0_1 = arith.constant 0 : index
    %c0_2 = arith.constant 0 : index
    %c0_3 = arith.constant 0 : index
    %c0_4 = arith.constant 0 : index
    %1 = vector.load %arg2[%c0_1, %c0_2, %c0_3, %c0_4] : memref<2x16x8x128xf32, #tpu.memory_space<vmem>>, vector<2x16x8x128xf32>
    %2 = vector.shape_cast %1 : vector<2x16x8x128xf32> to vector<256x128xf32>
    %c0_5 = arith.constant 0 : index
    %c0_6 = arith.constant 0 : index
    %3 = vector.load %arg3[%c0_5, %c0_6] : memref<128x128xf32, #tpu.memory_space<vmem>>, vector<128x128xf32>
    %cst = arith.constant dense<0.000000e+00> : vector<16x128xf32>
    %4 = tpu.matmul %0, %3, %cst {dimension_numbers = #tpu.dot_dimension_numbers<[1], [0], [0], [1], [0, 0, 1, 1], [], []>} : vector<16x128xf32>, vector<128x128xf32>, vector<16x128xf32> -> vector<16x128xf32>
    %c0_7 = arith.constant 0 : index
    %c0_8 = arith.constant 0 : index
    %5 = vector.load %arg5[%c0_7, %c0_8] : memref<1x128xf32, #tpu.memory_space<vmem>>, vector<1x128xf32>
    %6 = vector.broadcast %5 : vector<1x128xf32> to vector<16x128xf32>
    %7 = arith.addf %4, %6 : vector<16x128xf32>
    %8 = vector.shape_cast %7 : vector<16x128xf32> to vector<1x16x1x128xf32>
    %9 = vector.shape_cast %8 : vector<1x16x1x128xf32> to vector<1x16x1x128xf32>
    %10 = vector.broadcast %9 : vector<1x16x1x128xf32> to vector<2x16x8x128xf32>
    %11 = vector.shape_cast %10 : vector<2x16x8x128xf32> to vector<256x128xf32>
    %c0_9 = arith.constant 0 : index
    %c0_10 = arith.constant 0 : index
    %12 = vector.load %arg4[%c0_9, %c0_10] : memref<128x128xf32, #tpu.memory_space<vmem>>, vector<128x128xf32>
    %cst_11 = arith.constant dense<0.000000e+00> : vector<256x128xf32>
    %13 = tpu.matmul %2, %12, %cst_11 {dimension_numbers = #tpu.dot_dimension_numbers<[1], [0], [0], [1], [0, 0, 1, 1], [], []>} : vector<256x128xf32>, vector<128x128xf32>, vector<256x128xf32> -> vector<256x128xf32>
    %14 = arith.addf %13, %11 : vector<256x128xf32>
    %cst_12 = arith.constant 0.000000e+00 : f32
    %15 = vector.broadcast %cst_12 : f32 to vector<256x128xf32>
    %16 = arith.maximumf %14, %15 : vector<256x128xf32>
    %c0_13 = arith.constant 0 : index
    %c0_14 = arith.constant 0 : index
    %17 = vector.load %arg6[%c0_13, %c0_14] : memref<128x128xf32, #tpu.memory_space<vmem>>, vector<128x128xf32>
    %cst_15 = arith.constant dense<0.000000e+00> : vector<256x128xf32>
    %18 = tpu.matmul %16, %17, %cst_15 {dimension_numbers = #tpu.dot_dimension_numbers<[1], [0], [0], [1], [0, 0, 1, 1], [], []>} : vector<256x128xf32>, vector<128x128xf32>, vector<256x128xf32> -> vector<256x128xf32>
    %c0_16 = arith.constant 0 : index
    %c0_17 = arith.constant 0 : index
    %19 = vector.load %arg7[%c0_16, %c0_17] : memref<1x128xf32, #tpu.memory_space<vmem>>, vector<1x128xf32>
    %20 = vector.broadcast %19 : vector<1x128xf32> to vector<256x128xf32>
    %21 = arith.addf %18, %20 : vector<256x128xf32>
    %cst_18 = arith.constant 0.000000e+00 : f32
    %22 = vector.broadcast %cst_18 : f32 to vector<256x128xf32>
    %23 = arith.maximumf %21, %22 : vector<256x128xf32>
    %c0_19 = arith.constant 0 : index
    %c0_20 = arith.constant 0 : index
    %24 = vector.load %arg8[%c0_19, %c0_20] : memref<1x128xf32, #tpu.memory_space<vmem>>, vector<1x128xf32>
    %25 = vector.broadcast %24 : vector<1x128xf32> to vector<256x128xf32>
    %26 = arith.mulf %23, %25 : vector<256x128xf32>
    %cst_21 = arith.constant dense<0.000000e+00> : vector<256xf32>
    %27 = vector.multi_reduction <add>, %26, %cst_21 [1] : vector<256x128xf32> to vector<256xf32>
    %28 = vector.shape_cast %27 : vector<256xf32> to vector<256x1xf32>
    %29 = vector.shape_cast %28 : vector<256x1xf32> to vector<2x16x8x1xf32>
    %c0_22 = arith.constant 0 : index
    %c0_23 = arith.constant 0 : index
    %30 = vector.load %arg9[%c0_22, %c0_23] : memref<1x1xf32, #tpu.memory_space<vmem>>, vector<1x1xf32>
    %31 = vector.shape_cast %30 : vector<1x1xf32> to vector<1x1x1x1xf32>
    %32 = vector.broadcast %31 : vector<1x1x1x1xf32> to vector<2x16x8x1xf32>
    %33 = arith.addf %29, %32 : vector<2x16x8x1xf32>
    %cst_24 = arith.constant dense<0xFF800000> : vector<2x16x1xf32>
    %34 = vector.multi_reduction <maximumf>, %33, %cst_24 [2] : vector<2x16x8x1xf32> to vector<2x16x1xf32>
    %35 = vector.shape_cast %34 : vector<2x16x1xf32> to vector<2x16x1x1xf32>
    %36 = vector.broadcast %35 : vector<2x16x1x1xf32> to vector<2x16x8x1xf32>
    %37 = arith.subf %33, %36 : vector<2x16x8x1xf32>
    %38 = math.exp %37 : vector<2x16x8x1xf32>
    %cst_25 = arith.constant dense<0.000000e+00> : vector<2x16x1xf32>
    %39 = vector.multi_reduction <add>, %38, %cst_25 [2] : vector<2x16x8x1xf32> to vector<2x16x1xf32>
    %40 = vector.shape_cast %39 : vector<2x16x1xf32> to vector<2x16x1x1xf32>
    %41 = vector.broadcast %40 : vector<2x16x1x1xf32> to vector<2x16x8x1xf32>
    %42 = arith.divf %38, %41 : vector<2x16x8x1xf32>
    %43 = vector.broadcast %42 : vector<2x16x8x1xf32> to vector<2x16x8x128xf32>
    %44 = arith.mulf %43, %1 : vector<2x16x8x128xf32>
    %cst_26 = arith.constant dense<0.000000e+00> : vector<2x16x128xf32>
    %45 = vector.multi_reduction <add>, %44, %cst_26 [2] : vector<2x16x8x128xf32> to vector<2x16x128xf32>
    %46 = vector.shape_cast %45 : vector<2x16x128xf32> to vector<32x128xf32>
    %c0_27 = arith.constant 0 : index
    %c0_28 = arith.constant 0 : index
    %47 = vector.load %arg10[%c0_27, %c0_28] : memref<128x128xf32, #tpu.memory_space<vmem>>, vector<128x128xf32>
    %cst_29 = arith.constant dense<0.000000e+00> : vector<32x128xf32>
    %48 = tpu.matmul %46, %47, %cst_29 {dimension_numbers = #tpu.dot_dimension_numbers<[1], [0], [0], [1], [0, 0, 1, 1], [], []>} : vector<32x128xf32>, vector<128x128xf32>, vector<32x128xf32> -> vector<32x128xf32>
    %c0_30 = arith.constant 0 : index
    %c0_31 = arith.constant 0 : index
    %49 = vector.load %arg11[%c0_30, %c0_31] : memref<1x128xf32, #tpu.memory_space<vmem>>, vector<1x128xf32>
    %50 = vector.broadcast %49 : vector<1x128xf32> to vector<32x128xf32>
    %51 = arith.addf %48, %50 : vector<32x128xf32>
    %cst_32 = arith.constant 0.000000e+00 : f32
    %52 = vector.broadcast %cst_32 : f32 to vector<32x128xf32>
    %53 = arith.maximumf %51, %52 : vector<32x128xf32>
    %54 = vector.shape_cast %53 : vector<32x128xf32> to vector<2x16x128xf32>
    %cst_33 = arith.constant 0.000000e+00 : f32
    %55 = vector.broadcast %cst_33 : f32 to vector<16x2xf32>
    %56 = vector.extract_strided_slice %54 {offsets = [0, 0, 0], sizes = [1, 16, 128], strides = [1, 1, 1]} : vector<2x16x128xf32> to vector<1x16x128xf32>
    %57 = vector.shape_cast %56 : vector<1x16x128xf32> to vector<16x128xf32>
    %c0_34 = arith.constant 0 : index
    %c0_35 = arith.constant 0 : index
    %c0_36 = arith.constant 0 : index
    %58 = vector.load %arg12[%c0_34, %c0_35, %c0_36] : memref<2x128x2xf32, #tpu.memory_space<vmem>>, vector<1x128x2xf32>
    %59 = vector.shape_cast %58 : vector<1x128x2xf32> to vector<128x2xf32>
    %cst_37 = arith.constant dense<0.000000e+00> : vector<16x2xf32>
    %60 = tpu.matmul %57, %59, %cst_37 {dimension_numbers = #tpu.dot_dimension_numbers<[1], [0], [0], [1], [0, 0, 1, 1], [], []>} : vector<16x128xf32>, vector<128x2xf32>, vector<16x2xf32> -> vector<16x2xf32>
    %61 = arith.addf %55, %60 : vector<16x2xf32>
    %62 = vector.extract_strided_slice %54 {offsets = [1, 0, 0], sizes = [1, 16, 128], strides = [1, 1, 1]} : vector<2x16x128xf32> to vector<1x16x128xf32>
    %63 = vector.shape_cast %62 : vector<1x16x128xf32> to vector<16x128xf32>
    %c1 = arith.constant 1 : index
    %c0_38 = arith.constant 0 : index
    %c0_39 = arith.constant 0 : index
    %64 = vector.load %arg12[%c1, %c0_38, %c0_39] : memref<2x128x2xf32, #tpu.memory_space<vmem>>, vector<1x128x2xf32>
    %65 = vector.shape_cast %64 : vector<1x128x2xf32> to vector<128x2xf32>
    %cst_40 = arith.constant dense<0.000000e+00> : vector<16x2xf32>
    %66 = tpu.matmul %63, %65, %cst_40 {dimension_numbers = #tpu.dot_dimension_numbers<[1], [0], [0], [1], [0, 0, 1, 1], [], []>} : vector<16x128xf32>, vector<128x2xf32>, vector<16x2xf32> -> vector<16x2xf32>
    %67 = arith.addf %61, %66 : vector<16x2xf32>
    %cst_41 = arith.constant dense<0xFF800000> : vector<16xf32>
    %68 = vector.multi_reduction <maximumf>, %67, %cst_41 [1] : vector<16x2xf32> to vector<16xf32>
    %69 = vector.shape_cast %68 : vector<16xf32> to vector<16x1xf32>
    %70 = vector.broadcast %69 : vector<16x1xf32> to vector<16x2xf32>
    %71 = arith.subf %67, %70 : vector<16x2xf32>
    %72 = math.exp %71 : vector<16x2xf32>
    %cst_42 = arith.constant dense<0.000000e+00> : vector<16xf32>
    %73 = vector.multi_reduction <add>, %72, %cst_42 [1] : vector<16x2xf32> to vector<16xf32>
    %74 = vector.shape_cast %73 : vector<16xf32> to vector<16x1xf32>
    %75 = vector.broadcast %74 : vector<16x1xf32> to vector<16x2xf32>
    %76 = arith.divf %72, %75 : vector<16x2xf32>
    %77 = tpu.iota {dimensions = array<i32: 1>} : vector<1x2xi32>
    %cst_43 = arith.constant 0.000000e+00 : f32
    %78 = vector.broadcast %cst_43 : f32 to vector<16x128xf32>
    %c0_i32 = arith.constant 0 : i32
    %79 = vector.broadcast %c0_i32 : i32 to vector<1x2xi32>
    %80 = arith.cmpi eq, %77, %79 : vector<1x2xi32>
    %cst_44 = arith.constant 0.000000e+00 : f32
    %81 = vector.shape_cast %80 : vector<1x2xi1> to vector<1x2xi1>
    %82 = vector.broadcast %81 : vector<1x2xi1> to vector<16x2xi1>
    %83 = vector.broadcast %cst_44 : f32 to vector<16x2xf32>
    %84 = arith.select %82, %76, %83 : vector<16x2xi1>, vector<16x2xf32>
    %cst_45 = arith.constant dense<0.000000e+00> : vector<16xf32>
    %85 = vector.multi_reduction <add>, %84, %cst_45 [1] : vector<16x2xf32> to vector<16xf32>
    %86 = vector.shape_cast %85 : vector<16xf32> to vector<16x1xf32>
    %87 = vector.extract_strided_slice %54 {offsets = [0, 0, 0], sizes = [1, 16, 128], strides = [1, 1, 1]} : vector<2x16x128xf32> to vector<1x16x128xf32>
    %88 = vector.shape_cast %87 : vector<1x16x128xf32> to vector<16x128xf32>
    %89 = vector.broadcast %86 : vector<16x1xf32> to vector<16x128xf32>
    %90 = arith.mulf %89, %88 : vector<16x128xf32>
    %91 = arith.addf %78, %90 : vector<16x128xf32>
    %c1_i32 = arith.constant 1 : i32
    %92 = vector.broadcast %c1_i32 : i32 to vector<1x2xi32>
    %93 = arith.cmpi eq, %77, %92 : vector<1x2xi32>
    %cst_46 = arith.constant 0.000000e+00 : f32
    %94 = vector.shape_cast %93 : vector<1x2xi1> to vector<1x2xi1>
    %95 = vector.broadcast %94 : vector<1x2xi1> to vector<16x2xi1>
    %96 = vector.broadcast %cst_46 : f32 to vector<16x2xf32>
    %97 = arith.select %95, %76, %96 : vector<16x2xi1>, vector<16x2xf32>
    %cst_47 = arith.constant dense<0.000000e+00> : vector<16xf32>
    %98 = vector.multi_reduction <add>, %97, %cst_47 [1] : vector<16x2xf32> to vector<16xf32>
    %99 = vector.shape_cast %98 : vector<16xf32> to vector<16x1xf32>
    %100 = vector.extract_strided_slice %54 {offsets = [1, 0, 0], sizes = [1, 16, 128], strides = [1, 1, 1]} : vector<2x16x128xf32> to vector<1x16x128xf32>
    %101 = vector.shape_cast %100 : vector<1x16x128xf32> to vector<16x128xf32>
    %102 = vector.broadcast %99 : vector<16x1xf32> to vector<16x128xf32>
    %103 = arith.mulf %102, %101 : vector<16x128xf32>
    %104 = arith.addf %91, %103 : vector<16x128xf32>
    %c0_48 = arith.constant 0 : index
    %c0_49 = arith.constant 0 : index
    %105 = vector.load %arg13[%c0_48, %c0_49] : memref<128x128xf32, #tpu.memory_space<vmem>>, vector<128x128xf32>
    %cst_50 = arith.constant dense<0.000000e+00> : vector<16x128xf32>
    %106 = tpu.matmul %104, %105, %cst_50 {dimension_numbers = #tpu.dot_dimension_numbers<[1], [0], [0], [1], [0, 0, 1, 1], [], []>} : vector<16x128xf32>, vector<128x128xf32>, vector<16x128xf32> -> vector<16x128xf32>
    %c0_51 = arith.constant 0 : index
    %c0_52 = arith.constant 0 : index
    %107 = vector.load %arg14[%c0_51, %c0_52] : memref<1x128xf32, #tpu.memory_space<vmem>>, vector<1x128xf32>
    %108 = vector.broadcast %107 : vector<1x128xf32> to vector<16x128xf32>
    %109 = arith.addf %106, %108 : vector<16x128xf32>
    %cst_53 = arith.constant 0.000000e+00 : f32
    %110 = vector.broadcast %cst_53 : f32 to vector<16x128xf32>
    %111 = arith.maximumf %109, %110 : vector<16x128xf32>
    %c0_54 = arith.constant 0 : index
    %c0_55 = arith.constant 0 : index
    %112 = vector.load %arg15[%c0_54, %c0_55] : memref<128x128xf32, #tpu.memory_space<vmem>>, vector<128x128xf32>
    %cst_56 = arith.constant dense<0.000000e+00> : vector<16x128xf32>
    %113 = tpu.matmul %0, %112, %cst_56 {dimension_numbers = #tpu.dot_dimension_numbers<[1], [0], [0], [1], [0, 0, 1, 1], [], []>} : vector<16x128xf32>, vector<128x128xf32>, vector<16x128xf32> -> vector<16x128xf32>
    %c0_57 = arith.constant 0 : index
    %c0_58 = arith.constant 0 : index
    %114 = vector.load %arg16[%c0_57, %c0_58] : memref<128x128xf32, #tpu.memory_space<vmem>>, vector<128x128xf32>
    %cst_59 = arith.constant dense<0.000000e+00> : vector<16x128xf32>
    %115 = tpu.matmul %111, %114, %cst_59 {dimension_numbers = #tpu.dot_dimension_numbers<[1], [0], [0], [1], [0, 0, 1, 1], [], []>} : vector<16x128xf32>, vector<128x128xf32>, vector<16x128xf32> -> vector<16x128xf32>
    %116 = arith.addf %113, %115 : vector<16x128xf32>
    %c0_60 = arith.constant 0 : index
    %c0_61 = arith.constant 0 : index
    %117 = vector.load %arg17[%c0_60, %c0_61] : memref<1x128xf32, #tpu.memory_space<vmem>>, vector<1x128xf32>
    %118 = vector.broadcast %117 : vector<1x128xf32> to vector<16x128xf32>
    %119 = arith.addf %116, %118 : vector<16x128xf32>
    %cst_62 = arith.constant 0.000000e+00 : f32
    %120 = vector.broadcast %cst_62 : f32 to vector<16x128xf32>
    %121 = arith.maximumf %119, %120 : vector<16x128xf32>
    %c0_63 = arith.constant 0 : index
    %c0_64 = arith.constant 0 : index
    %122 = vector.load %arg18[%c0_63, %c0_64] : memref<16x128xf32, #tpu.memory_space<vmem>>, vector<16x128xf32>
    tpu.vector_store %arg18[%c0_63, %c0_64], %121 {strides = array<i32>} : memref<16x128xf32, #tpu.memory_space<vmem>>, vector<16x128xf32>,
    %c0_65 = arith.constant 0 : index
    %c0_66 = arith.constant 0 : index
    %123 = vector.load %arg19[%c0_65, %c0_66] : memref<16x2xf32, #tpu.memory_space<vmem>>, vector<16x2xf32>
    tpu.vector_store %arg19[%c0_65, %c0_66], %76 {strides = array<i32>} : memref<16x2xf32, #tpu.memory_space<vmem>>, vector<16x2xf32>,
    return
  }
  func.func @transform_0(%arg0: i32) -> (i32, i32) {
    %c0_i32 = arith.constant 0 : i32
    %c0_i32_0 = arith.constant 0 : i32
    return %arg0, %c0_i32 : i32, i32
  }
  func.func @transform_1(%arg0: i32) -> (i32, i32, i32, i32) {
    %c0_i32 = arith.constant 0 : i32
    %c0_i32_0 = arith.constant 0 : i32
    %c0_i32_1 = arith.constant 0 : i32
    %c0_i32_2 = arith.constant 0 : i32
    return %c0_i32, %arg0, %c0_i32_0, %c0_i32_1 : i32, i32, i32, i32
  }
  func.func @transform_2(%arg0: i32) -> (i32, i32) {
    %c0_i32 = arith.constant 0 : i32
    %c0_i32_0 = arith.constant 0 : i32
    %c0_i32_1 = arith.constant 0 : i32
    return %c0_i32, %c0_i32_0 : i32, i32
  }
  func.func @transform_3(%arg0: i32) -> (i32, i32) {
    %c0_i32 = arith.constant 0 : i32
    %c0_i32_0 = arith.constant 0 : i32
    %c0_i32_1 = arith.constant 0 : i32
    return %c0_i32, %c0_i32_0 : i32, i32
  }
  func.func @transform_4(%arg0: i32) -> (i32, i32) {
    %c0_i32 = arith.constant 0 : i32
    %c0_i32_0 = arith.constant 0 : i32
    %c0_i32_1 = arith.constant 0 : i32
    return %c0_i32, %c0_i32_0 : i32, i32
  }
  func.func @transform_5(%arg0: i32) -> (i32, i32) {
    %c0_i32 = arith.constant 0 : i32
    %c0_i32_0 = arith.constant 0 : i32
    %c0_i32_1 = arith.constant 0 : i32
    return %c0_i32, %c0_i32_0 : i32, i32
  }
  func.func @transform_6(%arg0: i32) -> (i32, i32) {
    %c0_i32 = arith.constant 0 : i32
    %c0_i32_0 = arith.constant 0 : i32
    %c0_i32_1 = arith.constant 0 : i32
    return %c0_i32, %c0_i32_0 : i32, i32
  }
  func.func @transform_7(%arg0: i32) -> (i32, i32) {
    %c0_i32 = arith.constant 0 : i32
    %c0_i32_0 = arith.constant 0 : i32
    %c0_i32_1 = arith.constant 0 : i32
    return %c0_i32, %c0_i32_0 : i32, i32
  }
  func.func @transform_8(%arg0: i32) -> (i32, i32) {
    %c0_i32 = arith.constant 0 : i32
    %c0_i32_0 = arith.constant 0 : i32
    %c0_i32_1 = arith.constant 0 : i32
    return %c0_i32, %c0_i32_0 : i32, i32
  }
  func.func @transform_9(%arg0: i32) -> (i32, i32) {
    %c0_i32 = arith.constant 0 : i32
    %c0_i32_0 = arith.constant 0 : i32
    %c0_i32_1 = arith.constant 0 : i32
    return %c0_i32, %c0_i32_0 : i32, i32
  }
  func.func @transform_10(%arg0: i32) -> (i32, i32) {
    %c0_i32 = arith.constant 0 : i32
    %c0_i32_0 = arith.constant 0 : i32
    %c0_i32_1 = arith.constant 0 : i32
    return %c0_i32, %c0_i32_0 : i32, i32
  }
  func.func @transform_11(%arg0: i32) -> (i32, i32, i32) {
    %c0_i32 = arith.constant 0 : i32
    %c0_i32_0 = arith.constant 0 : i32
    %c0_i32_1 = arith.constant 0 : i32
    %c0_i32_2 = arith.constant 0 : i32
    return %c0_i32, %c0_i32_0, %c0_i32_1 : i32, i32, i32
  }
  func.func @transform_12(%arg0: i32) -> (i32, i32) {
    %c0_i32 = arith.constant 0 : i32
    %c0_i32_0 = arith.constant 0 : i32
    %c0_i32_1 = arith.constant 0 : i32
    return %c0_i32, %c0_i32_0 : i32, i32
  }
  func.func @transform_13(%arg0: i32) -> (i32, i32) {
    %c0_i32 = arith.constant 0 : i32
    %c0_i32_0 = arith.constant 0 : i32
    %c0_i32_1 = arith.constant 0 : i32
    return %c0_i32, %c0_i32_0 : i32, i32
  }
  func.func @transform_14(%arg0: i32) -> (i32, i32) {
    %c0_i32 = arith.constant 0 : i32
    %c0_i32_0 = arith.constant 0 : i32
    %c0_i32_1 = arith.constant 0 : i32
    return %c0_i32, %c0_i32_0 : i32, i32
  }
  func.func @transform_15(%arg0: i32) -> (i32, i32) {
    %c0_i32 = arith.constant 0 : i32
    %c0_i32_0 = arith.constant 0 : i32
    %c0_i32_1 = arith.constant 0 : i32
    return %c0_i32, %c0_i32_0 : i32, i32
  }
  func.func @transform_16(%arg0: i32) -> (i32, i32) {
    %c0_i32 = arith.constant 0 : i32
    %c0_i32_0 = arith.constant 0 : i32
    %c0_i32_1 = arith.constant 0 : i32
    return %c0_i32, %c0_i32_0 : i32, i32
  }
  func.func @transform_17(%arg0: i32) -> (i32, i32) {
    %c0_i32 = arith.constant 0 : i32
    %c0_i32_0 = arith.constant 0 : i32
    return %arg0, %c0_i32 : i32, i32
  }
  func.func @transform_18(%arg0: i32) -> (i32, i32) {
    %c0_i32 = arith.constant 0 : i32
    %c0_i32_0 = arith.constant 0 : i32
    return %arg0, %c0_i32 : i32, i32
  }
}

</mosaic_0001>

<llo_original>
// kernel: tpu_custom_call.1
$region0: #{tpu_custom_call.1}
  #allocation0 [shape = 'u32[]', space=smem, size = 0x4, offset = 0x4, fixed_abs, tag = 'smem constant byte address 0x4 - core index']
  #allocation1 [shape = 'u32[144,128]{1,0:T(1,128)}', space=vmem, size = 0x12000, scoped, tag = 'internal scratch']
  #allocation2 [shape = 'f32[1,1]{1,0:T(1,128)S(1)}', space=vmem, size = 0x200, scoped, tag = 'scoped memory for tpu_custom_call.1']
  #allocation16 [shape = 's32[]', space=sflag, size = 0x4, offset = 0, fixed_abs, tag = 'sflag constant byte address 0x0 - dummy sync flag']
  %s0 = inlined_call_operand.hbm [shape: f32[32,128], index: 0, kind: input, shape index: {}]
  %s1 = inlined_call_operand.hbm [shape: f32[2,32,8,128], index: 1, kind: input, shape index: {}]
  %s2 = inlined_call_operand.vmem [shape: f32[128,128], index: 2, kind: input, shape index: {}]
  %s3 = inlined_call_operand.vmem [shape: f32[128,128], index: 3, kind: input, shape index: {}]
  %s4 = inlined_call_operand.vmem [shape: f32[1,128], index: 4, kind: input, shape index: {}]
  %s5 = inlined_call_operand.hbm [shape: f32[128,128], index: 5, kind: input, shape index: {}]
  %s6 = inlined_call_operand.vmem [shape: f32[1,128], index: 6, kind: input, shape index: {}]
  %s7 = inlined_call_operand.vmem [shape: f32[1,128], index: 7, kind: input, shape index: {}]
  %s8 = inlined_call_operand.<no memory space> [shape: f32[1,1], index: 8, kind: input, shape index: {}]
  %s9 = inlined_call_operand.hbm [shape: f32[128,128], index: 9, kind: input, shape index: {}]
  %s10 = inlined_call_operand.vmem [shape: f32[1,128], index: 10, kind: input, shape index: {}]
  %s11 = inlined_call_operand.vmem [shape: f32[2,128,2], index: 11, kind: input, shape index: {}]
  %s12 = inlined_call_operand.hbm [shape: f32[128,128], index: 12, kind: input, shape index: {}]
  %s13 = inlined_call_operand.vmem [shape: f32[1,128], index: 13, kind: input, shape index: {}]
  %s14 = inlined_call_operand.hbm [shape: f32[128,128], index: 14, kind: input, shape index: {}]
  %s15 = inlined_call_operand.hbm [shape: f32[128,128], index: 15, kind: input, shape index: {}]
  %s16 = inlined_call_operand.vmem [shape: f32[1,128], index: 16, kind: input, shape index: {}]
  %s17 = inlined_call_operand.hbm [shape: f32[32,128], index: 17, kind: output, shape index: {0}]
  %s18 = inlined_call_operand.vmem [shape: f32[32,2], index: 18, kind: output, shape index: {1}]
  %19 = xla_tuple %s17, %s18
  %s20 = sld [smem:[#allocation0]]
  $region137: #{tpu_custom_call.1} parent=0
    _
  %s22 = ssub.s32 1, %s20
  %s23 = scalar_select 0, %s22, %s20
  %v24 = vstv %s8
  %25 = vst [vmem:[#allocation2] sm:$0x1] %v24
  $region1: #{tpu_custom_call.1} parent=0
    #allocation3 [shape = 'u8[16384]{0}', space=vmem, size = 0x4000, scoped, tag = 'input window, operand 0']
    #allocation4 [shape = 's32[2]{0}', space=sflag, size = 0x8, scoped, tag = 'scoped memory for tpu_custom_call.1']
    #allocation5 [shape = 's32[2]{0}', space=sflag, size = 0x8, scoped, tag = 'scoped memory for tpu_custom_call.1']
    #allocation6 [shape = 'u8[262144]{0}', space=vmem, size = 0x40000, scoped, tag = 'input window, operand 1']
    #allocation7 [shape = 's32[2]{0}', space=sflag, size = 0x8, scoped, tag = 'scoped memory for tpu_custom_call.1']
    #allocation8 [shape = 'u8[65536]{0}', space=vmem, size = 0x10000, scoped, tag = 'input window, operand 5, single buffered']
    #allocation9 [shape = 'u8[65536]{0}', space=vmem, size = 0x10000, scoped, tag = 'input window, operand 9, single buffered']
    #allocation10 [shape = 's32[1]{0}', space=sflag, size = 0x4, scoped, tag = 'scoped memory for tpu_custom_call.1']
    #allocation11 [shape = 'u8[65536]{0}', space=vmem, size = 0x10000, scoped, tag = 'input window, operand 12, single buffered']
    #allocation12 [shape = 'u8[65536]{0}', space=vmem, size = 0x10000, scoped, tag = 'input window, operand 14, single buffered']
    #allocation13 [shape = 's32[1]{0}', space=sflag, size = 0x4, scoped, tag = 'scoped memory for tpu_custom_call.1']
    #allocation14 [shape = 'u8[65536]{0}', space=vmem, size = 0x10000, scoped, tag = 'input window, operand 15, single buffered']
    #allocation15 [shape = 'u8[16384]{0}', space=vmem, size = 0x4000, scoped, tag = 'output window, operand 0']
    %26 = vsyncpa [#allocation4], 0
    %s27 = scalar_lea.sflag [#allocation4], 1
    %28 = vsyncpa %s27, 0
    %29 = vsyncpa [#allocation7], 0
    %s30 = scalar_lea.sflag [#allocation7], 1
    %31 = vsyncpa %s30, 0
    %32 = vsyncpa [#allocation10], 0
    %33 = vsyncpa [#allocation13], 0
    %34 = vsyncpa [#allocation5], 0
    %s35 = scalar_lea.sflag [#allocation5], 1
    %36 = vsyncpa %s35, 0
    loop: start=0, step=1, limit=4
    $region2: #{tpu_custom_call.1} parent=1 // loop_pre_header
      _
    $region3: #{tpu_custom_call.1} parent=1 // loop_header
      %s38 = sphi 0, %s42
      %p39 = scmp.ge.s32.totalorder %s38, 4
      %s48 = sphi 0, %s50
      %s51 = sphi 0, %s48
      %s52 = sphi 0, %s51
      %s68 = sphi 0, %s52
      %s74 = sphi 0, %s76
      %s77 = sphi 0, %s74
      %s78 = sphi 0, %s77
      %s94 = sphi 0, %s78
      %s98 = sphi 0, %s98
      %s100 = sphi 0, %s98
      %s101 = sphi 0, %s100
      %s115 = sphi 0, %s101
      %s119 = sphi 0, %s119
      %s121 = sphi 0, %s119
      %s122 = sphi 0, %s121
      %s136 = sphi 0, %s122
      %s140 = sphi 0, %s140
      %s142 = sphi 0, %s140
      %s143 = sphi 0, %s142
      %s157 = sphi 0, %s143
      %s161 = sphi 0, %s161
      %s163 = sphi 0, %s161
      %s164 = sphi 0, %s163
      %s178 = sphi 0, %s164
      %s182 = sphi 0, %s182
      %s184 = sphi 0, %s182
      %s185 = sphi 0, %s184
      %s199 = sphi 0, %s185
      %s203 = sphi 0, %s203
      %s205 = sphi 0, %s203
      %s206 = sphi 0, %s205
      %s220 = sphi 0, %s206
      %s224 = sphi 0, %s224
      %s226 = sphi 0, %s224
      %s227 = sphi 0, %s226
      %s241 = sphi 0, %s227
      %s245 = sphi 0, %s245
      %s247 = sphi 0, %s245
      %s248 = sphi 0, %s247
      %s262 = sphi 0, %s248
      %s266 = sphi 0, %s266
      %s268 = sphi 0, %s266
      %s269 = sphi 0, %s268
      %s283 = sphi 0, %s269
      %s287 = sphi 0, %s287
      %s289 = sphi 0, %s287
      %s290 = sphi 0, %s289
      %s304 = sphi 0, %s290
      %s308 = sphi 0, %s308
      %s310 = sphi 0, %s308
      %s311 = sphi 0, %s310
      %s325 = sphi 0, %s311
      %s329 = sphi 0, %s329
      %s331 = sphi 0, %s329
      %s332 = sphi 0, %s331
      %s346 = sphi 0, %s332
      %s350 = sphi 0, %s350
      %s352 = sphi 0, %s350
      %s353 = sphi 0, %s352
      %s367 = sphi 0, %s353
      %s371 = sphi 0, %s371
      %s373 = sphi 0, %s371
      %s374 = sphi 0, %s373
      %s388 = sphi 0, %s374
      %s392 = sphi 0, %s392
      %s394 = sphi 0, %s392
      %s395 = sphi 0, %s394
      %s409 = sphi 0, %s395
      %s415 = sphi 0, %s417
      %s418 = sphi 0, %s415
      %s419 = sphi 0, %s418
      %s435 = sphi 0, %s419
      %s441 = sphi 0, %s443
      %s444 = sphi 0, %s441
      %s445 = sphi 0, %s444
      %s461 = sphi 0, %s445
    $region4: #{tpu_custom_call.1} parent=1 // loop_header_branch
      %41 = sbr.rel (%p39) target = $region8
    $region5: #{tpu_custom_call.1} parent=1 // loop_body
      %s43 = ssub.s32 %s38, 1
      %s44 = ssub.s32 %s38, 2
      %s45 = sadd.s32 %s38, 1
      %s46 = ssub.s32 %s38, %s45
      %p47 = scmp.eq.s32.totalorder %s46, 0
      %s49 = sadd.s32 %s48, 1
      %s50 = scalar_select %p47, %s48, %s49
      %p53 = pneg %p47
      %p54 = scmp.eq.s32.totalorder %s38, 1
      %p55 = por %p53, %p54
      %p56 = scmp.ne.s32.totalorder %s48, %s51
      %p57 = scmp.eq.s32.totalorder %s38, 0
      %p58 = por %p56, %p57
      %p59 = scmp.ne.s32.totalorder %s48, %s51
      %p60 = scmp.eq.s32.totalorder %s43, 1
      %p61 = por %p59, %p60
      %p62 = scmp.ne.s32.totalorder %s51, %s52
      %p63 = scmp.eq.s32.totalorder %s43, 0
      %p64 = por %p62, %p63
      %p65 = scmp.ne.s32.totalorder %s51, %s52
      %p66 = scmp.eq.s32.totalorder %s44, 1
      %p67 = por %p65, %p66
      %p69 = scmp.ne.s32.totalorder %s52, %s68
      %p70 = scmp.eq.s32.totalorder %s44, 0
      %p71 = por %p69, %p70
      %s72 = ssub.s32 %s38, %s45
      %p73 = scmp.eq.s32.totalorder %s72, 0
      %s75 = sadd.s32 %s74, 1
      %s76 = scalar_select %p73, %s74, %s75
      %p79 = pneg %p73
      %p80 = scmp.eq.s32.totalorder %s38, 1
      %p81 = por %p79, %p80
      %p82 = scmp.ne.s32.totalorder %s74, %s77
      %p83 = scmp.eq.s32.totalorder %s38, 0
      %p84 = por %p82, %p83
      %p85 = scmp.ne.s32.totalorder %s74, %s77
      %p86 = scmp.eq.s32.totalorder %s43, 1
      %p87 = por %p85, %p86
      %p88 = scmp.ne.s32.totalorder %s77, %s78
      %p89 = scmp.eq.s32.totalorder %s43, 0
      %p90 = por %p88, %p89
      %p91 = scmp.ne.s32.totalorder %s77, %s78
      %p92 = scmp.eq.s32.totalorder %s44, 1
      %p93 = por %p91, %p92
      %p95 = scmp.ne.s32.totalorder %s78, %s94
      %p96 = scmp.eq.s32.totalorder %s44, 0
      %p97 = por %p95, %p96
      %s99 = sadd.s32 %s98, 1
      %p102 = scmp.eq.s32.totalorder %s38, 1
      %p103 = scmp.ne.s32.totalorder %s98, %s100
      %p104 = scmp.eq.s32.totalorder %s38, 0
      %p105 = por %p103, %p104
      %p106 = scmp.ne.s32.totalorder %s98, %s100
      %p107 = scmp.eq.s32.totalorder %s43, 1
      %p108 = por %p106, %p107
      %p109 = scmp.ne.s32.totalorder %s100, %s101
      %p110 = scmp.eq.s32.totalorder %s43, 0
      %p111 = por %p109, %p110
      %p112 = scmp.ne.s32.totalorder %s100, %s101
      %p113 = scmp.eq.s32.totalorder %s44, 1
      %p114 = por %p112, %p113
      %p116 = scmp.ne.s32.totalorder %s101, %s115
      %p117 = scmp.eq.s32.totalorder %s44, 0
      %p118 = por %p116, %p117
      %s120 = sadd.s32 %s119, 1
      %p123 = scmp.eq.s32.totalorder %s38, 1
      %p124 = scmp.ne.s32.totalorder %s119, %s121
      %p125 = scmp.eq.s32.totalorder %s38, 0
      %p126 = por %p124, %p125
      %p127 = scmp.ne.s32.totalorder %s119, %s121
      %p128 = scmp.eq.s32.totalorder %s43, 1
      %p129 = por %p127, %p128
      %p130 = scmp.ne.s32.totalorder %s121, %s122
      %p131 = scmp.eq.s32.totalorder %s43, 0
      %p132 = por %p130, %p131
      %p133 = scmp.ne.s32.totalorder %s121, %s122
      %p134 = scmp.eq.s32.totalorder %s44, 1
      %p135 = por %p133, %p134
      %p137 = scmp.ne.s32.totalorder %s122, %s136
      %p138 = scmp.eq.s32.totalorder %s44, 0
      %p139 = por %p137, %p138
      %s141 = sadd.s32 %s140, 1
      %p144 = scmp.eq.s32.totalorder %s38, 1
      %p145 = scmp.ne.s32.totalorder %s140, %s142
      %p146 = scmp.eq.s32.totalorder %s38, 0
      %p147 = por %p145, %p146
      %p148 = scmp.ne.s32.totalorder %s140, %s142
      %p149 = scmp.eq.s32.totalorder %s43, 1
      %p150 = por %p148, %p149
      %p151 = scmp.ne.s32.totalorder %s142, %s143
      %p152 = scmp.eq.s32.totalorder %s43, 0
      %p153 = por %p151, %p152
      %p154 = scmp.ne.s32.totalorder %s142, %s143
      %p155 = scmp.eq.s32.totalorder %s44, 1
      %p156 = por %p154, %p155
      %p158 = scmp.ne.s32.totalorder %s143, %s157
      %p159 = scmp.eq.s32.totalorder %s44, 0
      %p160 = por %p158, %p159
      %s162 = sadd.s32 %s161, 1
      %p165 = scmp.eq.s32.totalorder %s38, 1
      %p166 = scmp.ne.s32.totalorder %s161, %s163
      %p167 = scmp.eq.s32.totalorder %s38, 0
      %p168 = por %p166, %p167
      %p169 = scmp.ne.s32.totalorder %s161, %s163
      %p170 = scmp.eq.s32.totalorder %s43, 1
      %p171 = por %p169, %p170
      %p172 = scmp.ne.s32.totalorder %s163, %s164
      %p173 = scmp.eq.s32.totalorder %s43, 0
      %p174 = por %p172, %p173
      %p175 = scmp.ne.s32.totalorder %s163, %s164
      %p176 = scmp.eq.s32.totalorder %s44, 1
      %p177 = por %p175, %p176
      %p179 = scmp.ne.s32.totalorder %s164, %s178
      %p180 = scmp.eq.s32.totalorder %s44, 0
      %p181 = por %p179, %p180
      %s183 = sadd.s32 %s182, 1
      %p186 = scmp.eq.s32.totalorder %s38, 1
      %p187 = scmp.ne.s32.totalorder %s182, %s184
      %p188 = scmp.eq.s32.totalorder %s38, 0
      %p189 = por %p187, %p188
      %p190 = scmp.ne.s32.totalorder %s182, %s184
      %p191 = scmp.eq.s32.totalorder %s43, 1
      %p192 = por %p190, %p191
      %p193 = scmp.ne.s32.totalorder %s184, %s185
      %p194 = scmp.eq.s32.totalorder %s43, 0
      %p195 = por %p193, %p194
      %p196 = scmp.ne.s32.totalorder %s184, %s185
      %p197 = scmp.eq.s32.totalorder %s44, 1
      %p198 = por %p196, %p197
      %p200 = scmp.ne.s32.totalorder %s185, %s199
      %p201 = scmp.eq.s32.totalorder %s44, 0
      %p202 = por %p200, %p201
      %s204 = sadd.s32 %s203, 1
      %p207 = scmp.eq.s32.totalorder %s38, 1
      %p208 = scmp.ne.s32.totalorder %s203, %s205
      %p209 = scmp.eq.s32.totalorder %s38, 0
      %p210 = por %p208, %p209
      %p211 = scmp.ne.s32.totalorder %s203, %s205
      %p212 = scmp.eq.s32.totalorder %s43, 1
      %p213 = por %p211, %p212
      %p214 = scmp.ne.s32.totalorder %s205, %s206
      %p215 = scmp.eq.s32.totalorder %s43, 0
      %p216 = por %p214, %p215
      %p217 = scmp.ne.s32.totalorder %s205, %s206
      %p218 = scmp.eq.s32.totalorder %s44, 1
      %p219 = por %p217, %p218
      %p221 = scmp.ne.s32.totalorder %s206, %s220
      %p222 = scmp.eq.s32.totalorder %s44, 0
      %p223 = por %p221, %p222
      %s225 = sadd.s32 %s224, 1
      %p228 = scmp.eq.s32.totalorder %s38, 1
      %p229 = scmp.ne.s32.totalorder %s224, %s226
      %p230 = scmp.eq.s32.totalorder %s38, 0
      %p231 = por %p229, %p230
      %p232 = scmp.ne.s32.totalorder %s224, %s226
      %p233 = scmp.eq.s32.totalorder %s43, 1
      %p234 = por %p232, %p233
      %p235 = scmp.ne.s32.totalorder %s226, %s227
      %p236 = scmp.eq.s32.totalorder %s43, 0
      %p237 = por %p235, %p236
      %p238 = scmp.ne.s32.totalorder %s226, %s227
      %p239 = scmp.eq.s32.totalorder %s44, 1
      %p240 = por %p238, %p239
      %p242 = scmp.ne.s32.totalorder %s227, %s241
      %p243 = scmp.eq.s32.totalorder %s44, 0
      %p244 = por %p242, %p243
      %s246 = sadd.s32 %s245, 1
      %p249 = scmp.eq.s32.totalorder %s38, 1
      %p250 = scmp.ne.s32.totalorder %s245, %s247
      %p251 = scmp.eq.s32.totalorder %s38, 0
      %p252 = por %p250, %p251
      %p253 = scmp.ne.s32.totalorder %s245, %s247
      %p254 = scmp.eq.s32.totalorder %s43, 1
      %p255 = por %p253, %p254
      %p256 = scmp.ne.s32.totalorder %s247, %s248
      %p257 = scmp.eq.s32.totalorder %s43, 0
      %p258 = por %p256, %p257
      %p259 = scmp.ne.s32.totalorder %s247, %s248
      %p260 = scmp.eq.s32.totalorder %s44, 1
      %p261 = por %p259, %p260
      %p263 = scmp.ne.s32.totalorder %s248, %s262
      %p264 = scmp.eq.s32.totalorder %s44, 0
      %p265 = por %p263, %p264
      %s267 = sadd.s32 %s266, 1
      %p270 = scmp.eq.s32.totalorder %s38, 1
      %p271 = scmp.ne.s32.totalorder %s266, %s268
      %p272 = scmp.eq.s32.totalorder %s38, 0
      %p273 = por %p271, %p272
      %p274 = scmp.ne.s32.totalorder %s266, %s268
      %p275 = scmp.eq.s32.totalorder %s43, 1
      %p276 = por %p274, %p275
      %p277 = scmp.ne.s32.totalorder %s268, %s269
      %p278 = scmp.eq.s32.totalorder %s43, 0
      %p279 = por %p277, %p278
      %p280 = scmp.ne.s32.totalorder %s268, %s269
      %p281 = scmp.eq.s32.totalorder %s44, 1
      %p282 = por %p280, %p281
      %p284 = scmp.ne.s32.totalorder %s269, %s283
      %p285 = scmp.eq.s32.totalorder %s44, 0
      %p286 = por %p284, %p285
      %s288 = sadd.s32 %s287, 1
      %p291 = scmp.eq.s32.totalorder %s38, 1
      %p292 = scmp.ne.s32.totalorder %s287, %s289
      %p293 = scmp.eq.s32.totalorder %s38, 0
      %p294 = por %p292, %p293
      %p295 = scmp.ne.s32.totalorder %s287, %s289
      %p296 = scmp.eq.s32.totalorder %s43, 1
      %p297 = por %p295, %p296
      %p298 = scmp.ne.s32.totalorder %s289, %s290
      %p299 = scmp.eq.s32.totalorder %s43, 0
      %p300 = por %p298, %p299
      %p301 = scmp.ne.s32.totalorder %s289, %s290
      %p302 = scmp.eq.s32.totalorder %s44, 1
      %p303 = por %p301, %p302
      %p305 = scmp.ne.s32.totalorder %s290, %s304
      %p306 = scmp.eq.s32.totalorder %s44, 0
      %p307 = por %p305, %p306
      %s309 = sadd.s32 %s308, 1
      %p312 = scmp.eq.s32.totalorder %s38, 1
      %p313 = scmp.ne.s32.totalorder %s308, %s310
      %p314 = scmp.eq.s32.totalorder %s38, 0
      %p315 = por %p313, %p314
      %p316 = scmp.ne.s32.totalorder %s308, %s310
      %p317 = scmp.eq.s32.totalorder %s43, 1
      %p318 = por %p316, %p317
      %p319 = scmp.ne.s32.totalorder %s310, %s311
      %p320 = scmp.eq.s32.totalorder %s43, 0
      %p321 = por %p319, %p320
      %p322 = scmp.ne.s32.totalorder %s310, %s311
      %p323 = scmp.eq.s32.totalorder %s44, 1
      %p324 = por %p322, %p323
      %p326 = scmp.ne.s32.totalorder %s311, %s325
      %p327 = scmp.eq.s32.totalorder %s44, 0
      %p328 = por %p326, %p327
      %s330 = sadd.s32 %s329, 1
      %p333 = scmp.eq.s32.totalorder %s38, 1
      %p334 = scmp.ne.s32.totalorder %s329, %s331
      %p335 = scmp.eq.s32.totalorder %s38, 0
      %p336 = por %p334, %p335
      %p337 = scmp.ne.s32.totalorder %s329, %s331
      %p338 = scmp.eq.s32.totalorder %s43, 1
      %p339 = por %p337, %p338
      %p340 = scmp.ne.s32.totalorder %s331, %s332
      %p341 = scmp.eq.s32.totalorder %s43, 0
      %p342 = por %p340, %p341
      %p343 = scmp.ne.s32.totalorder %s331, %s332
      %p344 = scmp.eq.s32.totalorder %s44, 1
      %p345 = por %p343, %p344
      %p347 = scmp.ne.s32.totalorder %s332, %s346
      %p348 = scmp.eq.s32.totalorder %s44, 0
      %p349 = por %p347, %p348
      %s351 = sadd.s32 %s350, 1
      %p354 = scmp.eq.s32.totalorder %s38, 1
      %p355 = scmp.ne.s32.totalorder %s350, %s352
      %p356 = scmp.eq.s32.totalorder %s38, 0
      %p357 = por %p355, %p356
      %p358 = scmp.ne.s32.totalorder %s350, %s352
      %p359 = scmp.eq.s32.totalorder %s43, 1
      %p360 = por %p358, %p359
      %p361 = scmp.ne.s32.totalorder %s352, %s353
      %p362 = scmp.eq.s32.totalorder %s43, 0
      %p363 = por %p361, %p362
      %p364 = scmp.ne.s32.totalorder %s352, %s353
      %p365 = scmp.eq.s32.totalorder %s44, 1
      %p366 = por %p364, %p365
      %p368 = scmp.ne.s32.totalorder %s353, %s367
      %p369 = scmp.eq.s32.totalorder %s44, 0
      %p370 = por %p368, %p369
      %s372 = sadd.s32 %s371, 1
      %p375 = scmp.eq.s32.totalorder %s38, 1
      %p376 = scmp.ne.s32.totalorder %s371, %s373
      %p377 = scmp.eq.s32.totalorder %s38, 0
      %p378 = por %p376, %p377
      %p379 = scmp.ne.s32.totalorder %s371, %s373
      %p380 = scmp.eq.s32.totalorder %s43, 1
      %p381 = por %p379, %p380
      %p382 = scmp.ne.s32.totalorder %s373, %s374
      %p383 = scmp.eq.s32.totalorder %s43, 0
      %p384 = por %p382, %p383
      %p385 = scmp.ne.s32.totalorder %s373, %s374
      %p386 = scmp.eq.s32.totalorder %s44, 1
      %p387 = por %p385, %p386
      %p389 = scmp.ne.s32.totalorder %s374, %s388
      %p390 = scmp.eq.s32.totalorder %s44, 0
      %p391 = por %p389, %p390
      %s393 = sadd.s32 %s392, 1
      %p396 = scmp.eq.s32.totalorder %s38, 1
      %p397 = scmp.ne.s32.totalorder %s392, %s394
      %p398 = scmp.eq.s32.totalorder %s38, 0
      %p399 = por %p397, %p398
      %p400 = scmp.ne.s32.totalorder %s392, %s394
      %p401 = scmp.eq.s32.totalorder %s43, 1
      %p402 = por %p400, %p401
      %p403 = scmp.ne.s32.totalorder %s394, %s395
      %p404 = scmp.eq.s32.totalorder %s43, 0
      %p405 = por %p403, %p404
      %p406 = scmp.ne.s32.totalorder %s394, %s395
      %p407 = scmp.eq.s32.totalorder %s44, 1
      %p408 = por %p406, %p407
      %p410 = scmp.ne.s32.totalorder %s395, %s409
      %p411 = scmp.eq.s32.totalorder %s44, 0
      %p412 = por %p410, %p411
      %s413 = ssub.s32 %s38, %s45
      %p414 = scmp.eq.s32.totalorder %s413, 0
      %s416 = sadd.s32 %s415, 1
      %s417 = scalar_select %p414, %s415, %s416
      %p420 = pneg %p414
      %p421 = scmp.eq.s32.totalorder %s38, 1
      %p422 = por %p420, %p421
      %p423 = scmp.ne.s32.totalorder %s415, %s418
      %p424 = scmp.eq.s32.totalorder %s38, 0
      %p425 = por %p423, %p424
      %p426 = scmp.ne.s32.totalorder %s415, %s418
      %p427 = scmp.eq.s32.totalorder %s43, 1
      %p428 = por %p426, %p427
      %p429 = scmp.ne.s32.totalorder %s418, %s419
      %p430 = scmp.eq.s32.totalorder %s43, 0
      %p431 = por %p429, %p430
      %p432 = scmp.ne.s32.totalorder %s418, %s419
      %p433 = scmp.eq.s32.totalorder %s44, 1
      %p434 = por %p432, %p433
      %p436 = scmp.ne.s32.totalorder %s419, %s435
      %p437 = scmp.eq.s32.totalorder %s44, 0
      %p438 = por %p436, %p437
      %s439 = ssub.s32 %s38, %s45
      %p440 = scmp.eq.s32.totalorder %s439, 0
      %s442 = sadd.s32 %s441, 1
      %s443 = scalar_select %p440, %s441, %s442
      %p446 = pneg %p440
      %p447 = scmp.eq.s32.totalorder %s38, 1
      %p448 = por %p446, %p447
      %p449 = scmp.ne.s32.totalorder %s441, %s444
      %p450 = scmp.eq.s32.totalorder %s38, 0
      %p451 = por %p449, %p450
      %p452 = scmp.ne.s32.totalorder %s441, %s444
      %p453 = scmp.eq.s32.totalorder %s43, 1
      %p454 = por %p452, %p453
      %p455 = scmp.ne.s32.totalorder %s444, %s445
      %p456 = scmp.eq.s32.totalorder %s43, 0
      %p457 = por %p455, %p456
      %p458 = scmp.ne.s32.totalorder %s444, %s445
      %p459 = scmp.eq.s32.totalorder %s44, 1
      %p460 = por %p458, %p459
      %p462 = scmp.ne.s32.totalorder %s445, %s461
      %p463 = scmp.eq.s32.totalorder %s44, 0
      %p464 = por %p462, %p463
      %p465 = scmp.le.s32.totalorder 1, %s38
      %p466 = scmp.lt.s32.totalorder %s38, 3
      %p467 = pnand %p465, %p466
      %p468 = pneg %p467
      // Predicated region
      $region9: #{tpu_custom_call.1} parent=5 // pred_check
        _
      $region10: #{tpu_custom_call.1} parent=5 // pred_check_branch
        %470 = sbr.rel (%p467) target = $region12
      $region11: #{tpu_custom_call.1} parent=5 // pred_region
        %s471 = ssub.s32 %s38, 1
        // Predicated region
        $region13: #{tpu_custom_call.1} parent=11 // pred_check
          %p472 = pneg %p111
        $region14: #{tpu_custom_call.1} parent=11 // pred_check_branch
          %474 = sbr.rel (%p472) target = $region16
        $region15: #{tpu_custom_call.1} parent=11 // pred_region
          _
        $region16: #{tpu_custom_call.1} parent=11 // pred_fallthru
          _
        // Predicated region
        $region17: #{tpu_custom_call.1} parent=11 // pred_check
          %p475 = pneg %p132
        $region18: #{tpu_custom_call.1} parent=11 // pred_check_branch
          %477 = sbr.rel (%p475) target = $region20
        $region19: #{tpu_custom_call.1} parent=11 // pred_region
          _
        $region20: #{tpu_custom_call.1} parent=11 // pred_fallthru
          _
        // Predicated region
        $region21: #{tpu_custom_call.1} parent=11 // pred_check
          %p478 = pneg %p153
        $region22: #{tpu_custom_call.1} parent=11 // pred_check_branch
          %480 = sbr.rel (%p478) target = $region24
        $region23: #{tpu_custom_call.1} parent=11 // pred_region
          _
        $region24: #{tpu_custom_call.1} parent=11 // pred_fallthru
          _
        // Predicated region
        $region25: #{tpu_custom_call.1} parent=11 // pred_check
          %p481 = pneg %p174
        $region26: #{tpu_custom_call.1} parent=11 // pred_check_branch
          %483 = sbr.rel (%p481) target = $region28
        $region27: #{tpu_custom_call.1} parent=11 // pred_region
          %s485 = ssub.s32 2048, 2048
          %486 = vsyncadd [#allocation7], %s485
          %s487 = sshll.u32 [#allocation8], 4
          %s488 = int_to_ptr.vmem [resolvable:$true] %s487
          %493 = dma.hbm_to_vmem [thread:$0]  %s5, 2048, %s488, [#allocation7], 128, 128, 8
        $region28: #{tpu_custom_call.1} parent=11 // pred_fallthru
          _
        // Predicated region
        $region29: #{tpu_custom_call.1} parent=11 // pred_check
          %p494 = pneg %p195
        $region30: #{tpu_custom_call.1} parent=11 // pred_check_branch
          %496 = sbr.rel (%p494) target = $region32
        $region31: #{tpu_custom_call.1} parent=11 // pred_region
          _
        $region32: #{tpu_custom_call.1} parent=11 // pred_fallthru
          _
        // Predicated region
        $region33: #{tpu_custom_call.1} parent=11 // pred_check
          %p497 = pneg %p216
        $region34: #{tpu_custom_call.1} parent=11 // pred_check_branch
          %499 = sbr.rel (%p497) target = $region36
        $region35: #{tpu_custom_call.1} parent=11 // pred_region
          _
        $region36: #{tpu_custom_call.1} parent=11 // pred_fallthru
          _
        // Predicated region
        $region37: #{tpu_custom_call.1} parent=11 // pred_check
          %p500 = pneg %p237
        $region38: #{tpu_custom_call.1} parent=11 // pred_check_branch
          %502 = sbr.rel (%p500) target = $region40
        $region39: #{tpu_custom_call.1} parent=11 // pred_region
          _
        $region40: #{tpu_custom_call.1} parent=11 // pred_fallthru
          _
        // Predicated region
        $region41: #{tpu_custom_call.1} parent=11 // pred_check
          %p503 = pneg %p258
        $region42: #{tpu_custom_call.1} parent=11 // pred_check_branch
          %505 = sbr.rel (%p503) target = $region44
        $region43: #{tpu_custom_call.1} parent=11 // pred_region
          %s507 = ssub.s32 2048, 2048
          %508 = vsyncadd [#allocation10], %s507
          %s509 = sshll.u32 [#allocation9], 4
          %s510 = int_to_ptr.vmem [resolvable:$true] %s509
          %515 = dma.hbm_to_vmem [thread:$0]  %s9, 2048, %s510, [#allocation10], 128, 128, 8
        $region44: #{tpu_custom_call.1} parent=11 // pred_fallthru
          _
        // Predicated region
        $region45: #{tpu_custom_call.1} parent=11 // pred_check
          %p516 = pneg %p279
        $region46: #{tpu_custom_call.1} parent=11 // pred_check_branch
          %518 = sbr.rel (%p516) target = $region48
        $region47: #{tpu_custom_call.1} parent=11 // pred_region
          _
        $region48: #{tpu_custom_call.1} parent=11 // pred_fallthru
          _
        // Predicated region
        $region49: #{tpu_custom_call.1} parent=11 // pred_check
          %p519 = pneg %p300
        $region50: #{tpu_custom_call.1} parent=11 // pred_check_branch
          %521 = sbr.rel (%p519) target = $region52
        $region51: #{tpu_custom_call.1} parent=11 // pred_region
          _
        $region52: #{tpu_custom_call.1} parent=11 // pred_fallthru
          _
        // Predicated region
        $region53: #{tpu_custom_call.1} parent=11 // pred_check
          %p522 = pneg %p321
        $region54: #{tpu_custom_call.1} parent=11 // pred_check_branch
          %524 = sbr.rel (%p522) target = $region56
        $region55: #{tpu_custom_call.1} parent=11 // pred_region
          %s526 = ssub.s32 2048, 2048
          %527 = vsyncadd [#allocation10], %s526
          %s528 = sshll.u32 [#allocation11], 4
          %s529 = int_to_ptr.vmem [resolvable:$true] %s528
          %534 = dma.hbm_to_vmem [thread:$0]  %s12, 2048, %s529, [#allocation10], 128, 128, 8
        $region56: #{tpu_custom_call.1} parent=11 // pred_fallthru
          _
        // Predicated region
        $region57: #{tpu_custom_call.1} parent=11 // pred_check
          %p535 = pneg %p342
        $region58: #{tpu_custom_call.1} parent=11 // pred_check_branch
          %537 = sbr.rel (%p535) target = $region60
        $region59: #{tpu_custom_call.1} parent=11 // pred_region
          _
        $region60: #{tpu_custom_call.1} parent=11 // pred_fallthru
          _
        // Predicated region
        $region61: #{tpu_custom_call.1} parent=11 // pred_check
          %p538 = pneg %p363
        $region62: #{tpu_custom_call.1} parent=11 // pred_check_branch
          %540 = sbr.rel (%p538) target = $region64
        $region63: #{tpu_custom_call.1} parent=11 // pred_region
          %s542 = ssub.s32 2048, 2048
          %543 = vsyncadd [#allocation13], %s542
          %s544 = sshll.u32 [#allocation12], 4
          %s545 = int_to_ptr.vmem [resolvable:$true] %s544
          %550 = dma.hbm_to_vmem [thread:$0]  %s14, 2048, %s545, [#allocation13], 128, 128, 8
        $region64: #{tpu_custom_call.1} parent=11 // pred_fallthru
          _
        // Predicated region
        $region65: #{tpu_custom_call.1} parent=11 // pred_check
          %p551 = pneg %p384
        $region66: #{tpu_custom_call.1} parent=11 // pred_check_branch
          %553 = sbr.rel (%p551) target = $region68
        $region67: #{tpu_custom_call.1} parent=11 // pred_region
          %s555 = ssub.s32 2048, 2048
          %556 = vsyncadd [#allocation13], %s555
          %s557 = sshll.u32 [#allocation14], 4
          %s558 = int_to_ptr.vmem [resolvable:$true] %s557
          %563 = dma.hbm_to_vmem [thread:$0]  %s15, 2048, %s558, [#allocation13], 128, 128, 8
        $region68: #{tpu_custom_call.1} parent=11 // pred_fallthru
          _
        // Predicated region
        $region69: #{tpu_custom_call.1} parent=11 // pred_check
          %p564 = pneg %p405
        $region70: #{tpu_custom_call.1} parent=11 // pred_check_branch
          %566 = sbr.rel (%p564) target = $region72
        $region71: #{tpu_custom_call.1} parent=11 // pred_region
          _
        $region72: #{tpu_custom_call.1} parent=11 // pred_fallthru
          _
      $region12: #{tpu_custom_call.1} parent=5 // pred_fallthru
        _
      %p567 = scmp.lt.s32.totalorder %s38, 2
      // Predicated region
      $region73: #{tpu_custom_call.1} parent=5 // pred_check
        %p568 = pneg %p567
      $region74: #{tpu_custom_call.1} parent=5 // pred_check_branch
        %570 = sbr.rel (%p568) target = $region76
      $region75: #{tpu_custom_call.1} parent=5 // pred_region
        // Predicated region
        $region77: #{tpu_custom_call.1} parent=75 // pred_check
          %p571 = pneg %p58
        $region78: #{tpu_custom_call.1} parent=75 // pred_check_branch
          %573 = sbr.rel (%p571) target = $region80
        $region79: #{tpu_custom_call.1} parent=75 // pred_region
          %s574 = sand.u32 %s48, 1
          %s575 = scalar_lea.sflag [#allocation4], %s574
          %s576 = sand.u32 %s48, 1
          %s577 = smul.addr %s576, 16
          %s578 = scalar_lea.vmem [#allocation3], %s577
          %s579 = smul.u32 2, %s38
          %s581 = ssub.s32 256, 256
          %582 = vsyncadd %s575, %s581
          %s583 = smul.addr %s579, 128
          %s584 = scalar_lea.hbm %s0, %s583
          %s585 = sshll.u32 %s578, 4
          %s586 = int_to_ptr.vmem [resolvable:$true] %s585
          %591 = dma.hbm_to_vmem [thread:$0]  %s584, 256, %s586, %s575, 128, 128, 8
        $region80: #{tpu_custom_call.1} parent=75 // pred_fallthru
          _
        // Predicated region
        $region81: #{tpu_custom_call.1} parent=75 // pred_check
          %p592 = pneg %p84
        $region82: #{tpu_custom_call.1} parent=75 // pred_check_branch
          %594 = sbr.rel (%p592) target = $region84
        $region83: #{tpu_custom_call.1} parent=75 // pred_region
          #allocation17 [shape = 'u32[6]{0}', space=smem, size = 0x18, scoped, tag = 'DMA stride descriptor']
          %s595 = sand.u32 %s38, 1
          %s596 = scalar_lea.sflag [#allocation7], %s595
          %s597 = sand.u32 %s74, 1
          %s598 = smul.addr %s597, 256
          %s599 = scalar_lea.vmem [#allocation6], %s598
          %s600 = smul.u32 16, %s38
          %s602 = ssub.s32 4096, 4096
          %603 = vsyncadd %s596, %s602
          %s604 = smul.addr %s600, 128
          %s605 = scalar_lea.hbm %s1, %s604
          %s607 = sshll.u32 1, 14
          %s608 = sxor.u32 4294967295, %s607
          %s610 = sld [smem:[#allocation0]]
          %s611 = sadd.s32 2, %s610
          %s613 = sshll.u32 7, 26
          %s614 = sxor.u32 4294967295, %s613
          %s615 = sand.u32 0, %s614
          %s616 = sshll.u32 %s611, 26
          %s617 = sor.u32 %s615, %s616
          %s618 = sshll.u32 %s599, 4
          %s619 = int_to_ptr.vmem [resolvable:$true] %s618
          %625 = sst [smem:[#allocation17]] 4096
          %s626 = scalar_lea.smem [#allocation17], 1
          %627 = sst [smem:[%s626]] 2048
          %s628 = scalar_lea.smem [#allocation17], 2
          %629 = sst [smem:[%s628]] 16
          %s630 = scalar_lea.smem [#allocation17], 3
          %631 = sst [smem:[%s630]] 128
          %s632 = scalar_lea.smem [#allocation17], 4
          %633 = sst [smem:[%s632]] 128
          %s634 = scalar_lea.smem [#allocation17], 5
          %635 = sst [smem:[%s634]] 8
          %637 = dma.general %s605, 4096, %s619, %s596, [#allocation16], [#allocation17], %s617, 0
        $region84: #{tpu_custom_call.1} parent=75 // pred_fallthru
          _
      $region76: #{tpu_custom_call.1} parent=5 // pred_fallthru
        _
      %p638 = scmp.le.s32.totalorder 1, %s38
      %p639 = scmp.lt.s32.totalorder %s38, 3
      %p640 = pnand %p638, %p639
      %p641 = pneg %p640
      // Predicated region
      $region85: #{tpu_custom_call.1} parent=5 // pred_check
        _
      $region86: #{tpu_custom_call.1} parent=5 // pred_check_branch
        %643 = sbr.rel (%p640) target = $region88
      $region87: #{tpu_custom_call.1} parent=5 // pred_region
        %s644 = ssub.s32 %s38, 1
        %s645 = sand.u32 %s51, 1
        %s646 = scalar_lea.sflag [#allocation4], %s645
        %s647 = sand.u32 %s51, 1
        %s648 = smul.addr %s647, 16
        %s649 = scalar_lea.vmem [#allocation3], %s648
        // Predicated region
        $region89: #{tpu_custom_call.1} parent=87 // pred_check
          %p650 = pneg %p64
        $region90: #{tpu_custom_call.1} parent=87 // pred_check_branch
          %652 = sbr.rel (%p650) target = $region92
        $region91: #{tpu_custom_call.1} parent=87 // pred_region
          %653 = dma.done %s646, 256
        $region92: #{tpu_custom_call.1} parent=87 // pred_fallthru
          _
        %s654 = sand.u32 %s43, 1
        %s655 = scalar_lea.sflag [#allocation7], %s654
        %s656 = sand.u32 %s77, 1
        %s657 = smul.addr %s656, 256
        %s658 = scalar_lea.vmem [#allocation6], %s657
        // Predicated region
        $region93: #{tpu_custom_call.1} parent=87 // pred_check
          %p659 = pneg %p90
        $region94: #{tpu_custom_call.1} parent=87 // pred_check_branch
          %661 = sbr.rel (%p659) target = $region96
        $region95: #{tpu_custom_call.1} parent=87 // pred_region
          %662 = dma.done %s655, 4096
        $region96: #{tpu_custom_call.1} parent=87 // pred_fallthru
          _
        // Predicated region
        $region97: #{tpu_custom_call.1} parent=87 // pred_check
          %p663 = pneg %p174
        $region98: #{tpu_custom_call.1} parent=87 // pred_check_branch
          %665 = sbr.rel (%p663) target = $region100
        $region99: #{tpu_custom_call.1} parent=87 // pred_region
          %666 = dma.done [#allocation7], 2048
        $region100: #{tpu_custom_call.1} parent=87 // pred_fallthru
          _
        // Predicated region
        $region101: #{tpu_custom_call.1} parent=87 // pred_check
          %p667 = pneg %p258
        $region102: #{tpu_custom_call.1} parent=87 // pred_check_branch
          %669 = sbr.rel (%p667) target = $region104
        $region103: #{tpu_custom_call.1} parent=87 // pred_region
          %670 = dma.done [#allocation10], 2048
        $region104: #{tpu_custom_call.1} parent=87 // pred_fallthru
          _
        // Predicated region
        $region105: #{tpu_custom_call.1} parent=87 // pred_check
          %p671 = pneg %p321
        $region106: #{tpu_custom_call.1} parent=87 // pred_check_branch
          %673 = sbr.rel (%p671) target = $region108
        $region107: #{tpu_custom_call.1} parent=87 // pred_region
          %674 = dma.done [#allocation10], 2048
        $region108: #{tpu_custom_call.1} parent=87 // pred_fallthru
          _
        // Predicated region
        $region109: #{tpu_custom_call.1} parent=87 // pred_check
          %p675 = pneg %p363
        $region110: #{tpu_custom_call.1} parent=87 // pred_check_branch
          %677 = sbr.rel (%p675) target = $region112
        $region111: #{tpu_custom_call.1} parent=87 // pred_region
          %678 = dma.done [#allocation13], 2048
        $region112: #{tpu_custom_call.1} parent=87 // pred_fallthru
          _
        // Predicated region
        $region113: #{tpu_custom_call.1} parent=87 // pred_check
          %p679 = pneg %p384
        $region114: #{tpu_custom_call.1} parent=87 // pred_check_branch
          %681 = sbr.rel (%p679) target = $region116
        $region115: #{tpu_custom_call.1} parent=87 // pred_region
          %682 = dma.done [#allocation13], 2048
        $region116: #{tpu_custom_call.1} parent=87 // pred_fallthru
          _
        %s683 = sand.u32 %s51, 1
        %s684 = scalar_lea.sflag [#allocation4], %s683
        %s685 = sand.u32 %s51, 1
        %s686 = smul.addr %s685, 16
        %s687 = scalar_lea.vmem [#allocation3], %s686
        %p688 = pneg %p64
        %p689 = pneg %p61
        %s690 = sand.u32 %s43, 1
        %s691 = scalar_lea.sflag [#allocation7], %s690
        %s692 = sand.u32 %s77, 1
        %s693 = smul.addr %s692, 256
        %s694 = scalar_lea.vmem [#allocation6], %s693
        %p695 = pneg %p90
        %p696 = pneg %p87
        %p697 = pneg %p111
        %p698 = pneg %p108
        %p699 = pneg %p132
        %p700 = pneg %p129
        %p701 = pneg %p153
        %p702 = pneg %p150
        %p703 = pneg %p174
        %p704 = pneg %p171
        %p705 = pneg %p195
        %p706 = pneg %p192
        %p707 = pneg %p216
        %p708 = pneg %p213
        %p709 = pneg %p237
        %p710 = pneg %p234
        %p711 = pneg %p258
        %p712 = pneg %p255
        %p713 = pneg %p279
        %p714 = pneg %p276
        %p715 = pneg %p300
        %p716 = pneg %p297
        %p717 = pneg %p321
        %p718 = pneg %p318
        %p719 = pneg %p342
        %p720 = pneg %p339
        %p721 = pneg %p363
        %p722 = pneg %p360
        %p723 = pneg %p384
        %p724 = pneg %p381
        %p725 = pneg %p405
        %p726 = pneg %p402
        %p727 = pneg %p431
        %p728 = pneg %p428
        %s729 = sand.u32 %s418, 1
        %s730 = scalar_lea.sflag [#allocation5], %s729
        %s731 = sand.u32 %s418, 1
        %s732 = smul.addr %s731, 16
        %s733 = scalar_lea.vmem [#allocation15], %s732
        %p734 = pneg %p457
        %p735 = pneg %p454
        %s736 = smul.u32 2, %s43
        %p737 = scmp.lt.s32.totalorder %s736, 3
        %s738 = scalar_select %p737, %s736, 3
        %s739 = smul.addr %s738, 8
        %s740 = scalar_lea.vmem %s18, %s739
        %s741 = smul.u32 2, %s43
        %s742 = smul.u32 16, %s43
        %s743 = smul.u32 2, %s43
        %s744 = smul.u32 2, %s43
        %p745 = scmp.lt.s32.totalorder %s744, 3
        %s746 = scalar_select %p745, %s744, 3
        %s747 = smul.addr %s746, 8
        %s748 = scalar_lea.vmem %s18, %s747
        %s749 = smul.u32 2, %s43
        %v750 = vld [vmem:[%s649] sm:$0xff]
        %v751 = vld [vmem:[%s649 + $0x8] sm:$0xff]
        %v752 = vld [vmem:[%s658] sm:$0xff]
        %v753 = vld [vmem:[%s658 + $0x8] sm:$0xff]
        %v754 = vld [vmem:[%s658 + $0x10] sm:$0xff]
        %v755 = vld [vmem:[%s658 + $0x18] sm:$0xff]
        %v756 = vld [vmem:[%s658 + $0x20] sm:$0xff]
        %v757 = vld [vmem:[%s658 + $0x28] sm:$0xff]
        %v758 = vld [vmem:[%s658 + $0x30] sm:$0xff]
        %v759 = vld [vmem:[%s658 + $0x38] sm:$0xff]
        %v760 = vld [vmem:[%s658 + $0x40] sm:$0xff]
        %v761 = vld [vmem:[%s658 + $0x48] sm:$0xff]
        %v762 = vld [vmem:[%s658 + $0x50] sm:$0xff]
        %v763 = vld [vmem:[%s658 + $0x58] sm:$0xff]
        %v764 = vld [vmem:[%s658 + $0x60] sm:$0xff]
        %v765 = vld [vmem:[%s658 + $0x68] sm:$0xff]
        %v766 = vld [vmem:[%s658 + $0x70] sm:$0xff]
        %v767 = vld [vmem:[%s658 + $0x78] sm:$0xff]
        %v768 = vld [vmem:[%s658 + $0x80] sm:$0xff]
        %v769 = vld [vmem:[%s658 + $0x88] sm:$0xff]
        %v770 = vld [vmem:[%s658 + $0x90] sm:$0xff]
        %v771 = vld [vmem:[%s658 + $0x98] sm:$0xff]
        %v772 = vld [vmem:[%s658 + $0xa0] sm:$0xff]
        %v773 = vld [vmem:[%s658 + $0xa8] sm:$0xff]
        %v774 = vld [vmem:[%s658 + $0xb0] sm:$0xff]
        %v775 = vld [vmem:[%s658 + $0xb8] sm:$0xff]
        %v776 = vld [vmem:[%s658 + $0xc0] sm:$0xff]
        %v777 = vld [vmem:[%s658 + $0xc8] sm:$0xff]
        %v778 = vld [vmem:[%s658 + $0xd0] sm:$0xff]
        %v779 = vld [vmem:[%s658 + $0xd8] sm:$0xff]
        %v780 = vld [vmem:[%s658 + $0xe0] sm:$0xff]
        %v781 = vld [vmem:[%s658 + $0xe8] sm:$0xff]
        %v782 = vld [vmem:[%s658 + $0xf0] sm:$0xff]
        %v783 = vld [vmem:[%s658 + $0xf8] sm:$0xff]
        %v784 = vld [vmem:[%s2] sm:$0xff]
        %v785 = vld [vmem:[%s2 + $0x8] sm:$0xff]
        %v786 = vld [vmem:[%s2 + $0x10] sm:$0xff]
        %v787 = vld [vmem:[%s2 + $0x18] sm:$0xff]
        %v788 = vld [vmem:[%s2 + $0x20] sm:$0xff]
        %v789 = vld [vmem:[%s2 + $0x28] sm:$0xff]
        %v790 = vld [vmem:[%s2 + $0x30] sm:$0xff]
        %v791 = vld [vmem:[%s2 + $0x38] sm:$0xff]
        %v792 = vld [vmem:[%s2 + $0x40] sm:$0xff]
        %v793 = vld [vmem:[%s2 + $0x48] sm:$0xff]
        %v794 = vld [vmem:[%s2 + $0x50] sm:$0xff]
        %v795 = vld [vmem:[%s2 + $0x58] sm:$0xff]
        %v796 = vld [vmem:[%s2 + $0x60] sm:$0xff]
        %v797 = vld [vmem:[%s2 + $0x68] sm:$0xff]
        %v798 = vld [vmem:[%s2 + $0x70] sm:$0xff]
        %v799 = vld [vmem:[%s2 + $0x78] sm:$0xff]
        %v800 = vld [vmem:[%s4] sm:$0x1]
        %v802 = vlaneseq
        %v803 = vshrl.u32 %v802, 7
        %v804 = vsub.s32 0, %v803
        %v805 = vrot.slane %v800, %v804
        %807 = vmatprep.subr.mxu0 0.0
        %808 = vmatpush1.msra.mxu0 %v784
        %809 = vmatprep.subr.mxu0 0.0
        %810 = vmatpush1.msra.mxu0 %v785
        %811 = vmatprep.subr.mxu0 0.0
        %812 = vmatpush1.msra.mxu0 %v786
        %813 = vmatprep.subr.mxu0 0.0
        %814 = vmatpush1.msra.mxu0 %v787
        %815 = vmatprep.subr.mxu0 0.0
        %816 = vmatpush1.msra.mxu0 %v788
        %817 = vmatprep.subr.mxu0 0.0
        %818 = vmatpush1.msra.mxu0 %v789
        %819 = vmatprep.subr.mxu0 0.0
        %820 = vmatpush1.msra.mxu0 %v790
        %821 = vmatprep.subr.mxu0 0.0
        %822 = vmatpush1.msra.mxu0 %v791
        %823 = vmatprep.subr.mxu0 0.0
        %824 = vmatpush1.msra.mxu0 %v792
        %825 = vmatprep.subr.mxu0 0.0
        %826 = vmatpush1.msra.mxu0 %v793
        %827 = vmatprep.subr.mxu0 0.0
        %828 = vmatpush1.msra.mxu0 %v794
        %829 = vmatprep.subr.mxu0 0.0
        %830 = vmatpush1.msra.mxu0 %v795
        %831 = vmatprep.subr.mxu0 0.0
        %832 = vmatpush1.msra.mxu0 %v796
        %833 = vmatprep.subr.mxu0 0.0
        %834 = vmatpush1.msra.mxu0 %v797
        %835 = vmatprep.subr.mxu0 0.0
        %836 = vmatpush1.msra.mxu0 %v798
        %837 = vmatprep.subr.mxu0 0.0
        %838 = vmatpush1.msra.mxu0 %v799
        %839 = vmatprep.subr.mxu0 0.0
        %840 = vmatpush1.msra.mxu0 0.0
        %841 = vmatprep.subr.mxu0 0.0
        %842 = vmatpush1.msra.mxu0 0.0
        %843 = vmatprep.subr.mxu0 0.0
        %844 = vmatpush1.msra.mxu0 0.0
        %845 = vmatprep.subr.mxu0 0.0
        %846 = vmatpush1.msra.mxu0 0.0
        %847 = vmatprep.subr.mxu0 0.0
        %848 = vmatpush1.msra.mxu0 0.0
        %849 = vmatprep.subr.mxu0 0.0
        %850 = vmatpush1.msra.mxu0 0.0
        %851 = vmatprep.subr.mxu0 0.0
        %852 = vmatpush1.msra.mxu0 0.0
        %853 = vmatprep.subr.mxu0 0.0
        %854 = vmatpush1.msra.mxu0 0.0
        %855 = vmatprep.subr.mxu0 0.0
        %856 = vmatpush1.msra.mxu0 0.0
        %857 = vmatprep.subr.mxu0 0.0
        %858 = vmatpush1.msra.mxu0 0.0
        %859 = vmatprep.subr.mxu0 0.0
        %860 = vmatpush1.msra.mxu0 0.0
        %861 = vmatprep.subr.mxu0 0.0
        %862 = vmatpush1.msra.mxu0 0.0
        %863 = vmatprep.subr.mxu0 0.0
        %864 = vmatpush1.msra.mxu0 0.0
        %865 = vmatprep.subr.mxu0 0.0
        %866 = vmatpush1.msra.mxu0 0.0
        %867 = vmatprep.subr.mxu0 0.0
        %868 = vmatpush1.msra.mxu0 0.0
        %869 = vmatprep.subr.mxu0 0.0
        %870 = vmatpush1.msra.mxu0 0.0
        %871 = vmatprep.mubr.f32.mxu0 0.0
        %872 = vmatmul.mubr.f32.gmra.mrb[0].mxu0 %v750
        %v873 = vpop.f32.mrb[0].mxu0
        %v874 = vadd.f32 %v805, %v873
        %v875 = vpop.f32.mrb[0].mxu0
        %876 = vmatprep.mubr.f32.mxu0 0.0
        %877 = vmatmul.mubr.f32.gmra.mrb[0].mxu0 %v751
        %v878 = vpop.f32.mrb[0].mxu0
        %v879 = vadd.f32 %v805, %v878
        %v880 = vpop.f32.mrb[0].mxu0
        %881 = vdwg.mxu0
        %v884 = vcombine.high %v874, %v874
        %v886 = vunpack.c.l.s4 1966171168
        %v887 = vunpack.c.0.s8 %v886
        %v888 = vlaneseq
        %v889 = vshrl.u32 %v888, 7
        %v890 = vsub.s32 %v887, %v889
        %v891 = vrot.slane %v874, %v890
        %v893 = vunpack.c.l.s4 1966171168
        %v894 = vunpack.c.0.s8 %v893
        %v895 = vlaneseq
        %v896 = vshrl.u32 %v895, 7
        %v897 = vsub.s32 %v894, %v896
        %v898 = vrot.slane %v884, %v897
        %v899 = vcombine.high %v891, %v891
        %v900 = vcombine.high %v898, %v898
        %v902 = vunpack.c.l.s4 1966171168
        %v903 = vunpack.c.0.s8 %v902
        %v904 = vlaneseq
        %v905 = vshrl.u32 %v904, 7
        %v906 = vsub.s32 %v903, %v905
        %v907 = vrot.slane %v891, %v906
        %v909 = vunpack.c.l.s4 1966171168
        %v910 = vunpack.c.0.s8 %v909
        %v911 = vlaneseq
        %v912 = vshrl.u32 %v911, 7
        %v913 = vsub.s32 %v910, %v912
        %v914 = vrot.slane %v898, %v913
        %v916 = vunpack.c.l.s4 1966171168
        %v917 = vunpack.c.0.s8 %v916
        %v918 = vlaneseq
        %v919 = vshrl.u32 %v918, 7
        %v920 = vsub.s32 %v917, %v919
        %v921 = vrot.slane %v899, %v920
        %v923 = vunpack.c.l.s4 1966171168
        %v924 = vunpack.c.0.s8 %v923
        %v925 = vlaneseq
        %v926 = vshrl.u32 %v925, 7
        %v927 = vsub.s32 %v924, %v926
        %v928 = vrot.slane %v900, %v927
        %v929 = vcombine.high %v907, %v907
        %v930 = vcombine.high %v914, %v914
        %v931 = vcombine.high %v921, %v921
        %v932 = vcombine.high %v928, %v928
        %v933 = vcombine.high %v879, %v879
        %v935 = vunpack.c.l.s4 1966171168
        %v936 = vunpack.c.0.s8 %v935
        %v937 = vlaneseq
        %v938 = vshrl.u32 %v937, 7
        %v939 = vsub.s32 %v936, %v938
        %v940 = vrot.slane %v879, %v939
        %v942 = vunpack.c.l.s4 1966171168
        %v943 = vunpack.c.0.s8 %v942
        %v944 = vlaneseq
        %v945 = vshrl.u32 %v944, 7
        %v946 = vsub.s32 %v943, %v945
        %v947 = vrot.slane %v933, %v946
        %v948 = vcombine.high %v940, %v940
        %v949 = vcombine.high %v947, %v947
        %v951 = vunpack.c.l.s4 1966171168
        %v952 = vunpack.c.0.s8 %v951
        %v953 = vlaneseq
        %v954 = vshrl.u32 %v953, 7
        %v955 = vsub.s32 %v952, %v954
        %v956 = vrot.slane %v940, %v955
        %v958 = vunpack.c.l.s4 1966171168
        %v959 = vunpack.c.0.s8 %v958
        %v960 = vlaneseq
        %v961 = vshrl.u32 %v960, 7
        %v962 = vsub.s32 %v959, %v961
        %v963 = vrot.slane %v947, %v962
        %v965 = vunpack.c.l.s4 1966171168
        %v966 = vunpack.c.0.s8 %v965
        %v967 = vlaneseq
        %v968 = vshrl.u32 %v967, 7
        %v969 = vsub.s32 %v966, %v968
        %v970 = vrot.slane %v948, %v969
        %v972 = vunpack.c.l.s4 1966171168
        %v973 = vunpack.c.0.s8 %v972
        %v974 = vlaneseq
        %v975 = vshrl.u32 %v974, 7
        %v976 = vsub.s32 %v973, %v975
        %v977 = vrot.slane %v949, %v976
        %v978 = vcombine.high %v956, %v956
        %v979 = vcombine.high %v963, %v963
        %v980 = vcombine.high %v970, %v970
        %v981 = vcombine.high %v977, %v977
        %v982 = vlaneseq
        %v983 = vshrl.u32 %v982, 7
        %v984 = vsub.s32 0, %v983
        %v985 = vrot.slane %v907, %v984
        %v986 = vlaneseq
        %v987 = vshrl.u32 %v986, 7
        %v988 = vsub.s32 0, %v987
        %v989 = vrot.slane %v921, %v988
        %v990 = vlaneseq
        %v991 = vshrl.u32 %v990, 7
        %v992 = vsub.s32 0, %v991
        %v993 = vrot.slane %v929, %v992
        %v994 = vlaneseq
        %v995 = vshrl.u32 %v994, 7
        %v996 = vsub.s32 0, %v995
        %v997 = vrot.slane %v931, %v996
        %v998 = vlaneseq
        %v999 = vshrl.u32 %v998, 7
        %v1000 = vsub.s32 0, %v999
        %v1001 = vrot.slane %v914, %v1000
        %v1002 = vlaneseq
        %v1003 = vshrl.u32 %v1002, 7
        %v1004 = vsub.s32 0, %v1003
        %v1005 = vrot.slane %v928, %v1004
        %v1006 = vlaneseq
        %v1007 = vshrl.u32 %v1006, 7
        %v1008 = vsub.s32 0, %v1007
        %v1009 = vrot.slane %v930, %v1008
        %v1010 = vlaneseq
        %v1011 = vshrl.u32 %v1010, 7
        %v1012 = vsub.s32 0, %v1011
        %v1013 = vrot.slane %v932, %v1012
        %v1014 = vlaneseq
        %v1015 = vshrl.u32 %v1014, 7
        %v1016 = vsub.s32 0, %v1015
        %v1017 = vrot.slane %v956, %v1016
        %v1018 = vlaneseq
        %v1019 = vshrl.u32 %v1018, 7
        %v1020 = vsub.s32 0, %v1019
        %v1021 = vrot.slane %v970, %v1020
        %v1022 = vlaneseq
        %v1023 = vshrl.u32 %v1022, 7
        %v1024 = vsub.s32 0, %v1023
        %v1025 = vrot.slane %v978, %v1024
        %v1026 = vlaneseq
        %v1027 = vshrl.u32 %v1026, 7
        %v1028 = vsub.s32 0, %v1027
        %v1029 = vrot.slane %v980, %v1028
        %v1030 = vlaneseq
        %v1031 = vshrl.u32 %v1030, 7
        %v1032 = vsub.s32 0, %v1031
        %v1033 = vrot.slane %v963, %v1032
        %v1034 = vlaneseq
        %v1035 = vshrl.u32 %v1034, 7
        %v1036 = vsub.s32 0, %v1035
        %v1037 = vrot.slane %v977, %v1036
        %v1038 = vlaneseq
        %v1039 = vshrl.u32 %v1038, 7
        %v1040 = vsub.s32 0, %v1039
        %v1041 = vrot.slane %v979, %v1040
        %v1042 = vlaneseq
        %v1043 = vshrl.u32 %v1042, 7
        %v1044 = vsub.s32 0, %v1043
        %v1045 = vrot.slane %v981, %v1044
        %v1062 = vld [vmem:[%s3] sm:$0xff]
        %v1063 = vld [vmem:[%s3 + $0x8] sm:$0xff]
        %v1064 = vld [vmem:[%s3 + $0x10] sm:$0xff]
        %v1065 = vld [vmem:[%s3 + $0x18] sm:$0xff]
        %v1066 = vld [vmem:[%s3 + $0x20] sm:$0xff]
        %v1067 = vld [vmem:[%s3 + $0x28] sm:$0xff]
        %v1068 = vld [vmem:[%s3 + $0x30] sm:$0xff]
        %v1069 = vld [vmem:[%s3 + $0x38] sm:$0xff]
        %v1070 = vld [vmem:[%s3 + $0x40] sm:$0xff]
        %v1071 = vld [vmem:[%s3 + $0x48] sm:$0xff]
        %v1072 = vld [vmem:[%s3 + $0x50] sm:$0xff]
        %v1073 = vld [vmem:[%s3 + $0x58] sm:$0xff]
        %v1074 = vld [vmem:[%s3 + $0x60] sm:$0xff]
        %v1075 = vld [vmem:[%s3 + $0x68] sm:$0xff]
        %v1076 = vld [vmem:[%s3 + $0x70] sm:$0xff]
        %v1077 = vld [vmem:[%s3 + $0x78] sm:$0xff]
        %1078 = vmatprep.subr.mxu0 0.0
        %1079 = vmatpush1.msra.mxu0 %v1062
        %1080 = vmatprep.subr.mxu0 0.0
        %1081 = vmatpush1.msra.mxu0 %v1063
        %1082 = vmatprep.subr.mxu0 0.0
        %1083 = vmatpush1.msra.mxu0 %v1064
        %1084 = vmatprep.subr.mxu0 0.0
        %1085 = vmatpush1.msra.mxu0 %v1065
        %1086 = vmatprep.subr.mxu0 0.0
        %1087 = vmatpush1.msra.mxu0 %v1066
        %1088 = vmatprep.subr.mxu0 0.0
        %1089 = vmatpush1.msra.mxu0 %v1067
        %1090 = vmatprep.subr.mxu0 0.0
        %1091 = vmatpush1.msra.mxu0 %v1068
        %1092 = vmatprep.subr.mxu0 0.0
        %1093 = vmatpush1.msra.mxu0 %v1069
        %1094 = vmatprep.subr.mxu0 0.0
        %1095 = vmatpush1.msra.mxu0 %v1070
        %1096 = vmatprep.subr.mxu0 0.0
        %1097 = vmatpush1.msra.mxu0 %v1071
        %1098 = vmatprep.subr.mxu0 0.0
        %1099 = vmatpush1.msra.mxu0 %v1072
        %1100 = vmatprep.subr.mxu0 0.0
        %1101 = vmatpush1.msra.mxu0 %v1073
        %1102 = vmatprep.subr.mxu0 0.0
        %1103 = vmatpush1.msra.mxu0 %v1074
        %1104 = vmatprep.subr.mxu0 0.0
        %1105 = vmatpush1.msra.mxu0 %v1075
        %1106 = vmatprep.subr.mxu0 0.0
        %1107 = vmatpush1.msra.mxu0 %v1076
        %1108 = vmatprep.subr.mxu0 0.0
        %1109 = vmatpush1.msra.mxu0 %v1077
        %1110 = vmatprep.subr.mxu0 0.0
        %1111 = vmatpush1.msra.mxu0 0.0
        %1112 = vmatprep.subr.mxu0 0.0
        %1113 = vmatpush1.msra.mxu0 0.0
        %1114 = vmatprep.subr.mxu0 0.0
        %1115 = vmatpush1.msra.mxu0 0.0
        %1116 = vmatprep.subr.mxu0 0.0
        %1117 = vmatpush1.msra.mxu0 0.0
        %1118 = vmatprep.subr.mxu0 0.0
        %1119 = vmatpush1.msra.mxu0 0.0
        %1120 = vmatprep.subr.mxu0 0.0
        %1121 = vmatpush1.msra.mxu0 0.0
        %1122 = vmatprep.subr.mxu0 0.0
        %1123 = vmatpush1.msra.mxu0 0.0
        %1124 = vmatprep.subr.mxu0 0.0
        %1125 = vmatpush1.msra.mxu0 0.0
        %1126 = vmatprep.subr.mxu0 0.0
        %1127 = vmatpush1.msra.mxu0 0.0
        %1128 = vmatprep.subr.mxu0 0.0
        %1129 = vmatpush1.msra.mxu0 0.0
        %1130 = vmatprep.subr.mxu0 0.0
        %1131 = vmatpush1.msra.mxu0 0.0
        %1132 = vmatprep.subr.mxu0 0.0
        %1133 = vmatpush1.msra.mxu0 0.0
        %1134 = vmatprep.subr.mxu0 0.0
        %1135 = vmatpush1.msra.mxu0 0.0
        %1136 = vmatprep.subr.mxu0 0.0
        %1137 = vmatpush1.msra.mxu0 0.0
        %1138 = vmatprep.subr.mxu0 0.0
        %1139 = vmatpush1.msra.mxu0 0.0
        %1140 = vmatprep.subr.mxu0 0.0
        %1141 = vmatpush1.msra.mxu0 0.0
        %1142 = vmatprep.mubr.f32.mxu0 0.0
        %1143 = vmatmul.mubr.f32.gmra.mrb[0].mxu0 %v752
        %v1144 = vpop.f32.mrb[0].mxu0
        %v1145 = vadd.f32 %v985, %v1144
        %v1146 = vpop.f32.mrb[0].mxu0
        %1147 = vmatprep.mubr.f32.mxu0 0.0
        %1148 = vmatmul.mubr.f32.gmra.mrb[0].mxu0 %v753
        %v1149 = vpop.f32.mrb[0].mxu0
        %v1150 = vadd.f32 %v989, %v1149
        %v1151 = vpop.f32.mrb[0].mxu0
        %1152 = vmatprep.mubr.f32.mxu0 0.0
        %1153 = vmatmul.mubr.f32.gmra.mrb[0].mxu0 %v754
        %v1154 = vpop.f32.mrb[0].mxu0
        %v1155 = vadd.f32 %v993, %v1154
        %v1156 = vpop.f32.mrb[0].mxu0
        %1157 = vmatprep.mubr.f32.mxu0 0.0
        %1158 = vmatmul.mubr.f32.gmra.mrb[0].mxu0 %v755
        %v1159 = vpop.f32.mrb[0].mxu0
        %v1160 = vadd.f32 %v997, %v1159
        %v1161 = vpop.f32.mrb[0].mxu0
        %1162 = vmatprep.mubr.f32.mxu0 0.0
        %1163 = vmatmul.mubr.f32.gmra.mrb[0].mxu0 %v756
        %v1164 = vpop.f32.mrb[0].mxu0
        %v1165 = vadd.f32 %v1001, %v1164
        %v1166 = vpop.f32.mrb[0].mxu0
        %1167 = vmatprep.mubr.f32.mxu0 0.0
        %1168 = vmatmul.mubr.f32.gmra.mrb[0].mxu0 %v757
        %v1169 = vpop.f32.mrb[0].mxu0
        %v1170 = vadd.f32 %v1005, %v1169
        %v1171 = vpop.f32.mrb[0].mxu0
        %1172 = vmatprep.mubr.f32.mxu0 0.0
        %1173 = vmatmul.mubr.f32.gmra.mrb[0].mxu0 %v758
        %v1174 = vpop.f32.mrb[0].mxu0
        %v1175 = vadd.f32 %v1009, %v1174
        %v1176 = vpop.f32.mrb[0].mxu0
        %1177 = vmatprep.mubr.f32.mxu0 0.0
        %1178 = vmatmul.mubr.f32.gmra.mrb[0].mxu0 %v759
        %v1179 = vpop.f32.mrb[0].mxu0
        %v1180 = vadd.f32 %v1013, %v1179
        %v1181 = vpop.f32.mrb[0].mxu0
        %1182 = vmatprep.mubr.f32.mxu0 0.0
        %1183 = vmatmul.mubr.f32.gmra.mrb[0].mxu0 %v760
        %v1184 = vpop.f32.mrb[0].mxu0
        %v1185 = vadd.f32 %v1017, %v1184
        %v1186 = vpop.f32.mrb[0].mxu0
        %1187 = vmatprep.mubr.f32.mxu0 0.0
        %1188 = vmatmul.mubr.f32.gmra.mrb[0].mxu0 %v761
        %v1189 = vpop.f32.mrb[0].mxu0
        %v1190 = vadd.f32 %v1021, %v1189
        %v1191 = vpop.f32.mrb[0].mxu0
        %1192 = vmatprep.mubr.f32.mxu0 0.0
        %1193 = vmatmul.mubr.f32.gmra.mrb[0].mxu0 %v762
        %v1194 = vpop.f32.mrb[0].mxu0
        %v1195 = vadd.f32 %v1025, %v1194
        %v1196 = vpop.f32.mrb[0].mxu0
        %1197 = vmatprep.mubr.f32.mxu0 0.0
        %1198 = vmatmul.mubr.f32.gmra.mrb[0].mxu0 %v763
        %v1199 = vpop.f32.mrb[0].mxu0
        %v1200 = vadd.f32 %v1029, %v1199
        %v1201 = vpop.f32.mrb[0].mxu0
        %1202 = vmatprep.mubr.f32.mxu0 0.0
        %1203 = vmatmul.mubr.f32.gmra.mrb[0].mxu0 %v764
        %v1204 = vpop.f32.mrb[0].mxu0
        %v1205 = vadd.f32 %v1033, %v1204
        %v1206 = vpop.f32.mrb[0].mxu0
        %1207 = vmatprep.mubr.f32.mxu0 0.0
        %1208 = vmatmul.mubr.f32.gmra.mrb[0].mxu0 %v765
        %v1209 = vpop.f32.mrb[0].mxu0
        %v1210 = vadd.f32 %v1037, %v1209
        %v1211 = vpop.f32.mrb[0].mxu0
        %1212 = vmatprep.mubr.f32.mxu0 0.0
        %1213 = vmatmul.mubr.f32.gmra.mrb[0].mxu0 %v766
        %v1214 = vpop.f32.mrb[0].mxu0
        %v1215 = vadd.f32 %v1041, %v1214
        %v1216 = vpop.f32.mrb[0].mxu0
        %1217 = vmatprep.mubr.f32.mxu0 0.0
        %1218 = vmatmul.mubr.f32.gmra.mrb[0].mxu0 %v767
        %v1219 = vpop.f32.mrb[0].mxu0
        %v1220 = vadd.f32 %v1045, %v1219
        %v1221 = vpop.f32.mrb[0].mxu0
        %1222 = vmatprep.mubr.f32.mxu0 0.0
        %1223 = vmatmul.mubr.f32.gmra.mrb[0].mxu0 %v768
        %v1224 = vpop.f32.mrb[0].mxu0
        %v1225 = vadd.f32 %v985, %v1224
        %v1226 = vpop.f32.mrb[0].mxu0
        %1227 = vmatprep.mubr.f32.mxu0 0.0
        %1228 = vmatmul.mubr.f32.gmra.mrb[0].mxu0 %v769
        %v1229 = vpop.f32.mrb[0].mxu0
        %v1230 = vadd.f32 %v989, %v1229
        %v1231 = vpop.f32.mrb[0].mxu0
        %1232 = vmatprep.mubr.f32.mxu0 0.0
        %1233 = vmatmul.mubr.f32.gmra.mrb[0].mxu0 %v770
        %v1234 = vpop.f32.mrb[0].mxu0
        %v1235 = vadd.f32 %v993, %v1234
        %v1236 = vpop.f32.mrb[0].mxu0
        %1237 = vmatprep.mubr.f32.mxu0 0.0
        %1238 = vmatmul.mubr.f32.gmra.mrb[0].mxu0 %v771
        %v1239 = vpop.f32.mrb[0].mxu0
        %v1240 = vadd.f32 %v997, %v1239
        %v1241 = vpop.f32.mrb[0].mxu0
        %1242 = vmatprep.mubr.f32.mxu0 0.0
        %1243 = vmatmul.mubr.f32.gmra.mrb[0].mxu0 %v772
        %v1244 = vpop.f32.mrb[0].mxu0
        %v1245 = vadd.f32 %v1001, %v1244
        %v1246 = vpop.f32.mrb[0].mxu0
        %1247 = vmatprep.mubr.f32.mxu0 0.0
        %1248 = vmatmul.mubr.f32.gmra.mrb[0].mxu0 %v773
        %v1249 = vpop.f32.mrb[0].mxu0
        %v1250 = vadd.f32 %v1005, %v1249
        %v1251 = vpop.f32.mrb[0].mxu0
        %1252 = vmatprep.mubr.f32.mxu0 0.0
        %1253 = vmatmul.mubr.f32.gmra.mrb[0].mxu0 %v774
        %v1254 = vpop.f32.mrb[0].mxu0
        %v1255 = vadd.f32 %v1009, %v1254
        %v1256 = vpop.f32.mrb[0].mxu0
        %1257 = vmatprep.mubr.f32.mxu0 0.0
        %1258 = vmatmul.mubr.f32.gmra.mrb[0].mxu0 %v775
        %v1259 = vpop.f32.mrb[0].mxu0
        %v1260 = vadd.f32 %v1013, %v1259
        %v1261 = vpop.f32.mrb[0].mxu0
        %1262 = vmatprep.mubr.f32.mxu0 0.0
        %1263 = vmatmul.mubr.f32.gmra.mrb[0].mxu0 %v776
        %v1264 = vpop.f32.mrb[0].mxu0
        %v1265 = vadd.f32 %v1017, %v1264
        %v1266 = vpop.f32.mrb[0].mxu0
        %1267 = vmatprep.mubr.f32.mxu0 0.0
        %1268 = vmatmul.mubr.f32.gmra.mrb[0].mxu0 %v777
        %v1269 = vpop.f32.mrb[0].mxu0
        %v1270 = vadd.f32 %v1021, %v1269
        %v1271 = vpop.f32.mrb[0].mxu0
        %1272 = vmatprep.mubr.f32.mxu0 0.0
        %1273 = vmatmul.mubr.f32.gmra.mrb[0].mxu0 %v778
        %v1274 = vpop.f32.mrb[0].mxu0
        %v1275 = vadd.f32 %v1025, %v1274
        %v1276 = vpop.f32.mrb[0].mxu0
        %1277 = vmatprep.mubr.f32.mxu0 0.0
        %1278 = vmatmul.mubr.f32.gmra.mrb[0].mxu0 %v779
        %v1279 = vpop.f32.mrb[0].mxu0
        %v1280 = vadd.f32 %v1029, %v1279
        %v1281 = vpop.f32.mrb[0].mxu0
        %1282 = vmatprep.mubr.f32.mxu0 0.0
        %1283 = vmatmul.mubr.f32.gmra.mrb[0].mxu0 %v780
        %v1284 = vpop.f32.mrb[0].mxu0
        %v1285 = vadd.f32 %v1033, %v1284
        %v1286 = vpop.f32.mrb[0].mxu0
        %1287 = vmatprep.mubr.f32.mxu0 0.0
        %1288 = vmatmul.mubr.f32.gmra.mrb[0].mxu0 %v781
        %v1289 = vpop.f32.mrb[0].mxu0
        %v1290 = vadd.f32 %v1037, %v1289
        %v1291 = vpop.f32.mrb[0].mxu0
        %1292 = vmatprep.mubr.f32.mxu0 0.0
        %1293 = vmatmul.mubr.f32.gmra.mrb[0].mxu0 %v782
        %v1294 = vpop.f32.mrb[0].mxu0
        %v1295 = vadd.f32 %v1041, %v1294
        %v1296 = vpop.f32.mrb[0].mxu0
        %1297 = vmatprep.mubr.f32.mxu0 0.0
        %1298 = vmatmul.mubr.f32.gmra.mrb[0].mxu0 %v783
        %v1299 = vpop.f32.mrb[0].mxu0
        %v1300 = vadd.f32 %v1045, %v1299
        %v1301 = vpop.f32.mrb[0].mxu0
        %1302 = vdwg.mxu0
        %v1303 = vmax.f32 %v1145, 0.0
        %v1304 = vmax.f32 %v1150, 0.0
        %v1305 = vmax.f32 %v1155, 0.0
        %v1306 = vmax.f32 %v1160, 0.0
        %v1307 = vmax.f32 %v1165, 0.0
        %v1308 = vmax.f32 %v1170, 0.0
        %v1309 = vmax.f32 %v1175, 0.0
        %v1310 = vmax.f32 %v1180, 0.0
        %v1311 = vmax.f32 %v1185, 0.0
        %v1312 = vmax.f32 %v1190, 0.0
        %v1313 = vmax.f32 %v1195, 0.0
        %v1314 = vmax.f32 %v1200, 0.0
        %v1315 = vmax.f32 %v1205, 0.0
        %v1316 = vmax.f32 %v1210, 0.0
        %v1317 = vmax.f32 %v1215, 0.0
        %v1318 = vmax.f32 %v1220, 0.0
        %v1319 = vmax.f32 %v1225, 0.0
        %v1320 = vmax.f32 %v1230, 0.0
        %v1321 = vmax.f32 %v1235, 0.0
        %v1322 = vmax.f32 %v1240, 0.0
        %v1323 = vmax.f32 %v1245, 0.0
        %v1324 = vmax.f32 %v1250, 0.0
        %v1325 = vmax.f32 %v1255, 0.0
        %v1326 = vmax.f32 %v1260, 0.0
        %v1327 = vmax.f32 %v1265, 0.0
        %v1328 = vmax.f32 %v1270, 0.0
        %v1329 = vmax.f32 %v1275, 0.0
        %v1330 = vmax.f32 %v1280, 0.0
        %v1331 = vmax.f32 %v1285, 0.0
        %v1332 = vmax.f32 %v1290, 0.0
        %v1333 = vmax.f32 %v1295, 0.0
        %v1334 = vmax.f32 %v1300, 0.0
        %v1335 = vld [vmem:[#allocation8] sm:$0xff]
        %v1336 = vld [vmem:[#allocation8 + $0x8] sm:$0xff]
        %v1337 = vld [vmem:[#allocation8 + $0x10] sm:$0xff]
        %v1338 = vld [vmem:[#allocation8 + $0x18] sm:$0xff]
        %v1339 = vld [vmem:[#allocation8 + $0x20] sm:$0xff]
        %v1340 = vld [vmem:[#allocation8 + $0x28] sm:$0xff]
        %v1341 = vld [vmem:[#allocation8 + $0x30] sm:$0xff]
        %v1342 = vld [vmem:[#allocation8 + $0x38] sm:$0xff]
        %v1343 = vld [vmem:[#allocation8 + $0x40] sm:$0xff]
        %v1344 = vld [vmem:[#allocation8 + $0x48] sm:$0xff]
        %v1345 = vld [vmem:[#allocation8 + $0x50] sm:$0xff]
        %v1346 = vld [vmem:[#allocation8 + $0x58] sm:$0xff]
        %v1347 = vld [vmem:[#allocation8 + $0x60] sm:$0xff]
        %v1348 = vld [vmem:[#allocation8 + $0x68] sm:$0xff]
        %v1349 = vld [vmem:[#allocation8 + $0x70] sm:$0xff]
        %v1350 = vld [vmem:[#allocation8 + $0x78] sm:$0xff]
        %v1351 = vld [vmem:[%s6] sm:$0x1]
        %v1353 = vlaneseq
        %v1354 = vshrl.u32 %v1353, 7
        %v1355 = vsub.s32 0, %v1354
        %v1356 = vrot.slane %v1351, %v1355
        %1358 = vmatprep.subr.mxu0 0.0
        %1359 = vmatpush1.msra.mxu0 %v1335
        %1360 = vmatprep.subr.mxu0 0.0
        %1361 = vmatpush1.msra.mxu0 %v1336
        %1362 = vmatprep.subr.mxu0 0.0
        %1363 = vmatpush1.msra.mxu0 %v1337
        %1364 = vmatprep.subr.mxu0 0.0
        %1365 = vmatpush1.msra.mxu0 %v1338
        %1366 = vmatprep.subr.mxu0 0.0
        %1367 = vmatpush1.msra.mxu0 %v1339
        %1368 = vmatprep.subr.mxu0 0.0
        %1369 = vmatpush1.msra.mxu0 %v1340
        %1370 = vmatprep.subr.mxu0 0.0
        %1371 = vmatpush1.msra.mxu0 %v1341
        %1372 = vmatprep.subr.mxu0 0.0
        %1373 = vmatpush1.msra.mxu0 %v1342
        %1374 = vmatprep.subr.mxu0 0.0
        %1375 = vmatpush1.msra.mxu0 %v1343
        %1376 = vmatprep.subr.mxu0 0.0
        %1377 = vmatpush1.msra.mxu0 %v1344
        %1378 = vmatprep.subr.mxu0 0.0
        %1379 = vmatpush1.msra.mxu0 %v1345
        %1380 = vmatprep.subr.mxu0 0.0
        %1381 = vmatpush1.msra.mxu0 %v1346
        %1382 = vmatprep.subr.mxu0 0.0
        %1383 = vmatpush1.msra.mxu0 %v1347
        %1384 = vmatprep.subr.mxu0 0.0
        %1385 = vmatpush1.msra.mxu0 %v1348
        %1386 = vmatprep.subr.mxu0 0.0
        %1387 = vmatpush1.msra.mxu0 %v1349
        %1388 = vmatprep.subr.mxu0 0.0
        %1389 = vmatpush1.msra.mxu0 %v1350
        %1390 = vmatprep.subr.mxu0 0.0
        %1391 = vmatpush1.msra.mxu0 0.0
        %1392 = vmatprep.subr.mxu0 0.0
        %1393 = vmatpush1.msra.mxu0 0.0
        %1394 = vmatprep.subr.mxu0 0.0
        %1395 = vmatpush1.msra.mxu0 0.0
        %1396 = vmatprep.subr.mxu0 0.0
        %1397 = vmatpush1.msra.mxu0 0.0
        %1398 = vmatprep.subr.mxu0 0.0
        %1399 = vmatpush1.msra.mxu0 0.0
        %1400 = vmatprep.subr.mxu0 0.0
        %1401 = vmatpush1.msra.mxu0 0.0
        %1402 = vmatprep.subr.mxu0 0.0
        %1403 = vmatpush1.msra.mxu0 0.0
        %1404 = vmatprep.subr.mxu0 0.0
        %1405 = vmatpush1.msra.mxu0 0.0
        %1406 = vmatprep.subr.mxu0 0.0
        %1407 = vmatpush1.msra.mxu0 0.0
        %1408 = vmatprep.subr.mxu0 0.0
        %1409 = vmatpush1.msra.mxu0 0.0
        %1410 = vmatprep.subr.mxu0 0.0
        %1411 = vmatpush1.msra.mxu0 0.0
        %1412 = vmatprep.subr.mxu0 0.0
        %1413 = vmatpush1.msra.mxu0 0.0
        %1414 = vmatprep.subr.mxu0 0.0
        %1415 = vmatpush1.msra.mxu0 0.0
        %1416 = vmatprep.subr.mxu0 0.0
        %1417 = vmatpush1.msra.mxu0 0.0
        %1418 = vmatprep.subr.mxu0 0.0
        %1419 = vmatpush1.msra.mxu0 0.0
        %1420 = vmatprep.subr.mxu0 0.0
        %1421 = vmatpush1.msra.mxu0 0.0
        %1422 = vmatprep.mubr.f32.mxu0 0.0
        %1423 = vmatmul.mubr.f32.gmra.mrb[0].mxu0 %v1303
        %v1424 = vpop.f32.mrb[0].mxu0
        %v1425 = vadd.f32 %v1356, %v1424
        %v1426 = vpop.f32.mrb[0].mxu0
        %1427 = vmatprep.mubr.f32.mxu0 0.0
        %1428 = vmatmul.mubr.f32.gmra.mrb[0].mxu0 %v1304
        %v1429 = vpop.f32.mrb[0].mxu0
        %v1430 = vadd.f32 %v1356, %v1429
        %v1431 = vpop.f32.mrb[0].mxu0
        %1432 = vmatprep.mubr.f32.mxu0 0.0
        %1433 = vmatmul.mubr.f32.gmra.mrb[0].mxu0 %v1305
        %v1434 = vpop.f32.mrb[0].mxu0
        %v1435 = vadd.f32 %v1356, %v1434
        %v1436 = vpop.f32.mrb[0].mxu0
        %1437 = vmatprep.mubr.f32.mxu0 0.0
        %1438 = vmatmul.mubr.f32.gmra.mrb[0].mxu0 %v1306
        %v1439 = vpop.f32.mrb[0].mxu0
        %v1440 = vadd.f32 %v1356, %v1439
        %v1441 = vpop.f32.mrb[0].mxu0
        %1442 = vmatprep.mubr.f32.mxu0 0.0
        %1443 = vmatmul.mubr.f32.gmra.mrb[0].mxu0 %v1307
        %v1444 = vpop.f32.mrb[0].mxu0
        %v1445 = vadd.f32 %v1356, %v1444
        %v1446 = vpop.f32.mrb[0].mxu0
        %1447 = vmatprep.mubr.f32.mxu0 0.0
        %1448 = vmatmul.mubr.f32.gmra.mrb[0].mxu0 %v1308
        %v1449 = vpop.f32.mrb[0].mxu0
        %v1450 = vadd.f32 %v1356, %v1449
        %v1451 = vpop.f32.mrb[0].mxu0
        %1452 = vmatprep.mubr.f32.mxu0 0.0
        %1453 = vmatmul.mubr.f32.gmra.mrb[0].mxu0 %v1309
        %v1454 = vpop.f32.mrb[0].mxu0
        %v1455 = vadd.f32 %v1356, %v1454
        %v1456 = vpop.f32.mrb[0].mxu0
        %1457 = vmatprep.mubr.f32.mxu0 0.0
        %1458 = vmatmul.mubr.f32.gmra.mrb[0].mxu0 %v1310
        %v1459 = vpop.f32.mrb[0].mxu0
        %v1460 = vadd.f32 %v1356, %v1459
        %v1461 = vpop.f32.mrb[0].mxu0
        %1462 = vmatprep.mubr.f32.mxu0 0.0
        %1463 = vmatmul.mubr.f32.gmra.mrb[0].mxu0 %v1311
        %v1464 = vpop.f32.mrb[0].mxu0
        %v1465 = vadd.f32 %v1356, %v1464
        %v1466 = vpop.f32.mrb[0].mxu0
        %1467 = vmatprep.mubr.f32.mxu0 0.0
        %1468 = vmatmul.mubr.f32.gmra.mrb[0].mxu0 %v1312
        %v1469 = vpop.f32.mrb[0].mxu0
        %v1470 = vadd.f32 %v1356, %v1469
        %v1471 = vpop.f32.mrb[0].mxu0
        %1472 = vmatprep.mubr.f32.mxu0 0.0
        %1473 = vmatmul.mubr.f32.gmra.mrb[0].mxu0 %v1313
        %v1474 = vpop.f32.mrb[0].mxu0
        %v1475 = vadd.f32 %v1356, %v1474
        %v1476 = vpop.f32.mrb[0].mxu0
        %1477 = vmatprep.mubr.f32.mxu0 0.0
        %1478 = vmatmul.mubr.f32.gmra.mrb[0].mxu0 %v1314
        %v1479 = vpop.f32.mrb[0].mxu0
        %v1480 = vadd.f32 %v1356, %v1479
        %v1481 = vpop.f32.mrb[0].mxu0
        %1482 = vmatprep.mubr.f32.mxu0 0.0
        %1483 = vmatmul.mubr.f32.gmra.mrb[0].mxu0 %v1315
        %v1484 = vpop.f32.mrb[0].mxu0
        %v1485 = vadd.f32 %v1356, %v1484
        %v1486 = vpop.f32.mrb[0].mxu0
        %1487 = vmatprep.mubr.f32.mxu0 0.0
        %1488 = vmatmul.mubr.f32.gmra.mrb[0].mxu0 %v1316
        %v1489 = vpop.f32.mrb[0].mxu0
        %v1490 = vadd.f32 %v1356, %v1489
        %v1491 = vpop.f32.mrb[0].mxu0
        %1492 = vmatprep.mubr.f32.mxu0 0.0
        %1493 = vmatmul.mubr.f32.gmra.mrb[0].mxu0 %v1317
        %v1494 = vpop.f32.mrb[0].mxu0
        %v1495 = vadd.f32 %v1356, %v1494
        %v1496 = vpop.f32.mrb[0].mxu0
        %1497 = vmatprep.mubr.f32.mxu0 0.0
        %1498 = vmatmul.mubr.f32.gmra.mrb[0].mxu0 %v1318
        %v1499 = vpop.f32.mrb[0].mxu0
        %v1500 = vadd.f32 %v1356, %v1499
        %v1501 = vpop.f32.mrb[0].mxu0
        %1502 = vmatprep.mubr.f32.mxu0 0.0
        %1503 = vmatmul.mubr.f32.gmra.mrb[0].mxu0 %v1319
        %v1504 = vpop.f32.mrb[0].mxu0
        %v1505 = vadd.f32 %v1356, %v1504
        %v1506 = vpop.f32.mrb[0].mxu0
        %1507 = vmatprep.mubr.f32.mxu0 0.0
        %1508 = vmatmul.mubr.f32.gmra.mrb[0].mxu0 %v1320
        %v1509 = vpop.f32.mrb[0].mxu0
        %v1510 = vadd.f32 %v1356, %v1509
        %v1511 = vpop.f32.mrb[0].mxu0
        %1512 = vmatprep.mubr.f32.mxu0 0.0
        %1513 = vmatmul.mubr.f32.gmra.mrb[0].mxu0 %v1321
        %v1514 = vpop.f32.mrb[0].mxu0
        %v1515 = vadd.f32 %v1356, %v1514
        %v1516 = vpop.f32.mrb[0].mxu0
        %1517 = vmatprep.mubr.f32.mxu0 0.0
        %1518 = vmatmul.mubr.f32.gmra.mrb[0].mxu0 %v1322
        %v1519 = vpop.f32.mrb[0].mxu0
        %v1520 = vadd.f32 %v1356, %v1519
        %v1521 = vpop.f32.mrb[0].mxu0
        %1522 = vmatprep.mubr.f32.mxu0 0.0
        %1523 = vmatmul.mubr.f32.gmra.mrb[0].mxu0 %v1323
        %v1524 = vpop.f32.mrb[0].mxu0
        %v1525 = vadd.f32 %v1356, %v1524
        %v1526 = vpop.f32.mrb[0].mxu0
        %1527 = vmatprep.mubr.f32.mxu0 0.0
        %1528 = vmatmul.mubr.f32.gmra.mrb[0].mxu0 %v1324
        %v1529 = vpop.f32.mrb[0].mxu0
        %v1530 = vadd.f32 %v1356, %v1529
        %v1531 = vpop.f32.mrb[0].mxu0
        %1532 = vmatprep.mubr.f32.mxu0 0.0
        %1533 = vmatmul.mubr.f32.gmra.mrb[0].mxu0 %v1325
        %v1534 = vpop.f32.mrb[0].mxu0
        %v1535 = vadd.f32 %v1356, %v1534
        %v1536 = vpop.f32.mrb[0].mxu0
        %1537 = vmatprep.mubr.f32.mxu0 0.0
        %1538 = vmatmul.mubr.f32.gmra.mrb[0].mxu0 %v1326
        %v1539 = vpop.f32.mrb[0].mxu0
        %v1540 = vadd.f32 %v1356, %v1539
        %v1541 = vpop.f32.mrb[0].mxu0
        %1542 = vmatprep.mubr.f32.mxu0 0.0
        %1543 = vmatmul.mubr.f32.gmra.mrb[0].mxu0 %v1327
        %v1544 = vpop.f32.mrb[0].mxu0
        %v1545 = vadd.f32 %v1356, %v1544
        %v1546 = vpop.f32.mrb[0].mxu0
        %1547 = vmatprep.mubr.f32.mxu0 0.0
        %1548 = vmatmul.mubr.f32.gmra.mrb[0].mxu0 %v1328
        %v1549 = vpop.f32.mrb[0].mxu0
        %v1550 = vadd.f32 %v1356, %v1549
        %v1551 = vpop.f32.mrb[0].mxu0
        %1552 = vmatprep.mubr.f32.mxu0 0.0
        %1553 = vmatmul.mubr.f32.gmra.mrb[0].mxu0 %v1329
        %v1554 = vpop.f32.mrb[0].mxu0
        %v1555 = vadd.f32 %v1356, %v1554
        %v1556 = vpop.f32.mrb[0].mxu0
        %1557 = vmatprep.mubr.f32.mxu0 0.0
        %1558 = vmatmul.mubr.f32.gmra.mrb[0].mxu0 %v1330
        %v1559 = vpop.f32.mrb[0].mxu0
        %v1560 = vadd.f32 %v1356, %v1559
        %v1561 = vpop.f32.mrb[0].mxu0
        %1562 = vmatprep.mubr.f32.mxu0 0.0
        %1563 = vmatmul.mubr.f32.gmra.mrb[0].mxu0 %v1331
        %v1564 = vpop.f32.mrb[0].mxu0
        %v1565 = vadd.f32 %v1356, %v1564
        %v1566 = vpop.f32.mrb[0].mxu0
        %1567 = vmatprep.mubr.f32.mxu0 0.0
        %1568 = vmatmul.mubr.f32.gmra.mrb[0].mxu0 %v1332
        %v1569 = vpop.f32.mrb[0].mxu0
        %v1570 = vadd.f32 %v1356, %v1569
        %v1571 = vpop.f32.mrb[0].mxu0
        %1572 = vmatprep.mubr.f32.mxu0 0.0
        %1573 = vmatmul.mubr.f32.gmra.mrb[0].mxu0 %v1333
        %v1574 = vpop.f32.mrb[0].mxu0
        %v1575 = vadd.f32 %v1356, %v1574
        %v1576 = vpop.f32.mrb[0].mxu0
        %1577 = vmatprep.mubr.f32.mxu0 0.0
        %1578 = vmatmul.mubr.f32.gmra.mrb[0].mxu0 %v1334
        %v1579 = vpop.f32.mrb[0].mxu0
        %v1580 = vadd.f32 %v1356, %v1579
        %v1581 = vpop.f32.mrb[0].mxu0
        %1582 = vdwg.mxu0
        %v1583 = vmax.f32 %v1425, 0.0
        %v1584 = vmax.f32 %v1430, 0.0
        %v1585 = vmax.f32 %v1435, 0.0
        %v1586 = vmax.f32 %v1440, 0.0
        %v1587 = vmax.f32 %v1445, 0.0
        %v1588 = vmax.f32 %v1450, 0.0
        %v1589 = vmax.f32 %v1455, 0.0
        %v1590 = vmax.f32 %v1460, 0.0
        %v1591 = vmax.f32 %v1465, 0.0
        %v1592 = vmax.f32 %v1470, 0.0
        %v1593 = vmax.f32 %v1475, 0.0
        %v1594 = vmax.f32 %v1480, 0.0
        %v1595 = vmax.f32 %v1485, 0.0
        %v1596 = vmax.f32 %v1490, 0.0
        %v1597 = vmax.f32 %v1495, 0.0
        %v1598 = vmax.f32 %v1500, 0.0
        %v1599 = vmax.f32 %v1505, 0.0
        %v1600 = vmax.f32 %v1510, 0.0
        %v1601 = vmax.f32 %v1515, 0.0
        %v1602 = vmax.f32 %v1520, 0.0
        %v1603 = vmax.f32 %v1525, 0.0
        %v1604 = vmax.f32 %v1530, 0.0
        %v1605 = vmax.f32 %v1535, 0.0
        %v1606 = vmax.f32 %v1540, 0.0
        %v1607 = vmax.f32 %v1545, 0.0
        %v1608 = vmax.f32 %v1550, 0.0
        %v1609 = vmax.f32 %v1555, 0.0
        %v1610 = vmax.f32 %v1560, 0.0
        %v1611 = vmax.f32 %v1565, 0.0
        %v1612 = vmax.f32 %v1570, 0.0
        %v1613 = vmax.f32 %v1575, 0.0
        %v1614 = vmax.f32 %v1580, 0.0
        %v1615 = vld [vmem:[%s7] sm:$0x1]
        %v1617 = vlaneseq
        %v1618 = vshrl.u32 %v1617, 7
        %v1619 = vsub.s32 0, %v1618
        %v1620 = vrot.slane %v1615, %v1619
        %v1622 = vmul.f32 %v1583, %v1620
        %v1623 = vmul.f32 %v1584, %v1620
        %v1624 = vmul.f32 %v1585, %v1620
        %v1625 = vmul.f32 %v1586, %v1620
        %v1626 = vmul.f32 %v1587, %v1620
        %v1627 = vmul.f32 %v1588, %v1620
        %v1628 = vmul.f32 %v1589, %v1620
        %v1629 = vmul.f32 %v1590, %v1620
        %v1630 = vmul.f32 %v1591, %v1620
        %v1631 = vmul.f32 %v1592, %v1620
        %v1632 = vmul.f32 %v1593, %v1620
        %v1633 = vmul.f32 %v1594, %v1620
        %v1634 = vmul.f32 %v1595, %v1620
        %v1635 = vmul.f32 %v1596, %v1620
        %v1636 = vmul.f32 %v1597, %v1620
        %v1637 = vmul.f32 %v1598, %v1620
        %v1638 = vmul.f32 %v1599, %v1620
        %v1639 = vmul.f32 %v1600, %v1620
        %v1640 = vmul.f32 %v1601, %v1620
        %v1641 = vmul.f32 %v1602, %v1620
        %v1642 = vmul.f32 %v1603, %v1620
        %v1643 = vmul.f32 %v1604, %v1620
        %v1644 = vmul.f32 %v1605, %v1620
        %v1645 = vmul.f32 %v1606, %v1620
        %v1646 = vmul.f32 %v1607, %v1620
        %v1647 = vmul.f32 %v1608, %v1620
        %v1648 = vmul.f32 %v1609, %v1620
        %v1649 = vmul.f32 %v1610, %v1620
        %v1650 = vmul.f32 %v1611, %v1620
        %v1651 = vmul.f32 %v1612, %v1620
        %v1652 = vmul.f32 %v1613, %v1620
        %v1653 = vmul.f32 %v1614, %v1620
        %1654 = vadd.xlane.f32.xlu0 %v1622
        %v1655 = vpop.xlane.xlu0 %1654
        %1656 = vadd.xlane.f32.xlu0 %v1623
        %v1657 = vpop.xlane.xlu0 %1656
        %1658 = vadd.xlane.f32.xlu0 %v1624
        %v1659 = vpop.xlane.xlu0 %1658
        %1660 = vadd.xlane.f32.xlu0 %v1625
        %v1661 = vpop.xlane.xlu0 %1660
        %1662 = vadd.xlane.f32.xlu0 %v1626
        %v1663 = vpop.xlane.xlu0 %1662
        %1664 = vadd.xlane.f32.xlu0 %v1627
        %v1665 = vpop.xlane.xlu0 %1664
        %1666 = vadd.xlane.f32.xlu0 %v1628
        %v1667 = vpop.xlane.xlu0 %1666
        %1668 = vadd.xlane.f32.xlu0 %v1629
        %v1669 = vpop.xlane.xlu0 %1668
        %1670 = vadd.xlane.f32.xlu0 %v1630
        %v1671 = vpop.xlane.xlu0 %1670
        %1672 = vadd.xlane.f32.xlu0 %v1631
        %v1673 = vpop.xlane.xlu0 %1672
        %1674 = vadd.xlane.f32.xlu0 %v1632
        %v1675 = vpop.xlane.xlu0 %1674
        %1676 = vadd.xlane.f32.xlu0 %v1633
        %v1677 = vpop.xlane.xlu0 %1676
        %1678 = vadd.xlane.f32.xlu0 %v1634
        %v1679 = vpop.xlane.xlu0 %1678
        %1680 = vadd.xlane.f32.xlu0 %v1635
        %v1681 = vpop.xlane.xlu0 %1680
        %1682 = vadd.xlane.f32.xlu0 %v1636
        %v1683 = vpop.xlane.xlu0 %1682
        %1684 = vadd.xlane.f32.xlu0 %v1637
        %v1685 = vpop.xlane.xlu0 %1684
        %1686 = vadd.xlane.f32.xlu0 %v1638
        %v1687 = vpop.xlane.xlu0 %1686
        %1688 = vadd.xlane.f32.xlu0 %v1639
        %v1689 = vpop.xlane.xlu0 %1688
        %1690 = vadd.xlane.f32.xlu0 %v1640
        %v1691 = vpop.xlane.xlu0 %1690
        %1692 = vadd.xlane.f32.xlu0 %v1641
        %v1693 = vpop.xlane.xlu0 %1692
        %1694 = vadd.xlane.f32.xlu0 %v1642
        %v1695 = vpop.xlane.xlu0 %1694
        %1696 = vadd.xlane.f32.xlu0 %v1643
        %v1697 = vpop.xlane.xlu0 %1696
        %1698 = vadd.xlane.f32.xlu0 %v1644
        %v1699 = vpop.xlane.xlu0 %1698
        %1700 = vadd.xlane.f32.xlu0 %v1645
        %v1701 = vpop.xlane.xlu0 %1700
        %1702 = vadd.xlane.f32.xlu0 %v1646
        %v1703 = vpop.xlane.xlu0 %1702
        %1704 = vadd.xlane.f32.xlu0 %v1647
        %v1705 = vpop.xlane.xlu0 %1704
        %1706 = vadd.xlane.f32.xlu0 %v1648
        %v1707 = vpop.xlane.xlu0 %1706
        %1708 = vadd.xlane.f32.xlu0 %v1649
        %v1709 = vpop.xlane.xlu0 %1708
        %1710 = vadd.xlane.f32.xlu0 %v1650
        %v1711 = vpop.xlane.xlu0 %1710
        %1712 = vadd.xlane.f32.xlu0 %v1651
        %v1713 = vpop.xlane.xlu0 %1712
        %1714 = vadd.xlane.f32.xlu0 %v1652
        %v1715 = vpop.xlane.xlu0 %1714
        %1716 = vadd.xlane.f32.xlu0 %v1653
        %v1717 = vpop.xlane.xlu0 %1716
        %v1718 = vld [vmem:[#allocation2] sm:$0x1]
        %v1720 = vlaneseq
        %v1721 = vshrl.u32 %v1720, 7
        %v1722 = vsub.s32 0, %v1721
        %v1723 = vrot.slane %v1718, %v1722
        %v1725 = vadd.f32 %v1655, %v1723
        %v1726 = vadd.f32 %v1657, %v1723
        %v1727 = vadd.f32 %v1659, %v1723
        %v1728 = vadd.f32 %v1661, %v1723
        %v1729 = vadd.f32 %v1663, %v1723
        %v1730 = vadd.f32 %v1665, %v1723
        %v1731 = vadd.f32 %v1667, %v1723
        %v1732 = vadd.f32 %v1669, %v1723
        %v1733 = vadd.f32 %v1671, %v1723
        %v1734 = vadd.f32 %v1673, %v1723
        %v1735 = vadd.f32 %v1675, %v1723
        %v1736 = vadd.f32 %v1677, %v1723
        %v1737 = vadd.f32 %v1679, %v1723
        %v1738 = vadd.f32 %v1681, %v1723
        %v1739 = vadd.f32 %v1683, %v1723
        %v1740 = vadd.f32 %v1685, %v1723
        %v1741 = vadd.f32 %v1687, %v1723
        %v1742 = vadd.f32 %v1689, %v1723
        %v1743 = vadd.f32 %v1691, %v1723
        %v1744 = vadd.f32 %v1693, %v1723
        %v1745 = vadd.f32 %v1695, %v1723
        %v1746 = vadd.f32 %v1697, %v1723
        %v1747 = vadd.f32 %v1699, %v1723
        %v1748 = vadd.f32 %v1701, %v1723
        %v1749 = vadd.f32 %v1703, %v1723
        %v1750 = vadd.f32 %v1705, %v1723
        %v1751 = vadd.f32 %v1707, %v1723
        %v1752 = vadd.f32 %v1709, %v1723
        %v1753 = vadd.f32 %v1711, %v1723
        %v1754 = vadd.f32 %v1713, %v1723
        %v1755 = vadd.f32 %v1715, %v1723
        %v1756 = vadd.f32 %v1717, %v1723
        %vm1757 = vcmask 7168
        %v1758 = vsel %vm1757, %v1725, -inf
        %v1759 = vrot.slane %v1758, 4
        %v1760 = vmax.f32 %v1758, %v1759
        %v1761 = vrot.slane %v1760, 2
        %v1762 = vmax.f32 %v1760, %v1761
        %v1763 = vrot.slane %v1762, 1
        %v1764 = vmax.f32 %v1762, %v1763
        %v1765 = vsel %vm1757, %v1726, -inf
        %v1766 = vrot.slane %v1765, 4
        %v1767 = vmax.f32 %v1765, %v1766
        %v1768 = vrot.slane %v1767, 2
        %v1769 = vmax.f32 %v1767, %v1768
        %v1770 = vrot.slane %v1769, 1
        %v1771 = vmax.f32 %v1769, %v1770
        %v1772 = vsel %vm1757, %v1727, -inf
        %v1773 = vrot.slane %v1772, 4
        %v1774 = vmax.f32 %v1772, %v1773
        %v1775 = vrot.slane %v1774, 2
        %v1776 = vmax.f32 %v1774, %v1775
        %v1777 = vrot.slane %v1776, 1
        %v1778 = vmax.f32 %v1776, %v1777
        %v1779 = vsel %vm1757, %v1728, -inf
        %v1780 = vrot.slane %v1779, 4
        %v1781 = vmax.f32 %v1779, %v1780
        %v1782 = vrot.slane %v1781, 2
        %v1783 = vmax.f32 %v1781, %v1782
        %v1784 = vrot.slane %v1783, 1
        %v1785 = vmax.f32 %v1783, %v1784
        %v1786 = vsel %vm1757, %v1729, -inf
        %v1787 = vrot.slane %v1786, 4
        %v1788 = vmax.f32 %v1786, %v1787
        %v1789 = vrot.slane %v1788, 2
        %v1790 = vmax.f32 %v1788, %v1789
        %v1791 = vrot.slane %v1790, 1
        %v1792 = vmax.f32 %v1790, %v1791
        %v1793 = vsel %vm1757, %v1730, -inf
        %v1794 = vrot.slane %v1793, 4
        %v1795 = vmax.f32 %v1793, %v1794
        %v1796 = vrot.slane %v1795, 2
        %v1797 = vmax.f32 %v1795, %v1796
        %v1798 = vrot.slane %v1797, 1
        %v1799 = vmax.f32 %v1797, %v1798
        %v1800 = vsel %vm1757, %v1731, -inf
        %v1801 = vrot.slane %v1800, 4
        %v1802 = vmax.f32 %v1800, %v1801
        %v1803 = vrot.slane %v1802, 2
        %v1804 = vmax.f32 %v1802, %v1803
        %v1805 = vrot.slane %v1804, 1
        %v1806 = vmax.f32 %v1804, %v1805
        %v1807 = vsel %vm1757, %v1732, -inf
        %v1808 = vrot.slane %v1807, 4
        %v1809 = vmax.f32 %v1807, %v1808
        %v1810 = vrot.slane %v1809, 2
        %v1811 = vmax.f32 %v1809, %v1810
        %v1812 = vrot.slane %v1811, 1
        %v1813 = vmax.f32 %v1811, %v1812
        %v1814 = vsel %vm1757, %v1733, -inf
        %v1815 = vrot.slane %v1814, 4
        %v1816 = vmax.f32 %v1814, %v1815
        %v1817 = vrot.slane %v1816, 2
        %v1818 = vmax.f32 %v1816, %v1817
        %v1819 = vrot.slane %v1818, 1
        %v1820 = vmax.f32 %v1818, %v1819
        %v1821 = vsel %vm1757, %v1734, -inf
        %v1822 = vrot.slane %v1821, 4
        %v1823 = vmax.f32 %v1821, %v1822
        %v1824 = vrot.slane %v1823, 2
        %v1825 = vmax.f32 %v1823, %v1824
        %v1826 = vrot.slane %v1825, 1
        %v1827 = vmax.f32 %v1825, %v1826
        %v1828 = vsel %vm1757, %v1735, -inf
        %v1829 = vrot.slane %v1828, 4
        %v1830 = vmax.f32 %v1828, %v1829
        %v1831 = vrot.slane %v1830, 2
        %v1832 = vmax.f32 %v1830, %v1831
        %v1833 = vrot.slane %v1832, 1
        %v1834 = vmax.f32 %v1832, %v1833
        %v1835 = vsel %vm1757, %v1736, -inf
        %v1836 = vrot.slane %v1835, 4
        %v1837 = vmax.f32 %v1835, %v1836
        %v1838 = vrot.slane %v1837, 2
        %v1839 = vmax.f32 %v1837, %v1838
        %v1840 = vrot.slane %v1839, 1
        %v1841 = vmax.f32 %v1839, %v1840
        %v1842 = vsel %vm1757, %v1737, -inf
        %v1843 = vrot.slane %v1842, 4
        %v1844 = vmax.f32 %v1842, %v1843
        %v1845 = vrot.slane %v1844, 2
        %v1846 = vmax.f32 %v1844, %v1845
        %v1847 = vrot.slane %v1846, 1
        %v1848 = vmax.f32 %v1846, %v1847
        %v1849 = vsel %vm1757, %v1738, -inf
        %v1850 = vrot.slane %v1849, 4
        %v1851 = vmax.f32 %v1849, %v1850
        %v1852 = vrot.slane %v1851, 2
        %v1853 = vmax.f32 %v1851, %v1852
        %v1854 = vrot.slane %v1853, 1
        %v1855 = vmax.f32 %v1853, %v1854
        %v1856 = vsel %vm1757, %v1739, -inf
        %v1857 = vrot.slane %v1856, 4
        %v1858 = vmax.f32 %v1856, %v1857
        %v1859 = vrot.slane %v1858, 2
        %v1860 = vmax.f32 %v1858, %v1859
        %v1861 = vrot.slane %v1860, 1
        %v1862 = vmax.f32 %v1860, %v1861
        %v1863 = vsel %vm1757, %v1740, -inf
        %v1864 = vrot.slane %v1863, 4
        %v1865 = vmax.f32 %v1863, %v1864
        %v1866 = vrot.slane %v1865, 2
        %v1867 = vmax.f32 %v1865, %v1866
        %v1868 = vrot.slane %v1867, 1
        %v1869 = vmax.f32 %v1867, %v1868
        %v1870 = vsel %vm1757, %v1741, -inf
        %v1871 = vrot.slane %v1870, 4
        %v1872 = vmax.f32 %v1870, %v1871
        %v1873 = vrot.slane %v1872, 2
        %v1874 = vmax.f32 %v1872, %v1873
        %v1875 = vrot.slane %v1874, 1
        %v1876 = vmax.f32 %v1874, %v1875
        %v1877 = vsel %vm1757, %v1742, -inf
        %v1878 = vrot.slane %v1877, 4
        %v1879 = vmax.f32 %v1877, %v1878
        %v1880 = vrot.slane %v1879, 2
        %v1881 = vmax.f32 %v1879, %v1880
        %v1882 = vrot.slane %v1881, 1
        %v1883 = vmax.f32 %v1881, %v1882
        %v1884 = vsel %vm1757, %v1743, -inf
        %v1885 = vrot.slane %v1884, 4
        %v1886 = vmax.f32 %v1884, %v1885
        %v1887 = vrot.slane %v1886, 2
        %v1888 = vmax.f32 %v1886, %v1887
        %v1889 = vrot.slane %v1888, 1
        %v1890 = vmax.f32 %v1888, %v1889
        %v1891 = vsel %vm1757, %v1744, -inf
        %v1892 = vrot.slane %v1891, 4
        %v1893 = vmax.f32 %v1891, %v1892
        %v1894 = vrot.slane %v1893, 2
        %v1895 = vmax.f32 %v1893, %v1894
        %v1896 = vrot.slane %v1895, 1
        %v1897 = vmax.f32 %v1895, %v1896
        %v1898 = vsel %vm1757, %v1745, -inf
        %v1899 = vrot.slane %v1898, 4
        %v1900 = vmax.f32 %v1898, %v1899
        %v1901 = vrot.slane %v1900, 2
        %v1902 = vmax.f32 %v1900, %v1901
        %v1903 = vrot.slane %v1902, 1
        %v1904 = vmax.f32 %v1902, %v1903
        %v1905 = vsel %vm1757, %v1746, -inf
        %v1906 = vrot.slane %v1905, 4
        %v1907 = vmax.f32 %v1905, %v1906
        %v1908 = vrot.slane %v1907, 2
        %v1909 = vmax.f32 %v1907, %v1908
        %v1910 = vrot.slane %v1909, 1
        %v1911 = vmax.f32 %v1909, %v1910
        %v1912 = vsel %vm1757, %v1747, -inf
        %v1913 = vrot.slane %v1912, 4
        %v1914 = vmax.f32 %v1912, %v1913
        %v1915 = vrot.slane %v1914, 2
        %v1916 = vmax.f32 %v1914, %v1915
        %v1917 = vrot.slane %v1916, 1
        %v1918 = vmax.f32 %v1916, %v1917
        %v1919 = vsel %vm1757, %v1748, -inf
        %v1920 = vrot.slane %v1919, 4
        %v1921 = vmax.f32 %v1919, %v1920
        %v1922 = vrot.slane %v1921, 2
        %v1923 = vmax.f32 %v1921, %v1922
        %v1924 = vrot.slane %v1923, 1
        %v1925 = vmax.f32 %v1923, %v1924
        %v1926 = vsel %vm1757, %v1749, -inf
        %v1927 = vrot.slane %v1926, 4
        %v1928 = vmax.f32 %v1926, %v1927
        %v1929 = vrot.slane %v1928, 2
        %v1930 = vmax.f32 %v1928, %v1929
        %v1931 = vrot.slane %v1930, 1
        %v1932 = vmax.f32 %v1930, %v1931
        %v1933 = vsel %vm1757, %v1750, -inf
        %v1934 = vrot.slane %v1933, 4
        %v1935 = vmax.f32 %v1933, %v1934
        %v1936 = vrot.slane %v1935, 2
        %v1937 = vmax.f32 %v1935, %v1936
        %v1938 = vrot.slane %v1937, 1
        %v1939 = vmax.f32 %v1937, %v1938
        %v1940 = vsel %vm1757, %v1751, -inf
        %v1941 = vrot.slane %v1940, 4
        %v1942 = vmax.f32 %v1940, %v1941
        %v1943 = vrot.slane %v1942, 2
        %v1944 = vmax.f32 %v1942, %v1943
        %v1945 = vrot.slane %v1944, 1
        %v1946 = vmax.f32 %v1944, %v1945
        %v1947 = vsel %vm1757, %v1752, -inf
        %v1948 = vrot.slane %v1947, 4
        %v1949 = vmax.f32 %v1947, %v1948
        %v1950 = vrot.slane %v1949, 2
        %v1951 = vmax.f32 %v1949, %v1950
        %v1952 = vrot.slane %v1951, 1
        %v1953 = vmax.f32 %v1951, %v1952
        %v1954 = vsel %vm1757, %v1753, -inf
        %v1955 = vrot.slane %v1954, 4
        %v1956 = vmax.f32 %v1954, %v1955
        %v1957 = vrot.slane %v1956, 2
        %v1958 = vmax.f32 %v1956, %v1957
        %v1959 = vrot.slane %v1958, 1
        %v1960 = vmax.f32 %v1958, %v1959
        %v1961 = vsel %vm1757, %v1754, -inf
        %v1962 = vrot.slane %v1961, 4
        %v1963 = vmax.f32 %v1961, %v1962
        %v1964 = vrot.slane %v1963, 2
        %v1965 = vmax.f32 %v1963, %v1964
        %v1966 = vrot.slane %v1965, 1
        %v1967 = vmax.f32 %v1965, %v1966
        %v1968 = vsel %vm1757, %v1755, -inf
        %v1969 = vrot.slane %v1968, 4
        %v1970 = vmax.f32 %v1968, %v1969
        %v1971 = vrot.slane %v1970, 2
        %v1972 = vmax.f32 %v1970, %v1971
        %v1973 = vrot.slane %v1972, 1
        %v1974 = vmax.f32 %v1972, %v1973
        %v1975 = vsel %vm1757, %v1756, -inf
        %v1976 = vrot.slane %v1975, 4
        %v1977 = vmax.f32 %v1975, %v1976
        %v1978 = vrot.slane %v1977, 2
        %v1979 = vmax.f32 %v1977, %v1978
        %v1980 = vrot.slane %v1979, 1
        %v1981 = vmax.f32 %v1979, %v1980
        %v1982 = vsub.f32 %v1725, %v1764
        %v1983 = vsub.f32 %v1726, %v1771
        %v1984 = vsub.f32 %v1727, %v1778
        %v1985 = vsub.f32 %v1728, %v1785
        %v1986 = vsub.f32 %v1729, %v1792
        %v1987 = vsub.f32 %v1730, %v1799
        %v1988 = vsub.f32 %v1731, %v1806
        %v1989 = vsub.f32 %v1732, %v1813
        %v1990 = vsub.f32 %v1733, %v1820
        %v1991 = vsub.f32 %v1734, %v1827
        %v1992 = vsub.f32 %v1735, %v1834
        %v1993 = vsub.f32 %v1736, %v1841
        %v1994 = vsub.f32 %v1737, %v1848
        %v1995 = vsub.f32 %v1738, %v1855
        %v1996 = vsub.f32 %v1739, %v1862
        %v1997 = vsub.f32 %v1740, %v1869
        %v1998 = vsub.f32 %v1741, %v1876
        %v1999 = vsub.f32 %v1742, %v1883
        %v2000 = vsub.f32 %v1743, %v1890
        %v2001 = vsub.f32 %v1744, %v1897
        %v2002 = vsub.f32 %v1745, %v1904
        %v2003 = vsub.f32 %v1746, %v1911
        %v2004 = vsub.f32 %v1747, %v1918
        %v2005 = vsub.f32 %v1748, %v1925
        %v2006 = vsub.f32 %v1749, %v1932
        %v2007 = vsub.f32 %v1750, %v1939
        %v2008 = vsub.f32 %v1751, %v1946
        %v2009 = vsub.f32 %v1752, %v1953
        %v2010 = vsub.f32 %v1753, %v1960
        %v2011 = vsub.f32 %v1754, %v1967
        %v2012 = vsub.f32 %v1755, %v1974
        %v2013 = vsub.f32 %v1756, %v1981
        %v2014 = vmul.f32 %v1982, 1.442695
        %v2015 = vpow.pop %v2014
        %v2016 = vmul.f32 %v1983, 1.442695
        %v2017 = vpow.pop %v2016
        %v2018 = vmul.f32 %v1984, 1.442695
        %v2019 = vpow.pop %v2018
        %v2020 = vmul.f32 %v1985, 1.442695
        %v2021 = vpow.pop %v2020
        %v2022 = vmul.f32 %v1986, 1.442695
        %v2023 = vpow.pop %v2022
        %v2024 = vmul.f32 %v1987, 1.442695
        %v2025 = vpow.pop %v2024
        %v2026 = vmul.f32 %v1988, 1.442695
        %v2027 = vpow.pop %v2026
        %v2028 = vmul.f32 %v1989, 1.442695
        %v2029 = vpow.pop %v2028
        %v2030 = vmul.f32 %v1990, 1.442695
        %v2031 = vpow.pop %v2030
        %v2032 = vmul.f32 %v1991, 1.442695
        %v2033 = vpow.pop %v2032
        %v2034 = vmul.f32 %v1992, 1.442695
        %v2035 = vpow.pop %v2034
        %v2036 = vmul.f32 %v1993, 1.442695
        %v2037 = vpow.pop %v2036
        %v2038 = vmul.f32 %v1994, 1.442695
        %v2039 = vpow.pop %v2038
        %v2040 = vmul.f32 %v1995, 1.442695
        %v2041 = vpow.pop %v2040
        %v2042 = vmul.f32 %v1996, 1.442695
        %v2043 = vpow.pop %v2042
        %v2044 = vmul.f32 %v1997, 1.442695
        %v2045 = vpow.pop %v2044
        %v2046 = vmul.f32 %v1998, 1.442695
        %v2047 = vpow.pop %v2046
        %v2048 = vmul.f32 %v1999, 1.442695
        %v2049 = vpow.pop %v2048
        %v2050 = vmul.f32 %v2000, 1.442695
        %v2051 = vpow.pop %v2050
        %v2052 = vmul.f32 %v2001, 1.442695
        %v2053 = vpow.pop %v2052
        %v2054 = vmul.f32 %v2002, 1.442695
        %v2055 = vpow.pop %v2054
        %v2056 = vmul.f32 %v2003, 1.442695
        %v2057 = vpow.pop %v2056
        %v2058 = vmul.f32 %v2004, 1.442695
        %v2059 = vpow.pop %v2058
        %v2060 = vmul.f32 %v2005, 1.442695
        %v2061 = vpow.pop %v2060
        %v2062 = vmul.f32 %v2006, 1.442695
        %v2063 = vpow.pop %v2062
        %v2064 = vmul.f32 %v2007, 1.442695
        %v2065 = vpow.pop %v2064
        %v2066 = vmul.f32 %v2008, 1.442695
        %v2067 = vpow.pop %v2066
        %v2068 = vmul.f32 %v2009, 1.442695
        %v2069 = vpow.pop %v2068
        %v2070 = vmul.f32 %v2010, 1.442695
        %v2071 = vpow.pop %v2070
        %v2072 = vmul.f32 %v2011, 1.442695
        %v2073 = vpow.pop %v2072
        %v2074 = vmul.f32 %v2012, 1.442695
        %v2075 = vpow.pop %v2074
        %v2076 = vmul.f32 %v2013, 1.442695
        %v2077 = vpow.pop %v2076
        %v2078 = vsel %vm1757, %v2015, 0.0
        %v2079 = vrot.slane %v2078, 4
        %v2080 = vadd.f32 %v2078, %v2079
        %v2081 = vrot.slane %v2080, 2
        %v2082 = vadd.f32 %v2080, %v2081
        %v2083 = vrot.slane %v2082, 1
        %v2084 = vadd.f32 %v2082, %v2083
        %v2085 = vsel %vm1757, %v2017, 0.0
        %v2086 = vrot.slane %v2085, 4
        %v2087 = vadd.f32 %v2085, %v2086
        %v2088 = vrot.slane %v2087, 2
        %v2089 = vadd.f32 %v2087, %v2088
        %v2090 = vrot.slane %v2089, 1
        %v2091 = vadd.f32 %v2089, %v2090
        %v2092 = vsel %vm1757, %v2019, 0.0
        %v2093 = vrot.slane %v2092, 4
        %v2094 = vadd.f32 %v2092, %v2093
        %v2095 = vrot.slane %v2094, 2
        %v2096 = vadd.f32 %v2094, %v2095
        %v2097 = vrot.slane %v2096, 1
        %v2098 = vadd.f32 %v2096, %v2097
        %v2099 = vsel %vm1757, %v2021, 0.0
        %v2100 = vrot.slane %v2099, 4
        %v2101 = vadd.f32 %v2099, %v2100
        %v2102 = vrot.slane %v2101, 2
        %v2103 = vadd.f32 %v2101, %v2102
        %v2104 = vrot.slane %v2103, 1
        %v2105 = vadd.f32 %v2103, %v2104
        %v2106 = vsel %vm1757, %v2023, 0.0
        %v2107 = vrot.slane %v2106, 4
        %v2108 = vadd.f32 %v2106, %v2107
        %v2109 = vrot.slane %v2108, 2
        %v2110 = vadd.f32 %v2108, %v2109
        %v2111 = vrot.slane %v2110, 1
        %v2112 = vadd.f32 %v2110, %v2111
        %v2113 = vsel %vm1757, %v2025, 0.0
        %v2114 = vrot.slane %v2113, 4
        %v2115 = vadd.f32 %v2113, %v2114
        %v2116 = vrot.slane %v2115, 2
        %v2117 = vadd.f32 %v2115, %v2116
        %v2118 = vrot.slane %v2117, 1
        %v2119 = vadd.f32 %v2117, %v2118
        %v2120 = vsel %vm1757, %v2027, 0.0
        %v2121 = vrot.slane %v2120, 4
        %v2122 = vadd.f32 %v2120, %v2121
        %v2123 = vrot.slane %v2122, 2
        %v2124 = vadd.f32 %v2122, %v2123
        %v2125 = vrot.slane %v2124, 1
        %v2126 = vadd.f32 %v2124, %v2125
        %v2127 = vsel %vm1757, %v2029, 0.0
        %v2128 = vrot.slane %v2127, 4
        %v2129 = vadd.f32 %v2127, %v2128
        %v2130 = vrot.slane %v2129, 2
        %v2131 = vadd.f32 %v2129, %v2130
        %v2132 = vrot.slane %v2131, 1
        %v2133 = vadd.f32 %v2131, %v2132
        %v2134 = vsel %vm1757, %v2031, 0.0
        %v2135 = vrot.slane %v2134, 4
        %v2136 = vadd.f32 %v2134, %v2135
        %v2137 = vrot.slane %v2136, 2
        %v2138 = vadd.f32 %v2136, %v2137
        %v2139 = vrot.slane %v2138, 1
        %v2140 = vadd.f32 %v2138, %v2139
        %v2141 = vsel %vm1757, %v2033, 0.0
        %v2142 = vrot.slane %v2141, 4
        %v2143 = vadd.f32 %v2141, %v2142
        %v2144 = vrot.slane %v2143, 2
        %v2145 = vadd.f32 %v2143, %v2144
        %v2146 = vrot.slane %v2145, 1
        %v2147 = vadd.f32 %v2145, %v2146
        %v2148 = vsel %vm1757, %v2035, 0.0
        %v2149 = vrot.slane %v2148, 4
        %v2150 = vadd.f32 %v2148, %v2149
        %v2151 = vrot.slane %v2150, 2
        %v2152 = vadd.f32 %v2150, %v2151
        %v2153 = vrot.slane %v2152, 1
        %v2154 = vadd.f32 %v2152, %v2153
        %v2155 = vsel %vm1757, %v2037, 0.0
        %v2156 = vrot.slane %v2155, 4
        %v2157 = vadd.f32 %v2155, %v2156
        %v2158 = vrot.slane %v2157, 2
        %v2159 = vadd.f32 %v2157, %v2158
        %v2160 = vrot.slane %v2159, 1
        %v2161 = vadd.f32 %v2159, %v2160
        %v2162 = vsel %vm1757, %v2039, 0.0
        %v2163 = vrot.slane %v2162, 4
        %v2164 = vadd.f32 %v2162, %v2163
        %v2165 = vrot.slane %v2164, 2
        %v2166 = vadd.f32 %v2164, %v2165
        %v2167 = vrot.slane %v2166, 1
        %v2168 = vadd.f32 %v2166, %v2167
        %v2169 = vsel %vm1757, %v2041, 0.0
        %v2170 = vrot.slane %v2169, 4
        %v2171 = vadd.f32 %v2169, %v2170
        %v2172 = vrot.slane %v2171, 2
        %v2173 = vadd.f32 %v2171, %v2172
        %v2174 = vrot.slane %v2173, 1
        %v2175 = vadd.f32 %v2173, %v2174
        %v2176 = vsel %vm1757, %v2043, 0.0
        %v2177 = vrot.slane %v2176, 4
        %v2178 = vadd.f32 %v2176, %v2177
        %v2179 = vrot.slane %v2178, 2
        %v2180 = vadd.f32 %v2178, %v2179
        %v2181 = vrot.slane %v2180, 1
        %v2182 = vadd.f32 %v2180, %v2181
        %v2183 = vsel %vm1757, %v2045, 0.0
        %v2184 = vrot.slane %v2183, 4
        %v2185 = vadd.f32 %v2183, %v2184
        %v2186 = vrot.slane %v2185, 2
        %v2187 = vadd.f32 %v2185, %v2186
        %v2188 = vrot.slane %v2187, 1
        %v2189 = vadd.f32 %v2187, %v2188
        %v2190 = vsel %vm1757, %v2047, 0.0
        %v2191 = vrot.slane %v2190, 4
        %v2192 = vadd.f32 %v2190, %v2191
        %v2193 = vrot.slane %v2192, 2
        %v2194 = vadd.f32 %v2192, %v2193
        %v2195 = vrot.slane %v2194, 1
        %v2196 = vadd.f32 %v2194, %v2195
        %v2197 = vsel %vm1757, %v2049, 0.0
        %v2198 = vrot.slane %v2197, 4
        %v2199 = vadd.f32 %v2197, %v2198
        %v2200 = vrot.slane %v2199, 2
        %v2201 = vadd.f32 %v2199, %v2200
        %v2202 = vrot.slane %v2201, 1
        %v2203 = vadd.f32 %v2201, %v2202
        %v2204 = vsel %vm1757, %v2051, 0.0
        %v2205 = vrot.slane %v2204, 4
        %v2206 = vadd.f32 %v2204, %v2205
        %v2207 = vrot.slane %v2206, 2
        %v2208 = vadd.f32 %v2206, %v2207
        %v2209 = vrot.slane %v2208, 1
        %v2210 = vadd.f32 %v2208, %v2209
        %v2211 = vsel %vm1757, %v2053, 0.0
        %v2212 = vrot.slane %v2211, 4
        %v2213 = vadd.f32 %v2211, %v2212
        %v2214 = vrot.slane %v2213, 2
        %v2215 = vadd.f32 %v2213, %v2214
        %v2216 = vrot.slane %v2215, 1
        %v2217 = vadd.f32 %v2215, %v2216
        %v2218 = vsel %vm1757, %v2055, 0.0
        %v2219 = vrot.slane %v2218, 4
        %v2220 = vadd.f32 %v2218, %v2219
        %v2221 = vrot.slane %v2220, 2
        %v2222 = vadd.f32 %v2220, %v2221
        %v2223 = vrot.slane %v2222, 1
        %v2224 = vadd.f32 %v2222, %v2223
        %v2225 = vsel %vm1757, %v2057, 0.0
        %v2226 = vrot.slane %v2225, 4
        %v2227 = vadd.f32 %v2225, %v2226
        %v2228 = vrot.slane %v2227, 2
        %v2229 = vadd.f32 %v2227, %v2228
        %v2230 = vrot.slane %v2229, 1
        %v2231 = vadd.f32 %v2229, %v2230
        %v2232 = vsel %vm1757, %v2059, 0.0
        %v2233 = vrot.slane %v2232, 4
        %v2234 = vadd.f32 %v2232, %v2233
        %v2235 = vrot.slane %v2234, 2
        %v2236 = vadd.f32 %v2234, %v2235
        %v2237 = vrot.slane %v2236, 1
        %v2238 = vadd.f32 %v2236, %v2237
        %v2239 = vsel %vm1757, %v2061, 0.0
        %v2240 = vrot.slane %v2239, 4
        %v2241 = vadd.f32 %v2239, %v2240
        %v2242 = vrot.slane %v2241, 2
        %v2243 = vadd.f32 %v2241, %v2242
        %v2244 = vrot.slane %v2243, 1
        %v2245 = vadd.f32 %v2243, %v2244
        %v2246 = vsel %vm1757, %v2063, 0.0
        %v2247 = vrot.slane %v2246, 4
        %v2248 = vadd.f32 %v2246, %v2247
        %v2249 = vrot.slane %v2248, 2
        %v2250 = vadd.f32 %v2248, %v2249
        %v2251 = vrot.slane %v2250, 1
        %v2252 = vadd.f32 %v2250, %v2251
        %v2253 = vsel %vm1757, %v2065, 0.0
        %v2254 = vrot.slane %v2253, 4
        %v2255 = vadd.f32 %v2253, %v2254
        %v2256 = vrot.slane %v2255, 2
        %v2257 = vadd.f32 %v2255, %v2256
        %v2258 = vrot.slane %v2257, 1
        %v2259 = vadd.f32 %v2257, %v2258
        %v2260 = vsel %vm1757, %v2067, 0.0
        %v2261 = vrot.slane %v2260, 4
        %v2262 = vadd.f32 %v2260, %v2261
        %v2263 = vrot.slane %v2262, 2
        %v2264 = vadd.f32 %v2262, %v2263
        %v2265 = vrot.slane %v2264, 1
        %v2266 = vadd.f32 %v2264, %v2265
        %v2267 = vsel %vm1757, %v2069, 0.0
        %v2268 = vrot.slane %v2267, 4
        %v2269 = vadd.f32 %v2267, %v2268
        %v2270 = vrot.slane %v2269, 2
        %v2271 = vadd.f32 %v2269, %v2270
        %v2272 = vrot.slane %v2271, 1
        %v2273 = vadd.f32 %v2271, %v2272
        %v2274 = vsel %vm1757, %v2071, 0.0
        %v2275 = vrot.slane %v2274, 4
        %v2276 = vadd.f32 %v2274, %v2275
        %v2277 = vrot.slane %v2276, 2
        %v2278 = vadd.f32 %v2276, %v2277
        %v2279 = vrot.slane %v2278, 1
        %v2280 = vadd.f32 %v2278, %v2279
        %v2281 = vsel %vm1757, %v2073, 0.0
        %v2282 = vrot.slane %v2281, 4
        %v2283 = vadd.f32 %v2281, %v2282
        %v2284 = vrot.slane %v2283, 2
        %v2285 = vadd.f32 %v2283, %v2284
        %v2286 = vrot.slane %v2285, 1
        %v2287 = vadd.f32 %v2285, %v2286
        %v2288 = vsel %vm1757, %v2075, 0.0
        %v2289 = vrot.slane %v2288, 4
        %v2290 = vadd.f32 %v2288, %v2289
        %v2291 = vrot.slane %v2290, 2
        %v2292 = vadd.f32 %v2290, %v2291
        %v2293 = vrot.slane %v2292, 1
        %v2294 = vadd.f32 %v2292, %v2293
        %v2295 = vsel %vm1757, %v2077, 0.0
        %v2296 = vrot.slane %v2295, 4
        %v2297 = vadd.f32 %v2295, %v2296
        %v2298 = vrot.slane %v2297, 2
        %v2299 = vadd.f32 %v2297, %v2298
        %v2300 = vrot.slane %v2299, 1
        %v2301 = vadd.f32 %v2299, %v2300
        %v2302 = vrcp.pop %v2084
        %v2303 = vmul.f32 %v2015, %v2302
        %v2304 = vrcp.pop %v2091
        %v2305 = vmul.f32 %v2017, %v2304
        %v2306 = vrcp.pop %v2098
        %v2307 = vmul.f32 %v2019, %v2306
        %v2308 = vrcp.pop %v2105
        %v2309 = vmul.f32 %v2021, %v2308
        %v2310 = vrcp.pop %v2112
        %v2311 = vmul.f32 %v2023, %v2310
        %v2312 = vrcp.pop %v2119
        %v2313 = vmul.f32 %v2025, %v2312
        %v2314 = vrcp.pop %v2126
        %v2315 = vmul.f32 %v2027, %v2314
        %v2316 = vrcp.pop %v2133
        %v2317 = vmul.f32 %v2029, %v2316
        %v2318 = vrcp.pop %v2140
        %v2319 = vmul.f32 %v2031, %v2318
        %v2320 = vrcp.pop %v2147
        %v2321 = vmul.f32 %v2033, %v2320
        %v2322 = vrcp.pop %v2154
        %v2323 = vmul.f32 %v2035, %v2322
        %v2324 = vrcp.pop %v2161
        %v2325 = vmul.f32 %v2037, %v2324
        %v2326 = vrcp.pop %v2168
        %v2327 = vmul.f32 %v2039, %v2326
        %v2328 = vrcp.pop %v2175
        %v2329 = vmul.f32 %v2041, %v2328
        %v2330 = vrcp.pop %v2182
        %v2331 = vmul.f32 %v2043, %v2330
        %v2332 = vrcp.pop %v2189
        %v2333 = vmul.f32 %v2045, %v2332
        %v2334 = vrcp.pop %v2196
        %v2335 = vmul.f32 %v2047, %v2334
        %v2336 = vrcp.pop %v2203
        %v2337 = vmul.f32 %v2049, %v2336
        %v2338 = vrcp.pop %v2210
        %v2339 = vmul.f32 %v2051, %v2338
        %v2340 = vrcp.pop %v2217
        %v2341 = vmul.f32 %v2053, %v2340
        %v2342 = vrcp.pop %v2224
        %v2343 = vmul.f32 %v2055, %v2342
        %v2344 = vrcp.pop %v2231
        %v2345 = vmul.f32 %v2057, %v2344
        %v2346 = vrcp.pop %v2238
        %v2347 = vmul.f32 %v2059, %v2346
        %v2348 = vrcp.pop %v2245
        %v2349 = vmul.f32 %v2061, %v2348
        %v2350 = vrcp.pop %v2252
        %v2351 = vmul.f32 %v2063, %v2350
        %v2352 = vrcp.pop %v2259
        %v2353 = vmul.f32 %v2065, %v2352
        %v2354 = vrcp.pop %v2266
        %v2355 = vmul.f32 %v2067, %v2354
        %v2356 = vrcp.pop %v2273
        %v2357 = vmul.f32 %v2069, %v2356
        %v2358 = vrcp.pop %v2280
        %v2359 = vmul.f32 %v2071, %v2358
        %v2360 = vrcp.pop %v2287
        %v2361 = vmul.f32 %v2073, %v2360
        %v2362 = vrcp.pop %v2294
        %v2363 = vmul.f32 %v2075, %v2362
        %v2364 = vrcp.pop %v2301
        %v2365 = vmul.f32 %v2077, %v2364
        %2367 = vset.pattern.permute.xlu0 0
        %2368 = vperm.xlu0 %2367, %v2303
        %v2369 = vpop.permute.xlu0 %2368
        %2372 = vset.pattern.permute.xlu0 0
        %2373 = vperm.xlu0 %2372, %v2305
        %v2374 = vpop.permute.xlu0 %2373
        %2377 = vset.pattern.permute.xlu0 0
        %2378 = vperm.xlu0 %2377, %v2307
        %v2379 = vpop.permute.xlu0 %2378
        %2382 = vset.pattern.permute.xlu0 0
        %2383 = vperm.xlu0 %2382, %v2309
        %v2384 = vpop.permute.xlu0 %2383
        %2387 = vset.pattern.permute.xlu0 0
        %2388 = vperm.xlu0 %2387, %v2311
        %v2389 = vpop.permute.xlu0 %2388
        %2392 = vset.pattern.permute.xlu0 0
        %2393 = vperm.xlu0 %2392, %v2313
        %v2394 = vpop.permute.xlu0 %2393
        %2397 = vset.pattern.permute.xlu0 0
        %2398 = vperm.xlu0 %2397, %v2315
        %v2399 = vpop.permute.xlu0 %2398
        %2402 = vset.pattern.permute.xlu0 0
        %2403 = vperm.xlu0 %2402, %v2317
        %v2404 = vpop.permute.xlu0 %2403
        %2407 = vset.pattern.permute.xlu0 0
        %2408 = vperm.xlu0 %2407, %v2319
        %v2409 = vpop.permute.xlu0 %2408
        %2412 = vset.pattern.permute.xlu0 0
        %2413 = vperm.xlu0 %2412, %v2321
        %v2414 = vpop.permute.xlu0 %2413
        %2417 = vset.pattern.permute.xlu0 0
        %2418 = vperm.xlu0 %2417, %v2323
        %v2419 = vpop.permute.xlu0 %2418
        %2422 = vset.pattern.permute.xlu0 0
        %2423 = vperm.xlu0 %2422, %v2325
        %v2424 = vpop.permute.xlu0 %2423
        %2427 = vset.pattern.permute.xlu0 0
        %2428 = vperm.xlu0 %2427, %v2327
        %v2429 = vpop.permute.xlu0 %2428
        %2432 = vset.pattern.permute.xlu0 0
        %2433 = vperm.xlu0 %2432, %v2329
        %v2434 = vpop.permute.xlu0 %2433
        %2437 = vset.pattern.permute.xlu0 0
        %2438 = vperm.xlu0 %2437, %v2331
        %v2439 = vpop.permute.xlu0 %2438
        %2442 = vset.pattern.permute.xlu0 0
        %2443 = vperm.xlu0 %2442, %v2333
        %v2444 = vpop.permute.xlu0 %2443
        %2447 = vset.pattern.permute.xlu0 0
        %2448 = vperm.xlu0 %2447, %v2335
        %v2449 = vpop.permute.xlu0 %2448
        %2452 = vset.pattern.permute.xlu0 0
        %2453 = vperm.xlu0 %2452, %v2337
        %v2454 = vpop.permute.xlu0 %2453
        %2457 = vset.pattern.permute.xlu0 0
        %2458 = vperm.xlu0 %2457, %v2339
        %v2459 = vpop.permute.xlu0 %2458
        %2462 = vset.pattern.permute.xlu0 0
        %2463 = vperm.xlu0 %2462, %v2341
        %v2464 = vpop.permute.xlu0 %2463
        %2467 = vset.pattern.permute.xlu0 0
        %2468 = vperm.xlu0 %2467, %v2343
        %v2469 = vpop.permute.xlu0 %2468
        %2472 = vset.pattern.permute.xlu0 0
        %2473 = vperm.xlu0 %2472, %v2345
        %v2474 = vpop.permute.xlu0 %2473
        %2477 = vset.pattern.permute.xlu0 0
        %2478 = vperm.xlu0 %2477, %v2347
        %v2479 = vpop.permute.xlu0 %2478
        %2482 = vset.pattern.permute.xlu0 0
        %2483 = vperm.xlu0 %2482, %v2349
        %v2484 = vpop.permute.xlu0 %2483
        %2487 = vset.pattern.permute.xlu0 0
        %2488 = vperm.xlu0 %2487, %v2351
        %v2489 = vpop.permute.xlu0 %2488
        %2492 = vset.pattern.permute.xlu0 0
        %2493 = vperm.xlu0 %2492, %v2353
        %v2494 = vpop.permute.xlu0 %2493
        %2497 = vset.pattern.permute.xlu0 0
        %2498 = vperm.xlu0 %2497, %v2355
        %v2499 = vpop.permute.xlu0 %2498
        %2502 = vset.pattern.permute.xlu0 0
        %2503 = vperm.xlu0 %2502, %v2357
        %v2504 = vpop.permute.xlu0 %2503
        %2507 = vset.pattern.permute.xlu0 0
        %2508 = vperm.xlu0 %2507, %v2359
        %v2509 = vpop.permute.xlu0 %2508
        %2512 = vset.pattern.permute.xlu0 0
        %2513 = vperm.xlu0 %2512, %v2361
        %v2514 = vpop.permute.xlu0 %2513
        %2517 = vset.pattern.permute.xlu0 0
        %2518 = vperm.xlu0 %2517, %v2363
        %v2519 = vpop.permute.xlu0 %2518
        %2522 = vset.pattern.permute.xlu0 0
        %2523 = vperm.xlu0 %2522, %v2365
        %v2524 = vpop.permute.xlu0 %2523
        %v2526 = vmul.f32 %v2369, %v752
        %v2527 = vmul.f32 %v2374, %v753
        %v2528 = vmul.f32 %v2379, %v754
        %v2529 = vmul.f32 %v2384, %v755
        %v2530 = vmul.f32 %v2389, %v756
        %v2531 = vmul.f32 %v2394, %v757
        %v2532 = vmul.f32 %v2399, %v758
        %v2533 = vmul.f32 %v2404, %v759
        %v2534 = vmul.f32 %v2409, %v760
        %v2535 = vmul.f32 %v2414, %v761
        %v2536 = vmul.f32 %v2419, %v762
        %v2537 = vmul.f32 %v2424, %v763
        %v2538 = vmul.f32 %v2429, %v764
        %v2539 = vmul.f32 %v2434, %v765
        %v2540 = vmul.f32 %v2439, %v766
        %v2541 = vmul.f32 %v2444, %v767
        %v2542 = vmul.f32 %v2449, %v768
        %v2543 = vmul.f32 %v2454, %v769
        %v2544 = vmul.f32 %v2459, %v770
        %v2545 = vmul.f32 %v2464, %v771
        %v2546 = vmul.f32 %v2469, %v772
        %v2547 = vmul.f32 %v2474, %v773
        %v2548 = vmul.f32 %v2479, %v774
        %v2549 = vmul.f32 %v2484, %v775
        %v2550 = vmul.f32 %v2489, %v776
        %v2551 = vmul.f32 %v2494, %v777
        %v2552 = vmul.f32 %v2499, %v778
        %v2553 = vmul.f32 %v2504, %v779
        %v2554 = vmul.f32 %v2509, %v780
        %v2555 = vmul.f32 %v2514, %v781
        %v2556 = vmul.f32 %v2519, %v782
        %v2557 = vmul.f32 %v2524, %v783
        %v2558 = vrot.slane %v2526, 4
        %v2559 = vadd.f32 %v2526, %v2558
        %v2560 = vrot.slane %v2559, 2
        %v2561 = vadd.f32 %v2559, %v2560
        %v2562 = vrot.slane %v2561, 1
        %v2563 = vadd.f32 %v2561, %v2562
        %v2564 = vrot.slane %v2527, 4
        %v2565 = vadd.f32 %v2527, %v2564
        %v2566 = vrot.slane %v2565, 2
        %v2567 = vadd.f32 %v2565, %v2566
        %v2568 = vrot.slane %v2567, 1
        %v2569 = vadd.f32 %v2567, %v2568
        %v2570 = vrot.slane %v2528, 4
        %v2571 = vadd.f32 %v2528, %v2570
        %v2572 = vrot.slane %v2571, 2
        %v2573 = vadd.f32 %v2571, %v2572
        %v2574 = vrot.slane %v2573, 1
        %v2575 = vadd.f32 %v2573, %v2574
        %v2576 = vrot.slane %v2529, 4
        %v2577 = vadd.f32 %v2529, %v2576
        %v2578 = vrot.slane %v2577, 2
        %v2579 = vadd.f32 %v2577, %v2578
        %v2580 = vrot.slane %v2579, 1
        %v2581 = vadd.f32 %v2579, %v2580
        %v2582 = vrot.slane %v2530, 4
        %v2583 = vadd.f32 %v2530, %v2582
        %v2584 = vrot.slane %v2583, 2
        %v2585 = vadd.f32 %v2583, %v2584
        %v2586 = vrot.slane %v2585, 1
        %v2587 = vadd.f32 %v2585, %v2586
        %v2588 = vrot.slane %v2531, 4
        %v2589 = vadd.f32 %v2531, %v2588
        %v2590 = vrot.slane %v2589, 2
        %v2591 = vadd.f32 %v2589, %v2590
        %v2592 = vrot.slane %v2591, 1
        %v2593 = vadd.f32 %v2591, %v2592
        %v2594 = vrot.slane %v2532, 4
        %v2595 = vadd.f32 %v2532, %v2594
        %v2596 = vrot.slane %v2595, 2
        %v2597 = vadd.f32 %v2595, %v2596
        %v2598 = vrot.slane %v2597, 1
        %v2599 = vadd.f32 %v2597, %v2598
        %v2600 = vrot.slane %v2533, 4
        %v2601 = vadd.f32 %v2533, %v2600
        %v2602 = vrot.slane %v2601, 2
        %v2603 = vadd.f32 %v2601, %v2602
        %v2604 = vrot.slane %v2603, 1
        %v2605 = vadd.f32 %v2603, %v2604
        %v2606 = vrot.slane %v2534, 4
        %v2607 = vadd.f32 %v2534, %v2606
        %v2608 = vrot.slane %v2607, 2
        %v2609 = vadd.f32 %v2607, %v2608
        %v2610 = vrot.slane %v2609, 1
        %v2611 = vadd.f32 %v2609, %v2610
        %v2612 = vrot.slane %v2535, 4
        %v2613 = vadd.f32 %v2535, %v2612
        %v2614 = vrot.slane %v2613, 2
        %v2615 = vadd.f32 %v2613, %v2614
        %v2616 = vrot.slane %v2615, 1
        %v2617 = vadd.f32 %v2615, %v2616
        %v2618 = vrot.slane %v2536, 4
        %v2619 = vadd.f32 %v2536, %v2618
        %v2620 = vrot.slane %v2619, 2
        %v2621 = vadd.f32 %v2619, %v2620
        %v2622 = vrot.slane %v2621, 1
        %v2623 = vadd.f32 %v2621, %v2622
        %v2624 = vrot.slane %v2537, 4
        %v2625 = vadd.f32 %v2537, %v2624
        %v2626 = vrot.slane %v2625, 2
        %v2627 = vadd.f32 %v2625, %v2626
        %v2628 = vrot.slane %v2627, 1
        %v2629 = vadd.f32 %v2627, %v2628
        %v2630 = vrot.slane %v2538, 4
        %v2631 = vadd.f32 %v2538, %v2630
        %v2632 = vrot.slane %v2631, 2
        %v2633 = vadd.f32 %v2631, %v2632
        %v2634 = vrot.slane %v2633, 1
        %v2635 = vadd.f32 %v2633, %v2634
        %v2636 = vrot.slane %v2539, 4
        %v2637 = vadd.f32 %v2539, %v2636
        %v2638 = vrot.slane %v2637, 2
        %v2639 = vadd.f32 %v2637, %v2638
        %v2640 = vrot.slane %v2639, 1
        %v2641 = vadd.f32 %v2639, %v2640
        %v2642 = vrot.slane %v2540, 4
        %v2643 = vadd.f32 %v2540, %v2642
        %v2644 = vrot.slane %v2643, 2
        %v2645 = vadd.f32 %v2643, %v2644
        %v2646 = vrot.slane %v2645, 1
        %v2647 = vadd.f32 %v2645, %v2646
        %v2648 = vrot.slane %v2541, 4
        %v2649 = vadd.f32 %v2541, %v2648
        %v2650 = vrot.slane %v2649, 2
        %v2651 = vadd.f32 %v2649, %v2650
        %v2652 = vrot.slane %v2651, 1
        %v2653 = vadd.f32 %v2651, %v2652
        %v2654 = vrot.slane %v2542, 4
        %v2655 = vadd.f32 %v2542, %v2654
        %v2656 = vrot.slane %v2655, 2
        %v2657 = vadd.f32 %v2655, %v2656
        %v2658 = vrot.slane %v2657, 1
        %v2659 = vadd.f32 %v2657, %v2658
        %v2660 = vrot.slane %v2543, 4
        %v2661 = vadd.f32 %v2543, %v2660
        %v2662 = vrot.slane %v2661, 2
        %v2663 = vadd.f32 %v2661, %v2662
        %v2664 = vrot.slane %v2663, 1
        %v2665 = vadd.f32 %v2663, %v2664
        %v2666 = vrot.slane %v2544, 4
        %v2667 = vadd.f32 %v2544, %v2666
        %v2668 = vrot.slane %v2667, 2
        %v2669 = vadd.f32 %v2667, %v2668
        %v2670 = vrot.slane %v2669, 1
        %v2671 = vadd.f32 %v2669, %v2670
        %v2672 = vrot.slane %v2545, 4
        %v2673 = vadd.f32 %v2545, %v2672
        %v2674 = vrot.slane %v2673, 2
        %v2675 = vadd.f32 %v2673, %v2674
        %v2676 = vrot.slane %v2675, 1
        %v2677 = vadd.f32 %v2675, %v2676
        %v2678 = vrot.slane %v2546, 4
        %v2679 = vadd.f32 %v2546, %v2678
        %v2680 = vrot.slane %v2679, 2
        %v2681 = vadd.f32 %v2679, %v2680
        %v2682 = vrot.slane %v2681, 1
        %v2683 = vadd.f32 %v2681, %v2682
        %v2684 = vrot.slane %v2547, 4
        %v2685 = vadd.f32 %v2547, %v2684
        %v2686 = vrot.slane %v2685, 2
        %v2687 = vadd.f32 %v2685, %v2686
        %v2688 = vrot.slane %v2687, 1
        %v2689 = vadd.f32 %v2687, %v2688
        %v2690 = vrot.slane %v2548, 4
        %v2691 = vadd.f32 %v2548, %v2690
        %v2692 = vrot.slane %v2691, 2
        %v2693 = vadd.f32 %v2691, %v2692
        %v2694 = vrot.slane %v2693, 1
        %v2695 = vadd.f32 %v2693, %v2694
        %v2696 = vrot.slane %v2549, 4
        %v2697 = vadd.f32 %v2549, %v2696
        %v2698 = vrot.slane %v2697, 2
        %v2699 = vadd.f32 %v2697, %v2698
        %v2700 = vrot.slane %v2699, 1
        %v2701 = vadd.f32 %v2699, %v2700
        %v2702 = vrot.slane %v2550, 4
        %v2703 = vadd.f32 %v2550, %v2702
        %v2704 = vrot.slane %v2703, 2
        %v2705 = vadd.f32 %v2703, %v2704
        %v2706 = vrot.slane %v2705, 1
        %v2707 = vadd.f32 %v2705, %v2706
        %v2708 = vrot.slane %v2551, 4
        %v2709 = vadd.f32 %v2551, %v2708
        %v2710 = vrot.slane %v2709, 2
        %v2711 = vadd.f32 %v2709, %v2710
        %v2712 = vrot.slane %v2711, 1
        %v2713 = vadd.f32 %v2711, %v2712
        %v2714 = vrot.slane %v2552, 4
        %v2715 = vadd.f32 %v2552, %v2714
        %v2716 = vrot.slane %v2715, 2
        %v2717 = vadd.f32 %v2715, %v2716
        %v2718 = vrot.slane %v2717, 1
        %v2719 = vadd.f32 %v2717, %v2718
        %v2720 = vrot.slane %v2553, 4
        %v2721 = vadd.f32 %v2553, %v2720
        %v2722 = vrot.slane %v2721, 2
        %v2723 = vadd.f32 %v2721, %v2722
        %v2724 = vrot.slane %v2723, 1
        %v2725 = vadd.f32 %v2723, %v2724
        %v2726 = vrot.slane %v2554, 4
        %v2727 = vadd.f32 %v2554, %v2726
        %v2728 = vrot.slane %v2727, 2
        %v2729 = vadd.f32 %v2727, %v2728
        %v2730 = vrot.slane %v2729, 1
        %v2731 = vadd.f32 %v2729, %v2730
        %v2732 = vrot.slane %v2555, 4
        %v2733 = vadd.f32 %v2555, %v2732
        %v2734 = vrot.slane %v2733, 2
        %v2735 = vadd.f32 %v2733, %v2734
        %v2736 = vrot.slane %v2735, 1
        %v2737 = vadd.f32 %v2735, %v2736
        %v2738 = vrot.slane %v2556, 4
        %v2739 = vadd.f32 %v2556, %v2738
        %v2740 = vrot.slane %v2739, 2
        %v2741 = vadd.f32 %v2739, %v2740
        %v2742 = vrot.slane %v2741, 1
        %v2743 = vadd.f32 %v2741, %v2742
        %v2744 = vrot.slane %v2557, 4
        %v2745 = vadd.f32 %v2557, %v2744
        %v2746 = vrot.slane %v2745, 2
        %v2747 = vadd.f32 %v2745, %v2746
        %v2748 = vrot.slane %v2747, 1
        %v2749 = vadd.f32 %v2747, %v2748
        %v2750 = vld [vmem:[#allocation9] sm:$0xff]
        %v2751 = vld [vmem:[#allocation9 + $0x8] sm:$0xff]
        %v2752 = vld [vmem:[#allocation9 + $0x10] sm:$0xff]
        %v2753 = vld [vmem:[#allocation9 + $0x18] sm:$0xff]
        %v2754 = vld [vmem:[#allocation9 + $0x20] sm:$0xff]
        %v2755 = vld [vmem:[#allocation9 + $0x28] sm:$0xff]
        %v2756 = vld [vmem:[#allocation9 + $0x30] sm:$0xff]
        %v2757 = vld [vmem:[#allocation9 + $0x38] sm:$0xff]
        %v2758 = vld [vmem:[#allocation9 + $0x40] sm:$0xff]
        %v2759 = vld [vmem:[#allocation9 + $0x48] sm:$0xff]
        %v2760 = vld [vmem:[#allocation9 + $0x50] sm:$0xff]
        %v2761 = vld [vmem:[#allocation9 + $0x58] sm:$0xff]
        %v2762 = vld [vmem:[#allocation9 + $0x60] sm:$0xff]
        %v2763 = vld [vmem:[#allocation9 + $0x68] sm:$0xff]
        %v2764 = vld [vmem:[#allocation9 + $0x70] sm:$0xff]
        %v2765 = vld [vmem:[#allocation9 + $0x78] sm:$0xff]
        %v2766 = vld [vmem:[%s10] sm:$0x1]
        %v2768 = vlaneseq
        %v2769 = vshrl.u32 %v2768, 7
        %v2770 = vsub.s32 0, %v2769
        %v2771 = vrot.slane %v2766, %v2770
        %vm2805 = vcmask 1041409
        %v2806 = vsel %vm2805, %v2569, %v2563
        %vm2807 = vcmask 1042434
        %v2808 = vsel %vm2807, %v2575, %v2806
        %vm2809 = vcmask 1043459
        %v2810 = vsel %vm2809, %v2581, %v2808
        %vm2811 = vcmask 1044484
        %v2812 = vsel %vm2811, %v2587, %v2810
        %vm2813 = vcmask 1045509
        %v2814 = vsel %vm2813, %v2593, %v2812
        %vm2815 = vcmask 1046534
        %v2816 = vsel %vm2815, %v2599, %v2814
        %vm2817 = vcmask 1047559
        %v2818 = vsel %vm2817, %v2605, %v2816
        %v2819 = vsel %vm2805, %v2617, %v2611
        %v2820 = vsel %vm2807, %v2623, %v2819
        %v2821 = vsel %vm2809, %v2629, %v2820
        %v2822 = vsel %vm2811, %v2635, %v2821
        %v2823 = vsel %vm2813, %v2641, %v2822
        %v2824 = vsel %vm2815, %v2647, %v2823
        %v2825 = vsel %vm2817, %v2653, %v2824
        %v2826 = vsel %vm2805, %v2665, %v2659
        %v2827 = vsel %vm2807, %v2671, %v2826
        %v2828 = vsel %vm2809, %v2677, %v2827
        %v2829 = vsel %vm2811, %v2683, %v2828
        %v2830 = vsel %vm2813, %v2689, %v2829
        %v2831 = vsel %vm2815, %v2695, %v2830
        %v2832 = vsel %vm2817, %v2701, %v2831
        %v2833 = vsel %vm2805, %v2713, %v2707
        %v2834 = vsel %vm2807, %v2719, %v2833
        %v2835 = vsel %vm2809, %v2725, %v2834
        %v2836 = vsel %vm2811, %v2731, %v2835
        %v2837 = vsel %vm2813, %v2737, %v2836
        %v2838 = vsel %vm2815, %v2743, %v2837
        %v2839 = vsel %vm2817, %v2749, %v2838
        %2844 = vmatprep.subr.mxu0 0.0
        %2845 = vmatpush1.msra.mxu0 %v2750
        %2846 = vmatprep.subr.mxu0 0.0
        %2847 = vmatpush1.msra.mxu0 %v2751
        %2848 = vmatprep.subr.mxu0 0.0
        %2849 = vmatpush1.msra.mxu0 %v2752
        %2850 = vmatprep.subr.mxu0 0.0
        %2851 = vmatpush1.msra.mxu0 %v2753
        %2852 = vmatprep.subr.mxu0 0.0
        %2853 = vmatpush1.msra.mxu0 %v2754
        %2854 = vmatprep.subr.mxu0 0.0
        %2855 = vmatpush1.msra.mxu0 %v2755
        %2856 = vmatprep.subr.mxu0 0.0
        %2857 = vmatpush1.msra.mxu0 %v2756
        %2858 = vmatprep.subr.mxu0 0.0
        %2859 = vmatpush1.msra.mxu0 %v2757
        %2860 = vmatprep.subr.mxu0 0.0
        %2861 = vmatpush1.msra.mxu0 %v2758
        %2862 = vmatprep.subr.mxu0 0.0
        %2863 = vmatpush1.msra.mxu0 %v2759
        %2864 = vmatprep.subr.mxu0 0.0
        %2865 = vmatpush1.msra.mxu0 %v2760
        %2866 = vmatprep.subr.mxu0 0.0
        %2867 = vmatpush1.msra.mxu0 %v2761
        %2868 = vmatprep.subr.mxu0 0.0
        %2869 = vmatpush1.msra.mxu0 %v2762
        %2870 = vmatprep.subr.mxu0 0.0
        %2871 = vmatpush1.msra.mxu0 %v2763
        %2872 = vmatprep.subr.mxu0 0.0
        %2873 = vmatpush1.msra.mxu0 %v2764
        %2874 = vmatprep.subr.mxu0 0.0
        %2875 = vmatpush1.msra.mxu0 %v2765
        %2876 = vmatprep.subr.mxu0 0.0
        %2877 = vmatpush1.msra.mxu0 0.0
        %2878 = vmatprep.subr.mxu0 0.0
        %2879 = vmatpush1.msra.mxu0 0.0
        %2880 = vmatprep.subr.mxu0 0.0
        %2881 = vmatpush1.msra.mxu0 0.0
        %2882 = vmatprep.subr.mxu0 0.0
        %2883 = vmatpush1.msra.mxu0 0.0
        %2884 = vmatprep.subr.mxu0 0.0
        %2885 = vmatpush1.msra.mxu0 0.0
        %2886 = vmatprep.subr.mxu0 0.0
        %2887 = vmatpush1.msra.mxu0 0.0
        %2888 = vmatprep.subr.mxu0 0.0
        %2889 = vmatpush1.msra.mxu0 0.0
        %2890 = vmatprep.subr.mxu0 0.0
        %2891 = vmatpush1.msra.mxu0 0.0
        %2892 = vmatprep.subr.mxu0 0.0
        %2893 = vmatpush1.msra.mxu0 0.0
        %2894 = vmatprep.subr.mxu0 0.0
        %2895 = vmatpush1.msra.mxu0 0.0
        %2896 = vmatprep.subr.mxu0 0.0
        %2897 = vmatpush1.msra.mxu0 0.0
        %2898 = vmatprep.subr.mxu0 0.0
        %2899 = vmatpush1.msra.mxu0 0.0
        %2900 = vmatprep.subr.mxu0 0.0
        %2901 = vmatpush1.msra.mxu0 0.0
        %2902 = vmatprep.subr.mxu0 0.0
        %2903 = vmatpush1.msra.mxu0 0.0
        %2904 = vmatprep.subr.mxu0 0.0
        %2905 = vmatpush1.msra.mxu0 0.0
        %2906 = vmatprep.subr.mxu0 0.0
        %2907 = vmatpush1.msra.mxu0 0.0
        %2908 = vmatprep.mubr.f32.mxu0 0.0
        %2909 = vmatmul.mubr.f32.gmra.mrb[0].mxu0 %v2818
        %v2910 = vpop.f32.mrb[0].mxu0
        %v2911 = vadd.f32 %v2771, %v2910
        %v2912 = vpop.f32.mrb[0].mxu0
        %2913 = vmatprep.mubr.f32.mxu0 0.0
        %2914 = vmatmul.mubr.f32.gmra.mrb[0].mxu0 %v2825
        %v2915 = vpop.f32.mrb[0].mxu0
        %v2916 = vadd.f32 %v2771, %v2915
        %v2917 = vpop.f32.mrb[0].mxu0
        %2918 = vmatprep.mubr.f32.mxu0 0.0
        %2919 = vmatmul.mubr.f32.gmra.mrb[0].mxu0 %v2832
        %v2920 = vpop.f32.mrb[0].mxu0
        %v2921 = vadd.f32 %v2771, %v2920
        %v2922 = vpop.f32.mrb[0].mxu0
        %2923 = vmatprep.mubr.f32.mxu0 0.0
        %2924 = vmatmul.mubr.f32.gmra.mrb[0].mxu0 %v2839
        %v2925 = vpop.f32.mrb[0].mxu0
        %v2926 = vadd.f32 %v2771, %v2925
        %v2927 = vpop.f32.mrb[0].mxu0
        %2928 = vdwg.mxu0
        %v2929 = vmax.f32 %v2911, 0.0
        %v2930 = vmax.f32 %v2916, 0.0
        %v2931 = vmax.f32 %v2921, 0.0
        %v2932 = vmax.f32 %v2926, 0.0
        %v2933 = vld [vmem:[%s11] sm:$0xff]
        %v2934 = vld [vmem:[%s11 + $0x8] sm:$0xff]
        %v2935 = vld [vmem:[%s11 + $0x10] sm:$0xff]
        %v2936 = vld [vmem:[%s11 + $0x18] sm:$0xff]
        %v2937 = vld [vmem:[%s11 + $0x20] sm:$0xff]
        %v2938 = vld [vmem:[%s11 + $0x28] sm:$0xff]
        %v2939 = vld [vmem:[%s11 + $0x30] sm:$0xff]
        %v2940 = vld [vmem:[%s11 + $0x38] sm:$0xff]
        %v2941 = vld [vmem:[%s11 + $0x40] sm:$0xff]
        %v2942 = vld [vmem:[%s11 + $0x48] sm:$0xff]
        %v2943 = vld [vmem:[%s11 + $0x50] sm:$0xff]
        %v2944 = vld [vmem:[%s11 + $0x58] sm:$0xff]
        %v2945 = vld [vmem:[%s11 + $0x60] sm:$0xff]
        %v2946 = vld [vmem:[%s11 + $0x68] sm:$0xff]
        %v2947 = vld [vmem:[%s11 + $0x70] sm:$0xff]
        %v2948 = vld [vmem:[%s11 + $0x78] sm:$0xff]
        %s2949 = scalar_lea.vmem %s11, 128
        %v2950 = vld [vmem:[%s2949] sm:$0xff]
        %v2951 = vld [vmem:[%s2949 + $0x8] sm:$0xff]
        %v2952 = vld [vmem:[%s2949 + $0x10] sm:$0xff]
        %v2953 = vld [vmem:[%s2949 + $0x18] sm:$0xff]
        %v2954 = vld [vmem:[%s2949 + $0x20] sm:$0xff]
        %v2955 = vld [vmem:[%s2949 + $0x28] sm:$0xff]
        %v2956 = vld [vmem:[%s2949 + $0x30] sm:$0xff]
        %v2957 = vld [vmem:[%s2949 + $0x38] sm:$0xff]
        %v2958 = vld [vmem:[%s2949 + $0x40] sm:$0xff]
        %v2959 = vld [vmem:[%s2949 + $0x48] sm:$0xff]
        %v2960 = vld [vmem:[%s2949 + $0x50] sm:$0xff]
        %v2961 = vld [vmem:[%s2949 + $0x58] sm:$0xff]
        %v2962 = vld [vmem:[%s2949 + $0x60] sm:$0xff]
        %v2963 = vld [vmem:[%s2949 + $0x68] sm:$0xff]
        %v2964 = vld [vmem:[%s2949 + $0x70] sm:$0xff]
        %v2965 = vld [vmem:[%s2949 + $0x78] sm:$0xff]
        %2966 = vmatprep.subr.mxu0 0.0
        %2967 = vmatpush1.msra.mxu0 %v2950
        %2968 = vmatprep.subr.mxu0 0.0
        %2969 = vmatpush1.msra.mxu0 %v2951
        %2970 = vmatprep.subr.mxu0 0.0
        %2971 = vmatpush1.msra.mxu0 %v2952
        %2972 = vmatprep.subr.mxu0 0.0
        %2973 = vmatpush1.msra.mxu0 %v2953
        %2974 = vmatprep.subr.mxu0 0.0
        %2975 = vmatpush1.msra.mxu0 %v2954
        %2976 = vmatprep.subr.mxu0 0.0
        %2977 = vmatpush1.msra.mxu0 %v2955
        %2978 = vmatprep.subr.mxu0 0.0
        %2979 = vmatpush1.msra.mxu0 %v2956
        %2980 = vmatprep.subr.mxu0 0.0
        %2981 = vmatpush1.msra.mxu0 %v2957
        %2982 = vmatprep.subr.mxu0 0.0
        %2983 = vmatpush1.msra.mxu0 %v2958
        %2984 = vmatprep.subr.mxu0 0.0
        %2985 = vmatpush1.msra.mxu0 %v2959
        %2986 = vmatprep.subr.mxu0 0.0
        %2987 = vmatpush1.msra.mxu0 %v2960
        %2988 = vmatprep.subr.mxu0 0.0
        %2989 = vmatpush1.msra.mxu0 %v2961
        %2990 = vmatprep.subr.mxu0 0.0
        %2991 = vmatpush1.msra.mxu0 %v2962
        %2992 = vmatprep.subr.mxu0 0.0
        %2993 = vmatpush1.msra.mxu0 %v2963
        %2994 = vmatprep.subr.mxu0 0.0
        %2995 = vmatpush1.msra.mxu0 %v2964
        %2996 = vmatprep.subr.mxu0 0.0
        %2997 = vmatpush1.msra.mxu0 %v2965
        %2998 = vmatprep.subr.mxu0 0.0
        %2999 = vmatpush1.msra.mxu0 0.0
        %3000 = vmatprep.subr.mxu0 0.0
        %3001 = vmatpush1.msra.mxu0 0.0
        %3002 = vmatprep.subr.mxu0 0.0
        %3003 = vmatpush1.msra.mxu0 0.0
        %3004 = vmatprep.subr.mxu0 0.0
        %3005 = vmatpush1.msra.mxu0 0.0
        %3006 = vmatprep.subr.mxu0 0.0
        %3007 = vmatpush1.msra.mxu0 0.0
        %3008 = vmatprep.subr.mxu0 0.0
        %3009 = vmatpush1.msra.mxu0 0.0
        %3010 = vmatprep.subr.mxu0 0.0
        %3011 = vmatpush1.msra.mxu0 0.0
        %3012 = vmatprep.subr.mxu0 0.0
        %3013 = vmatpush1.msra.mxu0 0.0
        %3014 = vmatprep.subr.mxu0 0.0
        %3015 = vmatpush1.msra.mxu0 0.0
        %3016 = vmatprep.subr.mxu0 0.0
        %3017 = vmatpush1.msra.mxu0 0.0
        %3018 = vmatprep.subr.mxu0 0.0
        %3019 = vmatpush1.msra.mxu0 0.0
        %3020 = vmatprep.subr.mxu0 0.0
        %3021 = vmatpush1.msra.mxu0 0.0
        %3022 = vmatprep.subr.mxu0 0.0
        %3023 = vmatpush1.msra.mxu0 0.0
        %3024 = vmatprep.subr.mxu0 0.0
        %3025 = vmatpush1.msra.mxu0 0.0
        %3026 = vmatprep.subr.mxu0 0.0
        %3027 = vmatpush1.msra.mxu0 0.0
        %3028 = vmatprep.subr.mxu0 0.0
        %3029 = vmatpush1.msra.mxu0 0.0
        %3030 = vmatprep.mubr.f32.mxu0 0.0
        %3031 = vmatmul.mubr.f32.gmra.mrb[0].mxu0 %v2931
        %v3032 = vpop.f32.mrb[0].mxu0
        %v3033 = vadd.f32 0.0, %v3032
        %v3034 = vpop.f32.mrb[0].mxu0
        %3035 = vmatprep.mubr.f32.mxu0 0.0
        %3036 = vmatmul.mubr.f32.gmra.mrb[0].mxu0 %v2932
        %v3037 = vpop.f32.mrb[0].mxu0
        %v3038 = vadd.f32 0.0, %v3037
        %v3039 = vpop.f32.mrb[0].mxu0
        %3040 = vdwg.mxu0
        %3041 = vmatprep.subr.mxu0 0.0
        %3042 = vmatpush1.msra.mxu0 %v2933
        %3043 = vmatprep.subr.mxu0 0.0
        %3044 = vmatpush1.msra.mxu0 %v2934
        %3045 = vmatprep.subr.mxu0 0.0
        %3046 = vmatpush1.msra.mxu0 %v2935
        %3047 = vmatprep.subr.mxu0 0.0
        %3048 = vmatpush1.msra.mxu0 %v2936
        %3049 = vmatprep.subr.mxu0 0.0
        %3050 = vmatpush1.msra.mxu0 %v2937
        %3051 = vmatprep.subr.mxu0 0.0
        %3052 = vmatpush1.msra.mxu0 %v2938
        %3053 = vmatprep.subr.mxu0 0.0
        %3054 = vmatpush1.msra.mxu0 %v2939
        %3055 = vmatprep.subr.mxu0 0.0
        %3056 = vmatpush1.msra.mxu0 %v2940
        %3057 = vmatprep.subr.mxu0 0.0
        %3058 = vmatpush1.msra.mxu0 %v2941
        %3059 = vmatprep.subr.mxu0 0.0
        %3060 = vmatpush1.msra.mxu0 %v2942
        %3061 = vmatprep.subr.mxu0 0.0
        %3062 = vmatpush1.msra.mxu0 %v2943
        %3063 = vmatprep.subr.mxu0 0.0
        %3064 = vmatpush1.msra.mxu0 %v2944
        %3065 = vmatprep.subr.mxu0 0.0
        %3066 = vmatpush1.msra.mxu0 %v2945
        %3067 = vmatprep.subr.mxu0 0.0
        %3068 = vmatpush1.msra.mxu0 %v2946
        %3069 = vmatprep.subr.mxu0 0.0
        %3070 = vmatpush1.msra.mxu0 %v2947
        %3071 = vmatprep.subr.mxu0 0.0
        %3072 = vmatpush1.msra.mxu0 %v2948
        %3073 = vmatprep.subr.mxu0 0.0
        %3074 = vmatpush1.msra.mxu0 0.0
        %3075 = vmatprep.subr.mxu0 0.0
        %3076 = vmatpush1.msra.mxu0 0.0
        %3077 = vmatprep.subr.mxu0 0.0
        %3078 = vmatpush1.msra.mxu0 0.0
        %3079 = vmatprep.subr.mxu0 0.0
        %3080 = vmatpush1.msra.mxu0 0.0
        %3081 = vmatprep.subr.mxu0 0.0
        %3082 = vmatpush1.msra.mxu0 0.0
        %3083 = vmatprep.subr.mxu0 0.0
        %3084 = vmatpush1.msra.mxu0 0.0
        %3085 = vmatprep.subr.mxu0 0.0
        %3086 = vmatpush1.msra.mxu0 0.0
        %3087 = vmatprep.subr.mxu0 0.0
        %3088 = vmatpush1.msra.mxu0 0.0
        %3089 = vmatprep.subr.mxu0 0.0
        %3090 = vmatpush1.msra.mxu0 0.0
        %3091 = vmatprep.subr.mxu0 0.0
        %3092 = vmatpush1.msra.mxu0 0.0
        %3093 = vmatprep.subr.mxu0 0.0
        %3094 = vmatpush1.msra.mxu0 0.0
        %3095 = vmatprep.subr.mxu0 0.0
        %3096 = vmatpush1.msra.mxu0 0.0
        %3097 = vmatprep.subr.mxu0 0.0
        %3098 = vmatpush1.msra.mxu0 0.0
        %3099 = vmatprep.subr.mxu0 0.0
        %3100 = vmatpush1.msra.mxu0 0.0
        %3101 = vmatprep.subr.mxu0 0.0
        %3102 = vmatpush1.msra.mxu0 0.0
        %3103 = vmatprep.subr.mxu0 0.0
        %3104 = vmatpush1.msra.mxu0 0.0
        %3105 = vmatprep.mubr.f32.mxu0 0.0
        %3106 = vmatmul.mubr.f32.gmra.mrb[0].mxu0 %v2929
        %v3107 = vpop.f32.mrb[0].mxu0
        %v3108 = vadd.f32 %v3033, %v3107
        %v3109 = vpop.f32.mrb[0].mxu0
        %3110 = vmatprep.mubr.f32.mxu0 0.0
        %3111 = vmatmul.mubr.f32.gmra.mrb[0].mxu0 %v2930
        %v3112 = vpop.f32.mrb[0].mxu0
        %v3113 = vadd.f32 %v3038, %v3112
        %v3114 = vpop.f32.mrb[0].mxu0
        %3115 = vdwg.mxu0
        %vm3116 = vcmask 15360
        %v3117 = vsel %vm3116, %v3108, -inf
        %3118 = vmax.xlane.f32.xlu0 %v3117
        %v3119 = vpop.xlane.xlu0 %3118
        %v3120 = vsel %vm3116, %v3113, -inf
        %3121 = vmax.xlane.f32.xlu0 %v3120
        %v3122 = vpop.xlane.xlu0 %3121
        %v3123 = vsub.f32 %v3108, %v3119
        %v3124 = vsub.f32 %v3113, %v3122
        %v3125 = vmul.f32 %v3123, 1.442695
        %v3126 = vpow.pop %v3125
        %v3127 = vmul.f32 %v3124, 1.442695
        %v3128 = vpow.pop %v3127
        %v3129 = vsel %vm3116, %v3126, 0.0
        %3130 = vadd.xlane.f32.xlu0 %v3129
        %v3131 = vpop.xlane.xlu0 %3130
        %v3132 = vsel %vm3116, %v3128, 0.0
        %3133 = vadd.xlane.f32.xlu0 %v3132
        %v3134 = vpop.xlane.xlu0 %3133
        %v3135 = vrcp.pop %v3131
        %v3136 = vmul.f32 %v3126, %v3135
        %v3137 = vrcp.pop %v3134
        %v3138 = vmul.f32 %v3128, %v3137
        %v3139 = vlaneseq
        %v3140 = vand.u32 %v3139, 127
        %vm3141 = vcmp.eq.s32.totalorder %v3140, 0
        %v3142 = vsel %vm3141, 1, 0
        %vm3143 = vcmp.eq.s32.totalorder %v3142, 1
        %v3144 = vsel %vm3143, %v3136, 0.0
        %v3145 = vsel %vm3143, %v3138, 0.0
        %v3146 = vsel %vm3116, %v3144, 0.0
        %3147 = vadd.xlane.f32.xlu0 %v3146
        %v3148 = vpop.xlane.xlu0 %3147
        %v3149 = vsel %vm3116, %v3145, 0.0
        %3150 = vadd.xlane.f32.xlu0 %v3149
        %v3151 = vpop.xlane.xlu0 %3150
        %v3152 = vmul.f32 %v3148, %v2929
        %v3153 = vmul.f32 %v3151, %v2930
        %v3154 = vadd.f32 %v3152, 0.0
        %v3155 = vadd.f32 %v3153, 0.0
        %vm3156 = vcmp.eq.s32.totalorder %v3140, 1
        %v3157 = vsel %vm3156, 1, 0
        %vm3158 = vcmp.eq.s32.totalorder %v3157, 1
        %v3159 = vsel %vm3158, %v3136, 0.0
        %v3160 = vsel %vm3158, %v3138, 0.0
        %v3161 = vsel %vm3116, %v3159, 0.0
        %3162 = vadd.xlane.f32.xlu0 %v3161
        %v3163 = vpop.xlane.xlu0 %3162
        %v3164 = vsel %vm3116, %v3160, 0.0
        %3165 = vadd.xlane.f32.xlu0 %v3164
        %v3166 = vpop.xlane.xlu0 %3165
        %v3167 = vmul.f32 %v3163, %v2931
        %v3168 = vmul.f32 %v3166, %v2932
        %v3169 = vadd.f32 %v3154, %v3167
        %v3170 = vadd.f32 %v3155, %v3168
        %v3171 = vld [vmem:[#allocation11] sm:$0xff]
        %v3172 = vld [vmem:[#allocation11 + $0x8] sm:$0xff]
        %v3173 = vld [vmem:[#allocation11 + $0x10] sm:$0xff]
        %v3174 = vld [vmem:[#allocation11 + $0x18] sm:$0xff]
        %v3175 = vld [vmem:[#allocation11 + $0x20] sm:$0xff]
        %v3176 = vld [vmem:[#allocation11 + $0x28] sm:$0xff]
        %v3177 = vld [vmem:[#allocation11 + $0x30] sm:$0xff]
        %v3178 = vld [vmem:[#allocation11 + $0x38] sm:$0xff]
        %v3179 = vld [vmem:[#allocation11 + $0x40] sm:$0xff]
        %v3180 = vld [vmem:[#allocation11 + $0x48] sm:$0xff]
        %v3181 = vld [vmem:[#allocation11 + $0x50] sm:$0xff]
        %v3182 = vld [vmem:[#allocation11 + $0x58] sm:$0xff]
        %v3183 = vld [vmem:[#allocation11 + $0x60] sm:$0xff]
        %v3184 = vld [vmem:[#allocation11 + $0x68] sm:$0xff]
        %v3185 = vld [vmem:[#allocation11 + $0x70] sm:$0xff]
        %v3186 = vld [vmem:[#allocation11 + $0x78] sm:$0xff]
        %v3187 = vld [vmem:[%s13] sm:$0x1]
        %v3189 = vlaneseq
        %v3190 = vshrl.u32 %v3189, 7
        %v3191 = vsub.s32 0, %v3190
        %v3192 = vrot.slane %v3187, %v3191
        %3194 = vmatprep.subr.mxu0 0.0
        %3195 = vmatpush1.msra.mxu0 %v3171
        %3196 = vmatprep.subr.mxu0 0.0
        %3197 = vmatpush1.msra.mxu0 %v3172
        %3198 = vmatprep.subr.mxu0 0.0
        %3199 = vmatpush1.msra.mxu0 %v3173
        %3200 = vmatprep.subr.mxu0 0.0
        %3201 = vmatpush1.msra.mxu0 %v3174
        %3202 = vmatprep.subr.mxu0 0.0
        %3203 = vmatpush1.msra.mxu0 %v3175
        %3204 = vmatprep.subr.mxu0 0.0
        %3205 = vmatpush1.msra.mxu0 %v3176
        %3206 = vmatprep.subr.mxu0 0.0
        %3207 = vmatpush1.msra.mxu0 %v3177
        %3208 = vmatprep.subr.mxu0 0.0
        %3209 = vmatpush1.msra.mxu0 %v3178
        %3210 = vmatprep.subr.mxu0 0.0
        %3211 = vmatpush1.msra.mxu0 %v3179
        %3212 = vmatprep.subr.mxu0 0.0
        %3213 = vmatpush1.msra.mxu0 %v3180
        %3214 = vmatprep.subr.mxu0 0.0
        %3215 = vmatpush1.msra.mxu0 %v3181
        %3216 = vmatprep.subr.mxu0 0.0
        %3217 = vmatpush1.msra.mxu0 %v3182
        %3218 = vmatprep.subr.mxu0 0.0
        %3219 = vmatpush1.msra.mxu0 %v3183
        %3220 = vmatprep.subr.mxu0 0.0
        %3221 = vmatpush1.msra.mxu0 %v3184
        %3222 = vmatprep.subr.mxu0 0.0
        %3223 = vmatpush1.msra.mxu0 %v3185
        %3224 = vmatprep.subr.mxu0 0.0
        %3225 = vmatpush1.msra.mxu0 %v3186
        %3226 = vmatprep.subr.mxu0 0.0
        %3227 = vmatpush1.msra.mxu0 0.0
        %3228 = vmatprep.subr.mxu0 0.0
        %3229 = vmatpush1.msra.mxu0 0.0
        %3230 = vmatprep.subr.mxu0 0.0
        %3231 = vmatpush1.msra.mxu0 0.0
        %3232 = vmatprep.subr.mxu0 0.0
        %3233 = vmatpush1.msra.mxu0 0.0
        %3234 = vmatprep.subr.mxu0 0.0
        %3235 = vmatpush1.msra.mxu0 0.0
        %3236 = vmatprep.subr.mxu0 0.0
        %3237 = vmatpush1.msra.mxu0 0.0
        %3238 = vmatprep.subr.mxu0 0.0
        %3239 = vmatpush1.msra.mxu0 0.0
        %3240 = vmatprep.subr.mxu0 0.0
        %3241 = vmatpush1.msra.mxu0 0.0
        %3242 = vmatprep.subr.mxu0 0.0
        %3243 = vmatpush1.msra.mxu0 0.0
        %3244 = vmatprep.subr.mxu0 0.0
        %3245 = vmatpush1.msra.mxu0 0.0
        %3246 = vmatprep.subr.mxu0 0.0
        %3247 = vmatpush1.msra.mxu0 0.0
        %3248 = vmatprep.subr.mxu0 0.0
        %3249 = vmatpush1.msra.mxu0 0.0
        %3250 = vmatprep.subr.mxu0 0.0
        %3251 = vmatpush1.msra.mxu0 0.0
        %3252 = vmatprep.subr.mxu0 0.0
        %3253 = vmatpush1.msra.mxu0 0.0
        %3254 = vmatprep.subr.mxu0 0.0
        %3255 = vmatpush1.msra.mxu0 0.0
        %3256 = vmatprep.subr.mxu0 0.0
        %3257 = vmatpush1.msra.mxu0 0.0
        %3258 = vmatprep.mubr.f32.mxu0 0.0
        %3259 = vmatmul.mubr.f32.gmra.mrb[0].mxu0 %v3169
        %v3260 = vpop.f32.mrb[0].mxu0
        %v3261 = vadd.f32 %v3192, %v3260
        %v3262 = vpop.f32.mrb[0].mxu0
        %3263 = vmatprep.mubr.f32.mxu0 0.0
        %3264 = vmatmul.mubr.f32.gmra.mrb[0].mxu0 %v3170
        %v3265 = vpop.f32.mrb[0].mxu0
        %v3266 = vadd.f32 %v3192, %v3265
        %v3267 = vpop.f32.mrb[0].mxu0
        %3268 = vdwg.mxu0
        %v3269 = vmax.f32 %v3261, 0.0
        %v3270 = vmax.f32 %v3266, 0.0
        %v3271 = vld [vmem:[#allocation12] sm:$0xff]
        %v3272 = vld [vmem:[#allocation12 + $0x8] sm:$0xff]
        %v3273 = vld [vmem:[#allocation12 + $0x10] sm:$0xff]
        %v3274 = vld [vmem:[#allocation12 + $0x18] sm:$0xff]
        %v3275 = vld [vmem:[#allocation12 + $0x20] sm:$0xff]
        %v3276 = vld [vmem:[#allocation12 + $0x28] sm:$0xff]
        %v3277 = vld [vmem:[#allocation12 + $0x30] sm:$0xff]
        %v3278 = vld [vmem:[#allocation12 + $0x38] sm:$0xff]
        %v3279 = vld [vmem:[#allocation12 + $0x40] sm:$0xff]
        %v3280 = vld [vmem:[#allocation12 + $0x48] sm:$0xff]
        %v3281 = vld [vmem:[#allocation12 + $0x50] sm:$0xff]
        %v3282 = vld [vmem:[#allocation12 + $0x58] sm:$0xff]
        %v3283 = vld [vmem:[#allocation12 + $0x60] sm:$0xff]
        %v3284 = vld [vmem:[#allocation12 + $0x68] sm:$0xff]
        %v3285 = vld [vmem:[#allocation12 + $0x70] sm:$0xff]
        %v3286 = vld [vmem:[#allocation12 + $0x78] sm:$0xff]
        %v3287 = vld [vmem:[#allocation14] sm:$0xff]
        %v3288 = vld [vmem:[#allocation14 + $0x8] sm:$0xff]
        %v3289 = vld [vmem:[#allocation14 + $0x10] sm:$0xff]
        %v3290 = vld [vmem:[#allocation14 + $0x18] sm:$0xff]
        %v3291 = vld [vmem:[#allocation14 + $0x20] sm:$0xff]
        %v3292 = vld [vmem:[#allocation14 + $0x28] sm:$0xff]
        %v3293 = vld [vmem:[#allocation14 + $0x30] sm:$0xff]
        %v3294 = vld [vmem:[#allocation14 + $0x38] sm:$0xff]
        %v3295 = vld [vmem:[#allocation14 + $0x40] sm:$0xff]
        %v3296 = vld [vmem:[#allocation14 + $0x48] sm:$0xff]
        %v3297 = vld [vmem:[#allocation14 + $0x50] sm:$0xff]
        %v3298 = vld [vmem:[#allocation14 + $0x58] sm:$0xff]
        %v3299 = vld [vmem:[#allocation14 + $0x60] sm:$0xff]
        %v3300 = vld [vmem:[#allocation14 + $0x68] sm:$0xff]
        %v3301 = vld [vmem:[#allocation14 + $0x70] sm:$0xff]
        %v3302 = vld [vmem:[#allocation14 + $0x78] sm:$0xff]
        %3303 = vmatprep.subr.mxu0 0.0
        %3304 = vmatpush1.msra.mxu0 %v3287
        %3305 = vmatprep.subr.mxu0 0.0
        %3306 = vmatpush1.msra.mxu0 %v3288
        %3307 = vmatprep.subr.mxu0 0.0
        %3308 = vmatpush1.msra.mxu0 %v3289
        %3309 = vmatprep.subr.mxu0 0.0
        %3310 = vmatpush1.msra.mxu0 %v3290
        %3311 = vmatprep.subr.mxu0 0.0
        %3312 = vmatpush1.msra.mxu0 %v3291
        %3313 = vmatprep.subr.mxu0 0.0
        %3314 = vmatpush1.msra.mxu0 %v3292
        %3315 = vmatprep.subr.mxu0 0.0
        %3316 = vmatpush1.msra.mxu0 %v3293
        %3317 = vmatprep.subr.mxu0 0.0
        %3318 = vmatpush1.msra.mxu0 %v3294
        %3319 = vmatprep.subr.mxu0 0.0
        %3320 = vmatpush1.msra.mxu0 %v3295
        %3321 = vmatprep.subr.mxu0 0.0
        %3322 = vmatpush1.msra.mxu0 %v3296
        %3323 = vmatprep.subr.mxu0 0.0
        %3324 = vmatpush1.msra.mxu0 %v3297
        %3325 = vmatprep.subr.mxu0 0.0
        %3326 = vmatpush1.msra.mxu0 %v3298
        %3327 = vmatprep.subr.mxu0 0.0
        %3328 = vmatpush1.msra.mxu0 %v3299
        %3329 = vmatprep.subr.mxu0 0.0
        %3330 = vmatpush1.msra.mxu0 %v3300
        %3331 = vmatprep.subr.mxu0 0.0
        %3332 = vmatpush1.msra.mxu0 %v3301
        %3333 = vmatprep.subr.mxu0 0.0
        %3334 = vmatpush1.msra.mxu0 %v3302
        %3335 = vmatprep.subr.mxu0 0.0
        %3336 = vmatpush1.msra.mxu0 0.0
        %3337 = vmatprep.subr.mxu0 0.0
        %3338 = vmatpush1.msra.mxu0 0.0
        %3339 = vmatprep.subr.mxu0 0.0
        %3340 = vmatpush1.msra.mxu0 0.0
        %3341 = vmatprep.subr.mxu0 0.0
        %3342 = vmatpush1.msra.mxu0 0.0
        %3343 = vmatprep.subr.mxu0 0.0
        %3344 = vmatpush1.msra.mxu0 0.0
        %3345 = vmatprep.subr.mxu0 0.0
        %3346 = vmatpush1.msra.mxu0 0.0
        %3347 = vmatprep.subr.mxu0 0.0
        %3348 = vmatpush1.msra.mxu0 0.0
        %3349 = vmatprep.subr.mxu0 0.0
        %3350 = vmatpush1.msra.mxu0 0.0
        %3351 = vmatprep.subr.mxu0 0.0
        %3352 = vmatpush1.msra.mxu0 0.0
        %3353 = vmatprep.subr.mxu0 0.0
        %3354 = vmatpush1.msra.mxu0 0.0
        %3355 = vmatprep.subr.mxu0 0.0
        %3356 = vmatpush1.msra.mxu0 0.0
        %3357 = vmatprep.subr.mxu0 0.0
        %3358 = vmatpush1.msra.mxu0 0.0
        %3359 = vmatprep.subr.mxu0 0.0
        %3360 = vmatpush1.msra.mxu0 0.0
        %3361 = vmatprep.subr.mxu0 0.0
        %3362 = vmatpush1.msra.mxu0 0.0
        %3363 = vmatprep.subr.mxu0 0.0
        %3364 = vmatpush1.msra.mxu0 0.0
        %3365 = vmatprep.subr.mxu0 0.0
        %3366 = vmatpush1.msra.mxu0 0.0
        %3367 = vmatprep.mubr.f32.mxu0 0.0
        %3368 = vmatmul.mubr.f32.gmra.mrb[0].mxu0 %v3269
        %v3369 = vpop.f32.mrb[0].mxu0
        %v3370 = vadd.f32 0.0, %v3369
        %v3371 = vpop.f32.mrb[0].mxu0
        %3372 = vmatprep.mubr.f32.mxu0 0.0
        %3373 = vmatmul.mubr.f32.gmra.mrb[0].mxu0 %v3270
        %v3374 = vpop.f32.mrb[0].mxu0
        %v3375 = vadd.f32 0.0, %v3374
        %v3376 = vpop.f32.mrb[0].mxu0
        %3377 = vdwg.mxu0
        %3378 = vmatprep.subr.mxu0 0.0
        %3379 = vmatpush1.msra.mxu0 %v3271
        %3380 = vmatprep.subr.mxu0 0.0
        %3381 = vmatpush1.msra.mxu0 %v3272
        %3382 = vmatprep.subr.mxu0 0.0
        %3383 = vmatpush1.msra.mxu0 %v3273
        %3384 = vmatprep.subr.mxu0 0.0
        %3385 = vmatpush1.msra.mxu0 %v3274
        %3386 = vmatprep.subr.mxu0 0.0
        %3387 = vmatpush1.msra.mxu0 %v3275
        %3388 = vmatprep.subr.mxu0 0.0
        %3389 = vmatpush1.msra.mxu0 %v3276
        %3390 = vmatprep.subr.mxu0 0.0
        %3391 = vmatpush1.msra.mxu0 %v3277
        %3392 = vmatprep.subr.mxu0 0.0
        %3393 = vmatpush1.msra.mxu0 %v3278
        %3394 = vmatprep.subr.mxu0 0.0
        %3395 = vmatpush1.msra.mxu0 %v3279
        %3396 = vmatprep.subr.mxu0 0.0
        %3397 = vmatpush1.msra.mxu0 %v3280
        %3398 = vmatprep.subr.mxu0 0.0
        %3399 = vmatpush1.msra.mxu0 %v3281
        %3400 = vmatprep.subr.mxu0 0.0
        %3401 = vmatpush1.msra.mxu0 %v3282
        %3402 = vmatprep.subr.mxu0 0.0
        %3403 = vmatpush1.msra.mxu0 %v3283
        %3404 = vmatprep.subr.mxu0 0.0
        %3405 = vmatpush1.msra.mxu0 %v3284
        %3406 = vmatprep.subr.mxu0 0.0
        %3407 = vmatpush1.msra.mxu0 %v3285
        %3408 = vmatprep.subr.mxu0 0.0
        %3409 = vmatpush1.msra.mxu0 %v3286
        %3410 = vmatprep.subr.mxu0 0.0
        %3411 = vmatpush1.msra.mxu0 0.0
        %3412 = vmatprep.subr.mxu0 0.0
        %3413 = vmatpush1.msra.mxu0 0.0
        %3414 = vmatprep.subr.mxu0 0.0
        %3415 = vmatpush1.msra.mxu0 0.0
        %3416 = vmatprep.subr.mxu0 0.0
        %3417 = vmatpush1.msra.mxu0 0.0
        %3418 = vmatprep.subr.mxu0 0.0
        %3419 = vmatpush1.msra.mxu0 0.0
        %3420 = vmatprep.subr.mxu0 0.0
        %3421 = vmatpush1.msra.mxu0 0.0
        %3422 = vmatprep.subr.mxu0 0.0
        %3423 = vmatpush1.msra.mxu0 0.0
        %3424 = vmatprep.subr.mxu0 0.0
        %3425 = vmatpush1.msra.mxu0 0.0
        %3426 = vmatprep.subr.mxu0 0.0
        %3427 = vmatpush1.msra.mxu0 0.0
        %3428 = vmatprep.subr.mxu0 0.0
        %3429 = vmatpush1.msra.mxu0 0.0
        %3430 = vmatprep.subr.mxu0 0.0
        %3431 = vmatpush1.msra.mxu0 0.0
        %3432 = vmatprep.subr.mxu0 0.0
        %3433 = vmatpush1.msra.mxu0 0.0
        %3434 = vmatprep.subr.mxu0 0.0
        %3435 = vmatpush1.msra.mxu0 0.0
        %3436 = vmatprep.subr.mxu0 0.0
        %3437 = vmatpush1.msra.mxu0 0.0
        %3438 = vmatprep.subr.mxu0 0.0
        %3439 = vmatpush1.msra.mxu0 0.0
        %3440 = vmatprep.subr.mxu0 0.0
        %3441 = vmatpush1.msra.mxu0 0.0
        %3442 = vmatprep.mubr.f32.mxu0 0.0
        %3443 = vmatmul.mubr.f32.gmra.mrb[0].mxu0 %v750
        %v3444 = vpop.f32.mrb[0].mxu0
        %v3445 = vadd.f32 %v3370, %v3444
        %v3446 = vpop.f32.mrb[0].mxu0
        %3447 = vmatprep.mubr.f32.mxu0 0.0
        %3448 = vmatmul.mubr.f32.gmra.mrb[0].mxu0 %v751
        %v3449 = vpop.f32.mrb[0].mxu0
        %v3450 = vadd.f32 %v3375, %v3449
        %v3451 = vpop.f32.mrb[0].mxu0
        %3452 = vdwg.mxu0
        %v3453 = vld [vmem:[%s16] sm:$0x1]
        %v3455 = vlaneseq
        %v3456 = vshrl.u32 %v3455, 7
        %v3457 = vsub.s32 0, %v3456
        %v3458 = vrot.slane %v3453, %v3457
        %v3460 = vadd.f32 %v3445, %v3458
        %v3461 = vadd.f32 %v3450, %v3458
        %v3462 = vmax.f32 %v3460, 0.0
        %v3463 = vmax.f32 %v3461, 0.0
        %3464 = vst [vmem:[%s733] sm:$0xff] %v3462
        %3465 = vst [vmem:[%s733 + $0x8] sm:$0xff] %v3463
        %3466 = vst.msk [vmem:[%s748] sm:$0xff] %vm3116, %v3136
        %3467 = vst.msk [vmem:[%s748 + $0x8] sm:$0xff] %vm3116, %v3138
        %s3468 = sand.u32 %s418, 1
        %s3469 = scalar_lea.sflag [#allocation5], %s3468
        %s3470 = sand.u32 %s418, 1
        %s3471 = smul.addr %s3470, 16
        %s3472 = scalar_lea.vmem [#allocation15], %s3471
        %s3473 = smul.u32 2, %s43
        %p3474 = scmp.lt.s32.totalorder %s3473, 3
        %s3475 = scalar_select %p3474, %s3473, 3
        %s3476 = smul.addr %s3475, 8
        %s3477 = scalar_lea.vmem %s18, %s3476
        // Predicated region
        $region117: #{tpu_custom_call.1} parent=87 // pred_check
          %p3478 = pneg %p428
        $region118: #{tpu_custom_call.1} parent=87 // pred_check_branch
          %3480 = sbr.rel (%p3478) target = $region120
        $region119: #{tpu_custom_call.1} parent=87 // pred_region
          %s3481 = smul.u32 2, %s43
          %s3483 = ssub.s32 256, 256
          %3484 = vsyncadd %s3469, %s3483
          %s3485 = smul.addr %s3481, 128
          %s3486 = scalar_lea.hbm %s17, %s3485
          %s3487 = sshll.u32 %s3472, 4
          %s3488 = int_to_ptr.vmem [resolvable:$true] %s3487
          %3493 = dma.vmem_to_hbm [thread:$0]  %s3488, 256, %s3486, %s3469, 128, 128, 8
        $region120: #{tpu_custom_call.1} parent=87 // pred_fallthru
          _
        // Predicated region
        $region121: #{tpu_custom_call.1} parent=87 // pred_check
          %p3494 = pneg %p454
        $region122: #{tpu_custom_call.1} parent=87 // pred_check_branch
          %3496 = sbr.rel (%p3494) target = $region124
        $region123: #{tpu_custom_call.1} parent=87 // pred_region
          %s3497 = smul.u32 2, %s43
        $region124: #{tpu_custom_call.1} parent=87 // pred_fallthru
          _
      $region88: #{tpu_custom_call.1} parent=5 // pred_fallthru
        _
      %p3498 = scmp.le.s32.totalorder 2, %s38
      // Predicated region
      $region125: #{tpu_custom_call.1} parent=5 // pred_check
        %p3499 = pneg %p3498
      $region126: #{tpu_custom_call.1} parent=5 // pred_check_branch
        %3501 = sbr.rel (%p3499) target = $region128
      $region127: #{tpu_custom_call.1} parent=5 // pred_region
        %s3502 = ssub.s32 %s38, 2
        // Predicated region
        $region129: #{tpu_custom_call.1} parent=127 // pred_check
          %p3503 = pneg %p434
        $region130: #{tpu_custom_call.1} parent=127 // pred_check_branch
          %3505 = sbr.rel (%p3503) target = $region132
        $region131: #{tpu_custom_call.1} parent=127 // pred_region
          %s3506 = sand.u32 %s419, 1
          %s3507 = scalar_lea.sflag [#allocation5], %s3506
          %s3508 = sand.u32 %s419, 1
          %s3509 = smul.addr %s3508, 16
          %s3510 = scalar_lea.vmem [#allocation15], %s3509
          %3511 = dma.done %s3507, 256
        $region132: #{tpu_custom_call.1} parent=127 // pred_fallthru
          _
        // Predicated region
        $region133: #{tpu_custom_call.1} parent=127 // pred_check
          %p3512 = pneg %p460
        $region134: #{tpu_custom_call.1} parent=127 // pred_check_branch
          %3514 = sbr.rel (%p3512) target = $region136
        $region135: #{tpu_custom_call.1} parent=127 // pred_region
          %s3515 = smul.u32 2, %s44
          %p3516 = scmp.lt.s32.totalorder %s3515, 3
          %s3517 = scalar_select %p3516, %s3515, 3
          %s3518 = smul.addr %s3517, 8
          %s3519 = scalar_lea.vmem %s18, %s3518
        $region136: #{tpu_custom_call.1} parent=127 // pred_fallthru
          _
      $region128: #{tpu_custom_call.1} parent=5 // pred_fallthru
        _
    $region6: #{tpu_custom_call.1} parent=1 // loop_footer
      %s42 = sadd.s32 1, %s38
    $region7: #{tpu_custom_call.1} parent=1 // loop_footer_branch
      %37 = sbr.rel target = $region3
    $region8: #{tpu_custom_call.1} parent=1 // loop_exit
      _
    %3520 = vsyncpa [#allocation4], 1
    %s3521 = scalar_lea.sflag [#allocation4], 1
    %3522 = vsyncpa %s3521, 1
    %3523 = vsyncpa [#allocation7], 1
    %s3524 = scalar_lea.sflag [#allocation7], 1
    %3525 = vsyncpa %s3524, 1
    %3526 = vsyncpa [#allocation10], 1
    %3527 = vsyncpa [#allocation13], 1
    %3528 = vsyncpa [#allocation5], 1
    %s3529 = scalar_lea.sflag [#allocation5], 1
    %3530 = vsyncpa %s3529, 1

</llo_original>
